<compile_context>
chip_gen: v6e
topology: v6e:2x2x1
jax: 0.10.0
libtpu: 0.0.40
codegen_flags: <defaults>
</compile_context>

<pallas_src>
import jax
import jax.numpy as jnp
import numpy as np
from jax.experimental import pallas as pl
from jax.experimental.pallas import tpu as pltpu


def _round_up(a, b):
    return -(-a // b) * b


# --------------------------- weight construction --------------------------- #

def _axis_interp_weights(start, bin_size, pooled, grid, length):
    """Per-axis bilinear weights averaged over the sampling grid.

    start, bin_size: (R,) f32. Returns (R, pooled, length) f32 M with
    out[r, p] = sum_l M[r, p, l] * feat[l], reproducing torchvision
    RoIAlign(aligned=True) along one axis (out-of-range zeroing + edge clamp),
    averaged over `grid` samples per bin.
    """
    start = start[:, None, None]
    bin_size = bin_size[:, None, None]
    p_idx = jnp.arange(pooled, dtype=jnp.float32)[None, :, None]
    s_idx = jnp.arange(grid, dtype=jnp.float32)[None, None, :]
    y = start + p_idx * bin_size + (s_idx + 0.5) * bin_size / float(grid)   # (R,P,G)
    in_range = jnp.logical_and(y >= -1.0, y <= float(length))
    yc = jnp.maximum(y, 0.0)
    ylow = jnp.floor(yc)
    at_edge = ylow >= float(length - 1)
    ylow = jnp.where(at_edge, float(length - 1), ylow)
    yhigh = jnp.where(at_edge, float(length - 1), ylow + 1.0)
    yc = jnp.where(at_edge, ylow, yc)
    ly = yc - ylow
    hy = 1.0 - ly
    col = jnp.arange(length, dtype=jnp.float32)                             # (L,)
    w = (hy[..., None] * (col == ylow[..., None]).astype(jnp.float32)
         + ly[..., None] * (col == yhigh[..., None]).astype(jnp.float32))   # (R,P,G,L)
    w = w * in_range[..., None].astype(jnp.float32)
    return jnp.sum(w, axis=2) / float(grid)                                 # (R,P,L)


def _separable_roi_weights(coords, scale, output_size, padded_size,
                           sampling_ratio, H, W):
    """Separable per-ROI weights py (R, PHp, H), px (R, PWp, W) (pad rows zero)."""
    PH, PW = output_size
    PHp, PWp = padded_size
    coords = coords.astype(jnp.float32)
    start_w = coords[:, 0] * scale - 0.5
    start_h = coords[:, 1] * scale - 0.5
    roi_w = coords[:, 2] * scale - 0.5 - start_w
    roi_h = coords[:, 3] * scale - 0.5 - start_h
    py = _axis_interp_weights(start_h, roi_h / float(PH), PH, sampling_ratio, H)
    px = _axis_interp_weights(start_w, roi_w / float(PW), PW, sampling_ratio, W)
    R = coords.shape[0]
    if PHp > PH:
        py = jnp.concatenate([py, jnp.zeros((R, PHp - PH, H), py.dtype)], axis=1)
    if PWp > PW:
        px = jnp.concatenate([px, jnp.zeros((R, PWp - PW, W), px.dtype)], axis=1)
    return py, px


# --------------------------------- kernel ---------------------------------- #

def _sr_pool_kernel(bidx_ref, py_ref, px_ref, x_ref, out_ref):
    """Two-stage separable RoIAlign for one (C-tile, ROI-block) grid step."""
    del bidx_ref                        # consumed by the index_maps only
    ct = x_ref.shape[2]
    hh, ww = x_ref.shape[3], x_ref.shape[4]
    rb, pwp = px_ref.shape[1], px_ref.shape[2]
    mph = py_ref.shape[1]               # RB * PHp, PHp a multiple of 8
    php = mph // rb

    feat = x_ref[0, 0]                                           # (Ct, H, W)
    # Stage 1: contract H.  (RB*PHp, H) @ (H, W) per channel, batched over the
    # channel tile; f32 accumulation on the MXU.
    py = jnp.broadcast_to(py_ref[0][None], (ct, mph, hh))
    t = jnp.einsum('cmh,chw->cmw', py, feat,
                   preferred_element_type=jnp.float32)           # (Ct, RB*PHp, W) f32

    # Stage 2: contract W per ROI (static, unrolled over the ROI block).
    # Row slices are taken at multiples of PHp (= 8), i.e. on sublane-tile
    # boundaries, before any down-cast.
    for r in range(rb):
        t_r = t[:, r * php:(r + 1) * php, :].astype(px_ref.dtype)       # (Ct, PHp, W)
        px_r = jnp.broadcast_to(px_ref[0, r][None], (ct, pwp, ww))      # (Ct, PWp, W)
        o_r = jnp.einsum('cpw,cqw->cpq', t_r, px_r,
                         preferred_element_type=jnp.float32)            # (Ct, PHp, PWp)
        out_ref[0, 0, r * ct:(r + 1) * ct] = o_r.astype(out_ref.dtype)


# -------------------------------- wrapper ----------------------------------- #

def _tile_bytes(rows, cols, itemsize):
    sub = {4: 8, 2: 16, 1: 32}.get(int(itemsize), 8)
    return _round_up(max(int(rows), 1), sub) * _round_up(max(int(cols), 1), 128) * int(itemsize)


def sr_pool(x, boxes, *, output_size, scale, sampling_ratio,
            rois_per_step=8, c_tile=None, compute_dtype=None):
    """RoIAlign(aligned=True) over a single feature level.

    x: (N, C, H, W); boxes: list (len N) of (n_i, 4) [x1, y1, x2, y2] arrays.
    Returns (R, C, PH, PW) with R = sum(n_i), ROIs in per-image concat order.
    """
    if sampling_ratio <= 0:
        # TODO(synk): adaptive ceil(roi/bin) sampling grid (sampling_ratio<=0) is
        # data-dependent per ROI and has no clean static Pallas equivalent.
        raise NotImplementedError("sampling_ratio must be > 0")
    N, C, H, W = x.shape
    PH, PW = output_size
    PHp, PWp = _round_up(PH, 8), _round_up(PW, 8)
    if c_tile is None:
        c_tile = C
    if C % c_tile != 0:
        raise ValueError(f"c_tile ({c_tile}) must divide C ({C})")
    n_c = C // c_tile
    if compute_dtype is None:
        compute_dtype = x.dtype
    out_dtype = x.dtype                      # matches torchvision (f32 accumulation inside)

    counts = [int(b.shape[0]) for b in boxes]
    R = sum(counts)
    if R == 0:
        return jnp.zeros((0, C, PH, PW), out_dtype)

    # Keep at least 2 parallel grid points so both v7x TensorCores get work.
    RB = max(1, int(rois_per_step))
    def _num_blocks(rb):
        return sum(-(-n // rb) for n in counts if n > 0)
    while RB > 1 and n_c * _num_blocks(RB) < 2:
        RB = (RB + 1) // 2

    coords = jnp.concatenate(
        [jnp.asarray(b, jnp.float32).reshape(-1, 4) for b in boxes], axis=0)
    py, px = _separable_roi_weights(coords, float(scale), (PH, PW), (PHp, PWp),
                                    int(sampling_ratio), H, W)   # (R,PHp,H), (R,PWp,W)

    # Pad each image's ROI segment to a multiple of RB with zero-weight ROIs so
    # every grid step's ROI block comes from exactly one image.
    py_segs, px_segs, block_bidx, valid_idx = [], [], [], []
    off = 0
    pad_off = 0
    for i, n in enumerate(counts):
        n_pad = -(-n // RB) * RB
        if n_pad > 0:
            py_seg, px_seg = py[off:off + n], px[off:off + n]
            if n_pad > n:
                py_seg = jnp.concatenate(
                    [py_seg, jnp.zeros((n_pad - n, PHp, H), py.dtype)], axis=0)
                px_seg = jnp.concatenate(
                    [px_seg, jnp.zeros((n_pad - n, PWp, W), px.dtype)], axis=0)
            py_segs.append(py_seg)
            px_segs.append(px_seg)
            block_bidx.extend([i] * (n_pad // RB))
        valid_idx.extend(range(pad_off, pad_off + n))
        off += n
        pad_off += n_pad
    r_pad = pad_off
    n_blocks = r_pad // RB
    py_pad = jnp.concatenate(py_segs, 0).reshape(n_blocks, RB * PHp, H).astype(compute_dtype)
    px_pad = jnp.concatenate(px_segs, 0).reshape(n_blocks, RB, PWp, W).astype(compute_dtype)
    block_bidx = jnp.asarray(np.asarray(block_bidx, np.int32))
    valid_idx = jnp.asarray(np.asarray(valid_idx, np.int32))

    # Feature stays in native NCHW layout: pure reshape (+ optional bf16 cast).
    x_resh = x.reshape(N, n_c, c_tile, H, W).astype(compute_dtype)

    # --- VMEM budgeting (generation-aware, fails loudly if it cannot fit) ----
    cdt_b = jnp.dtype(compute_dtype).itemsize
    odt_b = jnp.dtype(out_dtype).itemsize
    feat_blk = c_tile * _tile_bytes(H, W, cdt_b)
    py_blk = _tile_bytes(RB * PHp, H, cdt_b)
    px_blk = RB * _tile_bytes(PWp, W, cdt_b)
    o_blk = RB * c_tile * _tile_bytes(PHp, PWp, odt_b)
    io_blk = feat_blk + py_blk + px_blk + o_blk
    work = (c_tile * _tile_bytes(RB * PHp, H, cdt_b)        # broadcast py
            + 2 * c_tile * _tile_bytes(RB * PHp, W, 4)      # f32 stage-1 intermediate
            + c_tile * _tile_bytes(PWp, W, cdt_b)           # broadcast px slice
            + RB * c_tile * _tile_bytes(PHp, PWp, 4))       # stage-2 results
    need = 2 * io_blk + work                                 # double-buffered pipeline
    try:
        phys = int(pltpu.get_tpu_info().vmem_capacity_bytes)
    except Exception:
        phys = 64 << 20                                      # conservative (v7x per-core)
    cap = (phys * 3) // 4
    if need > cap:
        raise ValueError(
            f"SRPool block footprint {need >> 20} MiB exceeds the VMEM budget "
            f"{cap >> 20} MiB; reduce c_tile ({c_tile}) or rois_per_step ({RB}).")
    vmem_limit = int(min(cap, max(need + (8 << 20), 32 << 20)))

    # --- pallas_call ----------------------------------------------------------
    grid_spec = pltpu.PrefetchScalarGridSpec(
        num_scalar_prefetch=1,                 # block_bidx -> SMEM, drives x index_map
        grid=(n_c, n_blocks),                  # ROI block innermost: feature tile is
                                               # reused (no re-DMA) across consecutive
                                               # ROI blocks of the same image.
        in_specs=[
            pl.BlockSpec((1, RB * PHp, H), lambda c, b, bidx: (b, 0, 0)),
            pl.BlockSpec((1, RB, PWp, W), lambda c, b, bidx: (b, 0, 0, 0)),
            pl.BlockSpec((1, 1, c_tile, H, W), lambda c, b, bidx: (bidx[b], c, 0, 0, 0)),
        ],
        out_specs=pl.BlockSpec((1, 1, RB * c_tile, PHp, PWp),
                               lambda c, b, bidx: (b, c, 0, 0, 0)),
    )
    out = pl.pallas_call(
        _sr_pool_kernel,
        grid_spec=grid_spec,
        out_shape=jax.ShapeDtypeStruct((n_blocks, n_c, RB * c_tile, PHp, PWp), out_dtype),
        compiler_params=pltpu.CompilerParams(
            dimension_semantics=("parallel", "parallel"),
            vmem_limit_bytes=vmem_limit,
        ),
    )(block_bidx, py_pad, px_pad, x_resh)

    # --- epilogue: drop pad ROIs / pad bins, restore (R, C, PH, PW) -----------
    out = out.reshape(n_blocks, n_c, RB, c_tile, PHp, PWp)
    out = jnp.transpose(out, (0, 2, 1, 3, 4, 5)).reshape(r_pad, C, PHp, PWp)
    out = jnp.take(out, valid_idx, axis=0)
    return out[:, :, :PH, :PW]


# ------------------------------ module wrapper ------------------------------ #

def convert_to_roi_format(boxes):
    """Mirror of SRPooler.convert_to_roi_format (ids split out as int32)."""
    coords = jnp.concatenate(list(boxes), axis=0).astype(jnp.float32)
    ids = jnp.concatenate(
        [jnp.full((b.shape[0],), i, dtype=jnp.int32) for i, b in enumerate(boxes)],
        axis=0)
    return ids, coords


def sr_pooler_forward(x, boxes, sr=None, *, output_size, scale, sampling_ratio,
                      rois_per_step=8, c_tile=None, compute_dtype=None):
    """Pallas equivalent of SRPooler.forward (single feature level, no params)."""
    src = boxes if sr is None else sr
    return sr_pool(x, src, output_size=output_size, scale=scale,
                   sampling_ratio=sampling_ratio, rois_per_step=rois_per_step,
                   c_tile=c_tile, compute_dtype=compute_dtype)


# ----------------------------- numpy reference ----------------------------- #

def _bilinear_ref(feat, y, x):
    C, H, W = feat.shape
    if y < -1.0 or y > H or x < -1.0 or x > W:
        return np.zeros((C,), np.float32)
    y = max(y, 0.0)
    x = max(x, 0.0)
    y_low = int(np.floor(y))
    x_low = int(np.floor(x))
    if y_low >= H - 1:
        y_high = y_low = H - 1
        y = float(y_low)
    else:
        y_high = y_low + 1
    if x_low >= W - 1:
        x_high = x_low = W - 1
        x = float(x_low)
    else:
        x_high = x_low + 1
    ly = y - y_low
    lx = x - x_low
    hy = 1.0 - ly
    hx = 1.0 - lx
    return (hy * hx * feat[:, y_low, x_low] + hy * lx * feat[:, y_low, x_high]
            + ly * hx * feat[:, y_high, x_low] + ly * lx * feat[:, y_high, x_high])


def roi_align_ref(x, batch_idx, coords, output_size, scale, sampling_ratio):
    x = np.asarray(x, np.float32)
    coords = np.asarray(coords, np.float32)
    batch_idx = np.asarray(batch_idx)
    _, C, H, W = x.shape
    PH, PW = output_size
    R = coords.shape[0]
    g = sampling_ratio
    out = np.zeros((R, C, PH, PW), np.float32)
    for r in range(R):
        b = int(batch_idx[r])
        sw = coords[r, 0] * scale - 0.5
        sh = coords[r, 1] * scale - 0.5
        ew = coords[r, 2] * scale - 0.5
        eh = coords[r, 3] * scale - 0.5
        bh = (eh - sh) / PH
        bw = (ew - sw) / PW
        for ph in range(PH):
            for pw_ in range(PW):
                acc = np.zeros((C,), np.float32)
                for iy in range(g):
                    y = sh + ph * bh + (iy + 0.5) * bh / g
                    for ix in range(g):
                        xx = sw + pw_ * bw + (ix + 0.5) * bw / g
                        acc = acc + _bilinear_ref(x[b], y, xx)
                out[r, :, ph, pw_] = acc / float(g * g)
    return out


if __name__ == "__main__":
    key = jax.random.PRNGKey(0)
    N, C, H, W = 2, 4, 16, 16
    output_size = (7, 7)
    scale = 0.5          # feature map is 1/2 of image resolution
    sampling_ratio = 2
    img_size = 32.0

    k_feat, k_box = jax.random.split(key)
    x = jax.random.normal(k_feat, (N, C, H, W), dtype=jnp.float32)

    boxes = []
    num_boxes = [3, 2]
    kk = k_box
    for n in num_boxes:
        kk, ka, kb = jax.random.split(kk, 3)
        lo = jax.random.uniform(ka, (n, 2), minval=0.0, maxval=18.0)
        sz = jax.random.uniform(kb, (n, 2), minval=4.0, maxval=12.0)
        hi = jnp.minimum(lo + sz, img_size)
        boxes.append(jnp.concatenate([lo, hi], axis=1).astype(jnp.float32))  # x1,y1,x2,y2

    batch_idx, coords = convert_to_roi_format(boxes)
    ref = roi_align_ref(x, batch_idx, coords, output_size, scale, sampling_ratio)

    # f32 path (matches torchvision RoIAlign numerics).
    out = sr_pooler_forward(x, boxes, sr=None, output_size=output_size,
                            scale=scale, sampling_ratio=sampling_ratio)
    out = jax.block_until_ready(out)
    assert out.shape == ref.shape, (out.shape, ref.shape)
    err = float(np.max(np.abs(np.asarray(out, np.float32) - ref)))
    assert np.allclose(np.asarray(out, np.float32), ref, atol=2e-4, rtol=2e-4), err

    # bf16 MXU-input path (halves feature HBM traffic); also exercises C tiling
    # and a different ROI-block size.
    out_bf = sr_pooler_forward(x, boxes, sr=None, output_size=output_size,
                               scale=scale, sampling_ratio=sampling_ratio,
                               rois_per_step=4, c_tile=2,
                               compute_dtype=jnp.bfloat16)
    out_bf = jax.block_until_ready(out_bf)
    err_bf = float(np.max(np.abs(np.asarray(out_bf, np.float32) - ref)))
    assert np.allclose(np.asarray(out_bf, np.float32), ref, atol=5e-2, rtol=0.0), err_bf

    print("KERNEL_OK")
</pallas_src>

<mosaic_0001>
module attributes {stable_mosaic.version = 11 : i64} {
  func.func @_sr_pool_kernel(%arg0: i32, %arg1: i32, %arg2: memref<2xi32, #tpu.memory_space<smem>>, %arg3: memref<1x64x16xf32, #tpu.memory_space<vmem>>, %arg4: memref<1x8x8x16xf32, #tpu.memory_space<vmem>>, %arg5: memref<1x1x4x16x16xf32, #tpu.memory_space<vmem>>, %arg6: memref<1x1x32x8x8xf32, #tpu.memory_space<vmem>>) attributes {dimension_semantics = [#tpu.dimension_semantics<parallel>, #tpu.dimension_semantics<parallel>], iteration_bounds = array<i64: 1, 2>, scalar_prefetch = 1 : i64, scratch_operands = 0 : i64, tpu.core_type = #tpu.core_type<tc>, window_params = [{transform_indices = @transform_0, window_bounds = array<i64: 1, 64, 16>}, {transform_indices = @transform_1, window_bounds = array<i64: 1, 8, 8, 16>}, {transform_indices = @transform_2, window_bounds = array<i64: 1, 1, 4, 16, 16>}, {transform_indices = @transform_3, window_bounds = array<i64: 1, 1, 32, 8, 8>}]} {
    %c0 = arith.constant 0 : index
    %c0_0 = arith.constant 0 : index
    %c0_1 = arith.constant 0 : index
    %c0_2 = arith.constant 0 : index
    %c0_3 = arith.constant 0 : index
    %0 = vector.load %arg5[%c0, %c0_0, %c0_1, %c0_2, %c0_3] : memref<1x1x4x16x16xf32, #tpu.memory_space<vmem>>, vector<1x1x4x16x16xf32>
    %1 = vector.shape_cast %0 : vector<1x1x4x16x16xf32> to vector<4x16x16xf32>
    %c0_4 = arith.constant 0 : index
    %c0_5 = arith.constant 0 : index
    %c0_6 = arith.constant 0 : index
    %2 = vector.load %arg3[%c0_4, %c0_5, %c0_6] : memref<1x64x16xf32, #tpu.memory_space<vmem>>, vector<1x64x16xf32>
    %3 = vector.shape_cast %2 : vector<1x64x16xf32> to vector<64x16xf32>
    %4 = vector.shape_cast %3 : vector<64x16xf32> to vector<1x64x16xf32>
    %5 = vector.shape_cast %4 : vector<1x64x16xf32> to vector<1x64x16xf32>
    %6 = vector.broadcast %5 : vector<1x64x16xf32> to vector<4x64x16xf32>
    "tpu.trace_start"() <{level = 10 : i32, message = "cmh,chw->cmw"}> : () -> ()
    %cst = arith.constant dense<0.000000e+00> : vector<4x64x16xf32>
    %7 = tpu.matmul %6, %1, %cst {dimension_numbers = #tpu.dot_dimension_numbers<[2], [1], [1], [2], [0, 0, 0, 1, 1, 2], [0], [0]>} : vector<4x64x16xf32>, vector<4x16x16xf32>, vector<4x64x16xf32> -> vector<4x64x16xf32>
    "tpu.trace_stop"() : () -> ()
    %8 = vector.extract_strided_slice %7 {offsets = [0, 0, 0], sizes = [4, 8, 16], strides = [1, 1, 1]} : vector<4x64x16xf32> to vector<4x8x16xf32>
    %c0_7 = arith.constant 0 : index
    %c0_8 = arith.constant 0 : index
    %c0_9 = arith.constant 0 : index
    %c0_10 = arith.constant 0 : index
    %9 = vector.load %arg4[%c0_7, %c0_8, %c0_9, %c0_10] : memref<1x8x8x16xf32, #tpu.memory_space<vmem>>, vector<1x1x8x16xf32>
    %10 = vector.shape_cast %9 : vector<1x1x8x16xf32> to vector<8x16xf32>
    %11 = vector.shape_cast %10 : vector<8x16xf32> to vector<1x8x16xf32>
    %12 = vector.shape_cast %11 : vector<1x8x16xf32> to vector<1x8x16xf32>
    %13 = vector.broadcast %12 : vector<1x8x16xf32> to vector<4x8x16xf32>
    "tpu.trace_start"() <{level = 10 : i32, message = "cpw,cqw->cpq"}> : () -> ()
    %cst_11 = arith.constant dense<0.000000e+00> : vector<4x8x8xf32>
    %14 = tpu.matmul %8, %13, %cst_11 {dimension_numbers = #tpu.dot_dimension_numbers<[2], [2], [1], [1], [0, 0, 0, 1, 1, 1], [0], [0]>} : vector<4x8x16xf32>, vector<4x8x16xf32>, vector<4x8x8xf32> -> vector<4x8x8xf32>
    "tpu.trace_stop"() : () -> ()
    %c0_12 = arith.constant 0 : index
    %c0_13 = arith.constant 0 : index
    %c0_14 = arith.constant 0 : index
    %c0_15 = arith.constant 0 : index
    %c0_16 = arith.constant 0 : index
    %15 = vector.load %arg6[%c0_12, %c0_13, %c0_14, %c0_15, %c0_16] : memref<1x1x32x8x8xf32, #tpu.memory_space<vmem>>, vector<1x1x4x8x8xf32>
    %16 = vector.shape_cast %15 : vector<1x1x4x8x8xf32> to vector<4x8x8xf32>
    %17 = vector.shape_cast %14 : vector<4x8x8xf32> to vector<1x1x4x8x8xf32>
    tpu.vector_store %arg6[%c0_12, %c0_13, %c0_14, %c0_15, %c0_16], %17 {strides = array<i32>} : memref<1x1x32x8x8xf32, #tpu.memory_space<vmem>>, vector<1x1x4x8x8xf32>,
    %18 = vector.extract_strided_slice %7 {offsets = [0, 8, 0], sizes = [4, 8, 16], strides = [1, 1, 1]} : vector<4x64x16xf32> to vector<4x8x16xf32>
    %c0_17 = arith.constant 0 : index
    %c1 = arith.constant 1 : index
    %c0_18 = arith.constant 0 : index
    %c0_19 = arith.constant 0 : index
    %19 = vector.load %arg4[%c0_17, %c1, %c0_18, %c0_19] : memref<1x8x8x16xf32, #tpu.memory_space<vmem>>, vector<1x1x8x16xf32>
    %20 = vector.shape_cast %19 : vector<1x1x8x16xf32> to vector<8x16xf32>
    %21 = vector.shape_cast %20 : vector<8x16xf32> to vector<1x8x16xf32>
    %22 = vector.shape_cast %21 : vector<1x8x16xf32> to vector<1x8x16xf32>
    %23 = vector.broadcast %22 : vector<1x8x16xf32> to vector<4x8x16xf32>
    "tpu.trace_start"() <{level = 10 : i32, message = "cpw,cqw->cpq"}> : () -> ()
    %cst_20 = arith.constant dense<0.000000e+00> : vector<4x8x8xf32>
    %24 = tpu.matmul %18, %23, %cst_20 {dimension_numbers = #tpu.dot_dimension_numbers<[2], [2], [1], [1], [0, 0, 0, 1, 1, 1], [0], [0]>} : vector<4x8x16xf32>, vector<4x8x16xf32>, vector<4x8x8xf32> -> vector<4x8x8xf32>
    "tpu.trace_stop"() : () -> ()
    %c0_21 = arith.constant 0 : index
    %c0_22 = arith.constant 0 : index
    %c4 = arith.constant 4 : index
    %c0_23 = arith.constant 0 : index
    %c0_24 = arith.constant 0 : index
    %25 = vector.load %arg6[%c0_21, %c0_22, %c4, %c0_23, %c0_24] : memref<1x1x32x8x8xf32, #tpu.memory_space<vmem>>, vector<1x1x4x8x8xf32>
    %26 = vector.shape_cast %25 : vector<1x1x4x8x8xf32> to vector<4x8x8xf32>
    %27 = vector.shape_cast %24 : vector<4x8x8xf32> to vector<1x1x4x8x8xf32>
    tpu.vector_store %arg6[%c0_21, %c0_22, %c4, %c0_23, %c0_24], %27 {strides = array<i32>} : memref<1x1x32x8x8xf32, #tpu.memory_space<vmem>>, vector<1x1x4x8x8xf32>,
    %28 = vector.extract_strided_slice %7 {offsets = [0, 16, 0], sizes = [4, 8, 16], strides = [1, 1, 1]} : vector<4x64x16xf32> to vector<4x8x16xf32>
    %c0_25 = arith.constant 0 : index
    %c2 = arith.constant 2 : index
    %c0_26 = arith.constant 0 : index
    %c0_27 = arith.constant 0 : index
    %29 = vector.load %arg4[%c0_25, %c2, %c0_26, %c0_27] : memref<1x8x8x16xf32, #tpu.memory_space<vmem>>, vector<1x1x8x16xf32>
    %30 = vector.shape_cast %29 : vector<1x1x8x16xf32> to vector<8x16xf32>
    %31 = vector.shape_cast %30 : vector<8x16xf32> to vector<1x8x16xf32>
    %32 = vector.shape_cast %31 : vector<1x8x16xf32> to vector<1x8x16xf32>
    %33 = vector.broadcast %32 : vector<1x8x16xf32> to vector<4x8x16xf32>
    "tpu.trace_start"() <{level = 10 : i32, message = "cpw,cqw->cpq"}> : () -> ()
    %cst_28 = arith.constant dense<0.000000e+00> : vector<4x8x8xf32>
    %34 = tpu.matmul %28, %33, %cst_28 {dimension_numbers = #tpu.dot_dimension_numbers<[2], [2], [1], [1], [0, 0, 0, 1, 1, 1], [0], [0]>} : vector<4x8x16xf32>, vector<4x8x16xf32>, vector<4x8x8xf32> -> vector<4x8x8xf32>
    "tpu.trace_stop"() : () -> ()
    %c0_29 = arith.constant 0 : index
    %c0_30 = arith.constant 0 : index
    %c8 = arith.constant 8 : index
    %c0_31 = arith.constant 0 : index
    %c0_32 = arith.constant 0 : index
    %35 = vector.load %arg6[%c0_29, %c0_30, %c8, %c0_31, %c0_32] : memref<1x1x32x8x8xf32, #tpu.memory_space<vmem>>, vector<1x1x4x8x8xf32>
    %36 = vector.shape_cast %35 : vector<1x1x4x8x8xf32> to vector<4x8x8xf32>
    %37 = vector.shape_cast %34 : vector<4x8x8xf32> to vector<1x1x4x8x8xf32>
    tpu.vector_store %arg6[%c0_29, %c0_30, %c8, %c0_31, %c0_32], %37 {strides = array<i32>} : memref<1x1x32x8x8xf32, #tpu.memory_space<vmem>>, vector<1x1x4x8x8xf32>,
    %38 = vector.extract_strided_slice %7 {offsets = [0, 24, 0], sizes = [4, 8, 16], strides = [1, 1, 1]} : vector<4x64x16xf32> to vector<4x8x16xf32>
    %c0_33 = arith.constant 0 : index
    %c3 = arith.constant 3 : index
    %c0_34 = arith.constant 0 : index
    %c0_35 = arith.constant 0 : index
    %39 = vector.load %arg4[%c0_33, %c3, %c0_34, %c0_35] : memref<1x8x8x16xf32, #tpu.memory_space<vmem>>, vector<1x1x8x16xf32>
    %40 = vector.shape_cast %39 : vector<1x1x8x16xf32> to vector<8x16xf32>
    %41 = vector.shape_cast %40 : vector<8x16xf32> to vector<1x8x16xf32>
    %42 = vector.shape_cast %41 : vector<1x8x16xf32> to vector<1x8x16xf32>
    %43 = vector.broadcast %42 : vector<1x8x16xf32> to vector<4x8x16xf32>
    "tpu.trace_start"() <{level = 10 : i32, message = "cpw,cqw->cpq"}> : () -> ()
    %cst_36 = arith.constant dense<0.000000e+00> : vector<4x8x8xf32>
    %44 = tpu.matmul %38, %43, %cst_36 {dimension_numbers = #tpu.dot_dimension_numbers<[2], [2], [1], [1], [0, 0, 0, 1, 1, 1], [0], [0]>} : vector<4x8x16xf32>, vector<4x8x16xf32>, vector<4x8x8xf32> -> vector<4x8x8xf32>
    "tpu.trace_stop"() : () -> ()
    %c0_37 = arith.constant 0 : index
    %c0_38 = arith.constant 0 : index
    %c12 = arith.constant 12 : index
    %c0_39 = arith.constant 0 : index
    %c0_40 = arith.constant 0 : index
    %45 = vector.load %arg6[%c0_37, %c0_38, %c12, %c0_39, %c0_40] : memref<1x1x32x8x8xf32, #tpu.memory_space<vmem>>, vector<1x1x4x8x8xf32>
    %46 = vector.shape_cast %45 : vector<1x1x4x8x8xf32> to vector<4x8x8xf32>
    %47 = vector.shape_cast %44 : vector<4x8x8xf32> to vector<1x1x4x8x8xf32>
    tpu.vector_store %arg6[%c0_37, %c0_38, %c12, %c0_39, %c0_40], %47 {strides = array<i32>} : memref<1x1x32x8x8xf32, #tpu.memory_space<vmem>>, vector<1x1x4x8x8xf32>,
    %48 = vector.extract_strided_slice %7 {offsets = [0, 32, 0], sizes = [4, 8, 16], strides = [1, 1, 1]} : vector<4x64x16xf32> to vector<4x8x16xf32>
    %c0_41 = arith.constant 0 : index
    %c4_42 = arith.constant 4 : index
    %c0_43 = arith.constant 0 : index
    %c0_44 = arith.constant 0 : index
    %49 = vector.load %arg4[%c0_41, %c4_42, %c0_43, %c0_44] : memref<1x8x8x16xf32, #tpu.memory_space<vmem>>, vector<1x1x8x16xf32>
    %50 = vector.shape_cast %49 : vector<1x1x8x16xf32> to vector<8x16xf32>
    %51 = vector.shape_cast %50 : vector<8x16xf32> to vector<1x8x16xf32>
    %52 = vector.shape_cast %51 : vector<1x8x16xf32> to vector<1x8x16xf32>
    %53 = vector.broadcast %52 : vector<1x8x16xf32> to vector<4x8x16xf32>
    "tpu.trace_start"() <{level = 10 : i32, message = "cpw,cqw->cpq"}> : () -> ()
    %cst_45 = arith.constant dense<0.000000e+00> : vector<4x8x8xf32>
    %54 = tpu.matmul %48, %53, %cst_45 {dimension_numbers = #tpu.dot_dimension_numbers<[2], [2], [1], [1], [0, 0, 0, 1, 1, 1], [0], [0]>} : vector<4x8x16xf32>, vector<4x8x16xf32>, vector<4x8x8xf32> -> vector<4x8x8xf32>
    "tpu.trace_stop"() : () -> ()
    %c0_46 = arith.constant 0 : index
    %c0_47 = arith.constant 0 : index
    %c16 = arith.constant 16 : index
    %c0_48 = arith.constant 0 : index
    %c0_49 = arith.constant 0 : index
    %55 = vector.load %arg6[%c0_46, %c0_47, %c16, %c0_48, %c0_49] : memref<1x1x32x8x8xf32, #tpu.memory_space<vmem>>, vector<1x1x4x8x8xf32>
    %56 = vector.shape_cast %55 : vector<1x1x4x8x8xf32> to vector<4x8x8xf32>
    %57 = vector.shape_cast %54 : vector<4x8x8xf32> to vector<1x1x4x8x8xf32>
    tpu.vector_store %arg6[%c0_46, %c0_47, %c16, %c0_48, %c0_49], %57 {strides = array<i32>} : memref<1x1x32x8x8xf32, #tpu.memory_space<vmem>>, vector<1x1x4x8x8xf32>,
    %58 = vector.extract_strided_slice %7 {offsets = [0, 40, 0], sizes = [4, 8, 16], strides = [1, 1, 1]} : vector<4x64x16xf32> to vector<4x8x16xf32>
    %c0_50 = arith.constant 0 : index
    %c5 = arith.constant 5 : index
    %c0_51 = arith.constant 0 : index
    %c0_52 = arith.constant 0 : index
    %59 = vector.load %arg4[%c0_50, %c5, %c0_51, %c0_52] : memref<1x8x8x16xf32, #tpu.memory_space<vmem>>, vector<1x1x8x16xf32>
    %60 = vector.shape_cast %59 : vector<1x1x8x16xf32> to vector<8x16xf32>
    %61 = vector.shape_cast %60 : vector<8x16xf32> to vector<1x8x16xf32>
    %62 = vector.shape_cast %61 : vector<1x8x16xf32> to vector<1x8x16xf32>
    %63 = vector.broadcast %62 : vector<1x8x16xf32> to vector<4x8x16xf32>
    "tpu.trace_start"() <{level = 10 : i32, message = "cpw,cqw->cpq"}> : () -> ()
    %cst_53 = arith.constant dense<0.000000e+00> : vector<4x8x8xf32>
    %64 = tpu.matmul %58, %63, %cst_53 {dimension_numbers = #tpu.dot_dimension_numbers<[2], [2], [1], [1], [0, 0, 0, 1, 1, 1], [0], [0]>} : vector<4x8x16xf32>, vector<4x8x16xf32>, vector<4x8x8xf32> -> vector<4x8x8xf32>
    "tpu.trace_stop"() : () -> ()
    %c0_54 = arith.constant 0 : index
    %c0_55 = arith.constant 0 : index
    %c20 = arith.constant 20 : index
    %c0_56 = arith.constant 0 : index
    %c0_57 = arith.constant 0 : index
    %65 = vector.load %arg6[%c0_54, %c0_55, %c20, %c0_56, %c0_57] : memref<1x1x32x8x8xf32, #tpu.memory_space<vmem>>, vector<1x1x4x8x8xf32>
    %66 = vector.shape_cast %65 : vector<1x1x4x8x8xf32> to vector<4x8x8xf32>
    %67 = vector.shape_cast %64 : vector<4x8x8xf32> to vector<1x1x4x8x8xf32>
    tpu.vector_store %arg6[%c0_54, %c0_55, %c20, %c0_56, %c0_57], %67 {strides = array<i32>} : memref<1x1x32x8x8xf32, #tpu.memory_space<vmem>>, vector<1x1x4x8x8xf32>,
    %68 = vector.extract_strided_slice %7 {offsets = [0, 48, 0], sizes = [4, 8, 16], strides = [1, 1, 1]} : vector<4x64x16xf32> to vector<4x8x16xf32>
    %c0_58 = arith.constant 0 : index
    %c6 = arith.constant 6 : index
    %c0_59 = arith.constant 0 : index
    %c0_60 = arith.constant 0 : index
    %69 = vector.load %arg4[%c0_58, %c6, %c0_59, %c0_60] : memref<1x8x8x16xf32, #tpu.memory_space<vmem>>, vector<1x1x8x16xf32>
    %70 = vector.shape_cast %69 : vector<1x1x8x16xf32> to vector<8x16xf32>
    %71 = vector.shape_cast %70 : vector<8x16xf32> to vector<1x8x16xf32>
    %72 = vector.shape_cast %71 : vector<1x8x16xf32> to vector<1x8x16xf32>
    %73 = vector.broadcast %72 : vector<1x8x16xf32> to vector<4x8x16xf32>
    "tpu.trace_start"() <{level = 10 : i32, message = "cpw,cqw->cpq"}> : () -> ()
    %cst_61 = arith.constant dense<0.000000e+00> : vector<4x8x8xf32>
    %74 = tpu.matmul %68, %73, %cst_61 {dimension_numbers = #tpu.dot_dimension_numbers<[2], [2], [1], [1], [0, 0, 0, 1, 1, 1], [0], [0]>} : vector<4x8x16xf32>, vector<4x8x16xf32>, vector<4x8x8xf32> -> vector<4x8x8xf32>
    "tpu.trace_stop"() : () -> ()
    %c0_62 = arith.constant 0 : index
    %c0_63 = arith.constant 0 : index
    %c24 = arith.constant 24 : index
    %c0_64 = arith.constant 0 : index
    %c0_65 = arith.constant 0 : index
    %75 = vector.load %arg6[%c0_62, %c0_63, %c24, %c0_64, %c0_65] : memref<1x1x32x8x8xf32, #tpu.memory_space<vmem>>, vector<1x1x4x8x8xf32>
    %76 = vector.shape_cast %75 : vector<1x1x4x8x8xf32> to vector<4x8x8xf32>
    %77 = vector.shape_cast %74 : vector<4x8x8xf32> to vector<1x1x4x8x8xf32>
    tpu.vector_store %arg6[%c0_62, %c0_63, %c24, %c0_64, %c0_65], %77 {strides = array<i32>} : memref<1x1x32x8x8xf32, #tpu.memory_space<vmem>>, vector<1x1x4x8x8xf32>,
    %78 = vector.extract_strided_slice %7 {offsets = [0, 56, 0], sizes = [4, 8, 16], strides = [1, 1, 1]} : vector<4x64x16xf32> to vector<4x8x16xf32>
    %c0_66 = arith.constant 0 : index
    %c7 = arith.constant 7 : index
    %c0_67 = arith.constant 0 : index
    %c0_68 = arith.constant 0 : index
    %79 = vector.load %arg4[%c0_66, %c7, %c0_67, %c0_68] : memref<1x8x8x16xf32, #tpu.memory_space<vmem>>, vector<1x1x8x16xf32>
    %80 = vector.shape_cast %79 : vector<1x1x8x16xf32> to vector<8x16xf32>
    %81 = vector.shape_cast %80 : vector<8x16xf32> to vector<1x8x16xf32>
    %82 = vector.shape_cast %81 : vector<1x8x16xf32> to vector<1x8x16xf32>
    %83 = vector.broadcast %82 : vector<1x8x16xf32> to vector<4x8x16xf32>
    "tpu.trace_start"() <{level = 10 : i32, message = "cpw,cqw->cpq"}> : () -> ()
    %cst_69 = arith.constant dense<0.000000e+00> : vector<4x8x8xf32>
    %84 = tpu.matmul %78, %83, %cst_69 {dimension_numbers = #tpu.dot_dimension_numbers<[2], [2], [1], [1], [0, 0, 0, 1, 1, 1], [0], [0]>} : vector<4x8x16xf32>, vector<4x8x16xf32>, vector<4x8x8xf32> -> vector<4x8x8xf32>
    "tpu.trace_stop"() : () -> ()
    %c0_70 = arith.constant 0 : index
    %c0_71 = arith.constant 0 : index
    %c28 = arith.constant 28 : index
    %c0_72 = arith.constant 0 : index
    %c0_73 = arith.constant 0 : index
    %85 = vector.load %arg6[%c0_70, %c0_71, %c28, %c0_72, %c0_73] : memref<1x1x32x8x8xf32, #tpu.memory_space<vmem>>, vector<1x1x4x8x8xf32>
    %86 = vector.shape_cast %85 : vector<1x1x4x8x8xf32> to vector<4x8x8xf32>
    %87 = vector.shape_cast %84 : vector<4x8x8xf32> to vector<1x1x4x8x8xf32>
    tpu.vector_store %arg6[%c0_70, %c0_71, %c28, %c0_72, %c0_73], %87 {strides = array<i32>} : memref<1x1x32x8x8xf32, #tpu.memory_space<vmem>>, vector<1x1x4x8x8xf32>,
    return
  }
  func.func @transform_0(%arg0: i32, %arg1: i32, %arg2: memref<2xi32, #tpu.memory_space<smem>>) -> (i32, i32, i32) {
    %c0_i32 = arith.constant 0 : i32
    %c0_i32_0 = arith.constant 0 : i32
    %c0_i32_1 = arith.constant 0 : i32
    return %arg1, %c0_i32, %c0_i32_0 : i32, i32, i32
  }
  func.func @transform_1(%arg0: i32, %arg1: i32, %arg2: memref<2xi32, #tpu.memory_space<smem>>) -> (i32, i32, i32, i32) {
    %c0_i32 = arith.constant 0 : i32
    %c0_i32_0 = arith.constant 0 : i32
    %c0_i32_1 = arith.constant 0 : i32
    %c0_i32_2 = arith.constant 0 : i32
    return %arg1, %c0_i32, %c0_i32_0, %c0_i32_1 : i32, i32, i32, i32
  }
  func.func @transform_2(%arg0: i32, %arg1: i32, %arg2: memref<2xi32, #tpu.memory_space<smem>>) -> (i32, i32, i32, i32, i32) {
    %0 = arith.index_cast %arg1 : i32 to index
    %1 = memref.load %arg2[%0] : memref<2xi32, #tpu.memory_space<smem>>
    %c0_i32 = arith.constant 0 : i32
    %c0_i32_0 = arith.constant 0 : i32
    %c0_i32_1 = arith.constant 0 : i32
    %c0_i32_2 = arith.constant 0 : i32
    return %1, %arg0, %c0_i32, %c0_i32_0, %c0_i32_1 : i32, i32, i32, i32, i32
  }
  func.func @transform_3(%arg0: i32, %arg1: i32, %arg2: memref<2xi32, #tpu.memory_space<smem>>) -> (i32, i32, i32, i32, i32) {
    %c0_i32 = arith.constant 0 : i32
    %c0_i32_0 = arith.constant 0 : i32
    %c0_i32_1 = arith.constant 0 : i32
    %c0_i32_2 = arith.constant 0 : i32
    return %arg1, %arg0, %c0_i32, %c0_i32_0, %c0_i32_1 : i32, i32, i32, i32, i32
  }
}

</mosaic_0001>

<llo_original>
// kernel: tpu_custom_call.1
$region0: #{tpu_custom_call.1}
  #allocation0 [shape = 'u32[]', space=smem, size = 0x4, offset = 0x4, fixed_abs, tag = 'smem constant byte address 0x4 - core index']
  #allocation1 [shape = 'u32[144,128]{1,0:T(1,128)}', space=vmem, size = 0x12000, scoped, tag = 'internal scratch']
  #allocation2 [shape = 's32[1]{0}', space=sflag, size = 0x4, scoped, tag = 'scoped memory for tpu_custom_call.1']
  #allocation3 [shape = 'u8[512]{0}', space=smem, size = 0x200, scoped, tag = 'prefetched SMEM operand 0']
  %s0 = inlined_call_operand.vmem [shape: s32[2], index: 0, kind: input, shape index: {}]
  %s1 = inlined_call_operand.vmem [shape: f32[2,64,16], index: 1, kind: input, shape index: {}]
  %s2 = inlined_call_operand.vmem [shape: f32[2,8,8,16], index: 2, kind: input, shape index: {}]
  %s3 = inlined_call_operand.hbm [shape: f32[2,1,4,16,16], index: 3, kind: input, shape index: {}]
  %s4 = inlined_call_operand.vmem [shape: f32[2,1,32,8,8], index: 4, kind: output, shape index: {}]
  %s5 = sld [smem:[#allocation0]]
  $region49: #{tpu_custom_call.1} parent=0
    _
  %s7 = ssub.s32 1, %s5
  %s8 = scalar_select 0, %s7, %s5
  %s9 = sshll.u32 %s0, 4
  %s10 = int_to_ptr.vmem [resolvable:$true] %s9
  %12 = dma.vmem_to_smem %s10, 16, [#allocation3], [#allocation2]
  %13 = dma.done [#allocation2], 16
  %14 = sfence
  $region1: #{tpu_custom_call.1} parent=0
    #allocation4 [shape = 'u8[65536]{0}', space=vmem, size = 0x10000, scoped, tag = 'input window, operand 3']
    #allocation5 [shape = 's32[2]{0}', space=sflag, size = 0x8, scoped, tag = 'scoped memory for tpu_custom_call.1']
    %15 = vsyncpa [#allocation5], 0
    %s16 = scalar_lea.sflag [#allocation5], 1
    %17 = vsyncpa %s16, 0
    loop: start=0, step=1, limit=4
    $region2: #{tpu_custom_call.1} parent=1 // loop_pre_header
      _
    $region3: #{tpu_custom_call.1} parent=1 // loop_header
      %s19 = sphi 0, %s23
      %p20 = scmp.ge.s32.totalorder %s19, 4
      %s26 = sphi 0, %s38
      %s27 = sphi 0, %s34
      %s28 = sphi 0, %s26
      %s29 = sphi 0, %s27
      %s30 = sphi 0, %s28
      %s31 = sphi 0, %s29
      %s41 = sphi 0, %s43
      %s44 = sphi 0, %s41
      %s45 = sphi 0, %s44
      %s61 = sphi 0, %s45
      %s67 = sphi 0, %s69
      %s70 = sphi 0, %s67
      %s71 = sphi 0, %s70
      %s87 = sphi 0, %s71
      %s97 = sphi 0, %s99
      %s100 = sphi 0, %s97
      %s101 = sphi 0, %s100
      %s117 = sphi 0, %s101
      %s125 = sphi 0, %s127
      %s128 = sphi 0, %s125
      %s129 = sphi 0, %s128
      %s145 = sphi 0, %s129
    $region4: #{tpu_custom_call.1} parent=1 // loop_header_branch
      %22 = sbr.rel (%p20) target = $region8
    $region5: #{tpu_custom_call.1} parent=1 // loop_body
      %s24 = ssub.s32 %s19, 1
      %s25 = ssub.s32 %s19, 2
      %s32 = sadd.s32 1, %s27
      %p33 = scmp.ge.s32.totalorder %s32, 2
      %s34 = scalar_select %p33, 0, %s32
      %s35 = sadd.s32 1, %s26
      %s36 = scalar_select %p33, %s35, %s26
      %p37 = scmp.ge.s32.totalorder %s36, 1
      %s38 = scalar_select %p37, 0, %s36
      %s39 = ssub.s32 %s27, %s34
      %p40 = scmp.eq.s32.totalorder %s39, 0
      %s42 = sadd.s32 %s41, 1
      %s43 = scalar_select %p40, %s41, %s42
      %p46 = pneg %p40
      %p47 = scmp.eq.s32.totalorder %s19, 1
      %p48 = por %p46, %p47
      %p49 = scmp.ne.s32.totalorder %s41, %s44
      %p50 = scmp.eq.s32.totalorder %s19, 0
      %p51 = por %p49, %p50
      %p52 = scmp.ne.s32.totalorder %s41, %s44
      %p53 = scmp.eq.s32.totalorder %s24, 1
      %p54 = por %p52, %p53
      %p55 = scmp.ne.s32.totalorder %s44, %s45
      %p56 = scmp.eq.s32.totalorder %s24, 0
      %p57 = por %p55, %p56
      %p58 = scmp.ne.s32.totalorder %s44, %s45
      %p59 = scmp.eq.s32.totalorder %s25, 1
      %p60 = por %p58, %p59
      %p62 = scmp.ne.s32.totalorder %s45, %s61
      %p63 = scmp.eq.s32.totalorder %s25, 0
      %p64 = por %p62, %p63
      %s65 = ssub.s32 %s27, %s34
      %p66 = scmp.eq.s32.totalorder %s65, 0
      %s68 = sadd.s32 %s67, 1
      %s69 = scalar_select %p66, %s67, %s68
      %p72 = pneg %p66
      %p73 = scmp.eq.s32.totalorder %s19, 1
      %p74 = por %p72, %p73
      %p75 = scmp.ne.s32.totalorder %s67, %s70
      %p76 = scmp.eq.s32.totalorder %s19, 0
      %p77 = por %p75, %p76
      %p78 = scmp.ne.s32.totalorder %s67, %s70
      %p79 = scmp.eq.s32.totalorder %s24, 1
      %p80 = por %p78, %p79
      %p81 = scmp.ne.s32.totalorder %s70, %s71
      %p82 = scmp.eq.s32.totalorder %s24, 0
      %p83 = por %p81, %p82
      %p84 = scmp.ne.s32.totalorder %s70, %s71
      %p85 = scmp.eq.s32.totalorder %s25, 1
      %p86 = por %p84, %p85
      %p88 = scmp.ne.s32.totalorder %s71, %s87
      %p89 = scmp.eq.s32.totalorder %s25, 0
      %p90 = por %p88, %p89
      %s91 = sld [smem:[#allocation3 + %s27]]
      %s92 = sld [smem:[#allocation3 + %s34]]
      %s93 = ssub.s32 %s91, %s92
      %s94 = ssub.s32 %s26, %s38
      %s95 = sor.u32 %s93, %s94
      %p96 = scmp.eq.s32.totalorder %s95, 0
      %s98 = sadd.s32 %s97, 1
      %s99 = scalar_select %p96, %s97, %s98
      %p102 = pneg %p96
      %p103 = scmp.eq.s32.totalorder %s19, 1
      %p104 = por %p102, %p103
      %p105 = scmp.ne.s32.totalorder %s97, %s100
      %p106 = scmp.eq.s32.totalorder %s19, 0
      %p107 = por %p105, %p106
      %p108 = scmp.ne.s32.totalorder %s97, %s100
      %p109 = scmp.eq.s32.totalorder %s24, 1
      %p110 = por %p108, %p109
      %p111 = scmp.ne.s32.totalorder %s100, %s101
      %p112 = scmp.eq.s32.totalorder %s24, 0
      %p113 = por %p111, %p112
      %p114 = scmp.ne.s32.totalorder %s100, %s101
      %p115 = scmp.eq.s32.totalorder %s25, 1
      %p116 = por %p114, %p115
      %p118 = scmp.ne.s32.totalorder %s101, %s117
      %p119 = scmp.eq.s32.totalorder %s25, 0
      %p120 = por %p118, %p119
      %s121 = ssub.s32 %s27, %s34
      %s122 = ssub.s32 %s26, %s38
      %s123 = sor.u32 %s121, %s122
      %p124 = scmp.eq.s32.totalorder %s123, 0
      %s126 = sadd.s32 %s125, 1
      %s127 = scalar_select %p124, %s125, %s126
      %p130 = pneg %p124
      %p131 = scmp.eq.s32.totalorder %s19, 1
      %p132 = por %p130, %p131
      %p133 = scmp.ne.s32.totalorder %s125, %s128
      %p134 = scmp.eq.s32.totalorder %s19, 0
      %p135 = por %p133, %p134
      %p136 = scmp.ne.s32.totalorder %s125, %s128
      %p137 = scmp.eq.s32.totalorder %s24, 1
      %p138 = por %p136, %p137
      %p139 = scmp.ne.s32.totalorder %s128, %s129
      %p140 = scmp.eq.s32.totalorder %s24, 0
      %p141 = por %p139, %p140
      %p142 = scmp.ne.s32.totalorder %s128, %s129
      %p143 = scmp.eq.s32.totalorder %s25, 1
      %p144 = por %p142, %p143
      %p146 = scmp.ne.s32.totalorder %s129, %s145
      %p147 = scmp.eq.s32.totalorder %s25, 0
      %p148 = por %p146, %p147
      %p149 = scmp.le.s32.totalorder 1, %s19
      %p150 = scmp.lt.s32.totalorder %s19, 3
      %p151 = pnand %p149, %p150
      %p152 = pneg %p151
      // Predicated region
      $region9: #{tpu_custom_call.1} parent=5 // pred_check
        _
      $region10: #{tpu_custom_call.1} parent=5 // pred_check_branch
        %154 = sbr.rel (%p151) target = $region12
      $region11: #{tpu_custom_call.1} parent=5 // pred_region
        %s155 = ssub.s32 %s19, 1
      $region12: #{tpu_custom_call.1} parent=5 // pred_fallthru
        _
      %p156 = scmp.lt.s32.totalorder %s19, 2
      // Predicated region
      $region13: #{tpu_custom_call.1} parent=5 // pred_check
        %p157 = pneg %p156
      $region14: #{tpu_custom_call.1} parent=5 // pred_check_branch
        %159 = sbr.rel (%p157) target = $region16
      $region15: #{tpu_custom_call.1} parent=5 // pred_region
        // Predicated region
        $region17: #{tpu_custom_call.1} parent=15 // pred_check
          %p160 = pneg %p51
        $region18: #{tpu_custom_call.1} parent=15 // pred_check_branch
          %162 = sbr.rel (%p160) target = $region20
        $region19: #{tpu_custom_call.1} parent=15 // pred_region
          %p163 = scmp.lt.s32.totalorder %s27, 1
          %s164 = scalar_select %p163, %s27, 1
          %s165 = smul.addr %s164, 8
          %s166 = smul.addr %s165, 8
          %s167 = scalar_lea.vmem %s1, %s166
        $region20: #{tpu_custom_call.1} parent=15 // pred_fallthru
          _
        // Predicated region
        $region21: #{tpu_custom_call.1} parent=15 // pred_check
          %p168 = pneg %p77
        $region22: #{tpu_custom_call.1} parent=15 // pred_check_branch
          %170 = sbr.rel (%p168) target = $region24
        $region23: #{tpu_custom_call.1} parent=15 // pred_region
          %p171 = scmp.lt.s32.totalorder %s27, 1
          %s172 = scalar_select %p171, %s27, 1
          %s173 = smul.addr %s172, 8
          %s174 = smul.addr %s173, 8
          %s175 = scalar_lea.vmem %s2, %s174
        $region24: #{tpu_custom_call.1} parent=15 // pred_fallthru
          _
        // Predicated region
        $region25: #{tpu_custom_call.1} parent=15 // pred_check
          %p176 = pneg %p107
        $region26: #{tpu_custom_call.1} parent=15 // pred_check_branch
          %178 = sbr.rel (%p176) target = $region28
        $region27: #{tpu_custom_call.1} parent=15 // pred_region
          %s179 = sand.u32 %s97, 1
          %s180 = scalar_lea.sflag [#allocation5], %s179
          %s181 = sand.u32 %s97, 1
          %s182 = smul.addr %s181, 64
          %s183 = scalar_lea.vmem [#allocation4], %s182
          %s184 = sld [smem:[#allocation3 + %s27]]
          %s186 = ssub.s32 1024, 1024
          %187 = vsyncadd %s180, %s186
          %s188 = smul.addr %s26, 8
          %s189 = smul.addr %s184, 8
          %s190 = sadd.s32 %s188, %s189
          %s191 = smul.addr %s190, 128
          %s192 = scalar_lea.hbm %s3, %s191
          %s193 = sshll.u32 %s183, 4
          %s194 = int_to_ptr.vmem [resolvable:$true] %s193
          %199 = dma.hbm_to_vmem [thread:$0]  %s192, 1024, %s194, %s180, 128, 128, 8
        $region28: #{tpu_custom_call.1} parent=15 // pred_fallthru
          _
      $region16: #{tpu_custom_call.1} parent=5 // pred_fallthru
        _
      %p200 = scmp.le.s32.totalorder 1, %s19
      %p201 = scmp.lt.s32.totalorder %s19, 3
      %p202 = pnand %p200, %p201
      %p203 = pneg %p202
      // Predicated region
      $region29: #{tpu_custom_call.1} parent=5 // pred_check
        _
      $region30: #{tpu_custom_call.1} parent=5 // pred_check_branch
        %205 = sbr.rel (%p202) target = $region32
      $region31: #{tpu_custom_call.1} parent=5 // pred_region
        %s206 = ssub.s32 %s19, 1
        %s207 = sand.u32 %s100, 1
        %s208 = scalar_lea.sflag [#allocation5], %s207
        %s209 = sand.u32 %s100, 1
        %s210 = smul.addr %s209, 64
        %s211 = scalar_lea.vmem [#allocation4], %s210
        // Predicated region
        $region33: #{tpu_custom_call.1} parent=31 // pred_check
          %p212 = pneg %p113
        $region34: #{tpu_custom_call.1} parent=31 // pred_check_branch
          %214 = sbr.rel (%p212) target = $region36
        $region35: #{tpu_custom_call.1} parent=31 // pred_region
          %215 = dma.done %s208, 1024
        $region36: #{tpu_custom_call.1} parent=31 // pred_fallthru
          _
        %p216 = scmp.lt.s32.totalorder %s29, 1
        %s217 = scalar_select %p216, %s29, 1
        %s218 = smul.addr %s217, 8
        %s219 = smul.addr %s218, 8
        %s220 = scalar_lea.vmem %s1, %s219
        %p221 = pneg %p57
        %p222 = pneg %p54
        %p223 = scmp.lt.s32.totalorder %s29, 1
        %s224 = scalar_select %p223, %s29, 1
        %s225 = smul.addr %s224, 8
        %s226 = smul.addr %s225, 8
        %s227 = scalar_lea.vmem %s2, %s226
        %p228 = pneg %p83
        %p229 = pneg %p80
        %s230 = sand.u32 %s100, 1
        %s231 = scalar_lea.sflag [#allocation5], %s230
        %s232 = sand.u32 %s100, 1
        %s233 = smul.addr %s232, 64
        %s234 = scalar_lea.vmem [#allocation4], %s233
        %p235 = pneg %p113
        %p236 = pneg %p110
        %p237 = pneg %p141
        %p238 = pneg %p138
        %p239 = scmp.lt.s32.totalorder %s29, 1
        %s240 = scalar_select %p239, %s29, 1
        %p241 = scmp.lt.s32.totalorder %s28, 0
        %s242 = scalar_select %p241, %s28, 0
        %s243 = smul.addr %s242, 32
        %s244 = smul.addr %s240, 32
        %s245 = sadd.s32 %s243, %s244
        %s246 = smul.addr %s245, 8
        %s247 = scalar_lea.vmem %s4, %s246
        %p248 = scmp.lt.s32.totalorder %s29, 1
        %s249 = scalar_select %p248, %s29, 1
        %s250 = smul.addr %s249, 8
        %s251 = smul.addr %s250, 8
        %s252 = scalar_lea.vmem %s1, %s251
        %p253 = scmp.lt.s32.totalorder %s29, 1
        %s254 = scalar_select %p253, %s29, 1
        %s255 = smul.addr %s254, 8
        %s256 = smul.addr %s255, 8
        %s257 = scalar_lea.vmem %s2, %s256
        %s258 = sld [smem:[#allocation3 + %s29]]
        %p259 = scmp.lt.s32.totalorder %s29, 1
        %s260 = scalar_select %p259, %s29, 1
        %p261 = scmp.lt.s32.totalorder %s28, 0
        %s262 = scalar_select %p261, %s28, 0
        %s263 = smul.addr %s262, 32
        %s264 = smul.addr %s260, 32
        %s265 = sadd.s32 %s263, %s264
        %s266 = smul.addr %s265, 8
        %s267 = scalar_lea.vmem %s4, %s266
        %v268 = vld [vmem:[%s211] sm:$0xff]
        %v269 = vld [vmem:[%s211 + $0x8] sm:$0xff]
        %v270 = vld [vmem:[%s211 + $0x10] sm:$0xff]
        %v271 = vld [vmem:[%s211 + $0x18] sm:$0xff]
        %v272 = vld [vmem:[%s211 + $0x20] sm:$0xff]
        %v273 = vld [vmem:[%s211 + $0x28] sm:$0xff]
        %v274 = vld [vmem:[%s211 + $0x30] sm:$0xff]
        %v275 = vld [vmem:[%s211 + $0x38] sm:$0xff]
        %v276 = vld [vmem:[%s252] sm:$0xff]
        %v277 = vld [vmem:[%s252 + $0x8] sm:$0xff]
        %v278 = vld [vmem:[%s252 + $0x10] sm:$0xff]
        %v279 = vld [vmem:[%s252 + $0x18] sm:$0xff]
        %v280 = vld [vmem:[%s252 + $0x20] sm:$0xff]
        %v281 = vld [vmem:[%s252 + $0x28] sm:$0xff]
        %v282 = vld [vmem:[%s252 + $0x30] sm:$0xff]
        %v283 = vld [vmem:[%s252 + $0x38] sm:$0xff]
        %vm284 = vcmask 130048
        %v286 = vsel %vm284, %v276, 0
        %v289 = vsel %vm284, %v277, 0
        %v292 = vsel %vm284, %v278, 0
        %v295 = vsel %vm284, %v279, 0
        %v298 = vsel %vm284, %v280, 0
        %v301 = vsel %vm284, %v281, 0
        %v304 = vsel %vm284, %v282, 0
        %v307 = vsel %vm284, %v283, 0
        %309 = vmatprep.subr.mxu0 0.0
        %310 = vmatpush1.msra.mxu0 0.0
        %311 = vmatprep.subr.mxu0 0.0
        %312 = vmatpush1.msra.mxu0 0.0
        %313 = vmatprep.subr.mxu0 0.0
        %314 = vmatpush1.msra.mxu0 0.0
        %315 = vmatprep.subr.mxu0 0.0
        %316 = vmatpush1.msra.mxu0 0.0
        %317 = vmatprep.subr.mxu0 0.0
        %318 = vmatpush1.msra.mxu0 0.0
        %319 = vmatprep.subr.mxu0 0.0
        %320 = vmatpush1.msra.mxu0 0.0
        %321 = vmatprep.subr.mxu0 0.0
        %322 = vmatpush1.msra.mxu0 0.0
        %323 = vmatprep.subr.mxu0 0.0
        %324 = vmatpush1.msra.mxu0 0.0
        %325 = vmatprep.subr.mxu0 0.0
        %326 = vmatpush1.msra.mxu0 0.0
        %327 = vmatprep.subr.mxu0 0.0
        %328 = vmatpush1.msra.mxu0 0.0
        %329 = vmatprep.subr.mxu0 0.0
        %330 = vmatpush1.msra.mxu0 0.0
        %331 = vmatprep.subr.mxu0 0.0
        %332 = vmatpush1.msra.mxu0 0.0
        %333 = vmatprep.subr.mxu0 0.0
        %334 = vmatpush1.msra.mxu0 0.0
        %335 = vmatprep.subr.mxu0 0.0
        %336 = vmatpush1.msra.mxu0 0.0
        %337 = vmatprep.subr.mxu0 0.0
        %338 = vmatpush1.msra.mxu0 %v269
        %339 = vmatprep.subr.mxu0 0.0
        %340 = vmatpush1.msra.mxu0 %v268
        %341 = vmatprep.subr.mxu0 0.0
        %342 = vmatpush2.msra.mxu0 0.0
        %343 = vmatprep.subr.mxu0 0.0
        %344 = vmatpush2.msra.mxu0 0.0
        %345 = vmatprep.subr.mxu0 0.0
        %346 = vmatpush2.msra.mxu0 0.0
        %347 = vmatprep.subr.mxu0 0.0
        %348 = vmatpush2.msra.mxu0 0.0
        %349 = vmatprep.subr.mxu0 0.0
        %350 = vmatpush2.msra.mxu0 0.0
        %351 = vmatprep.subr.mxu0 0.0
        %352 = vmatpush2.msra.mxu0 0.0
        %353 = vmatprep.subr.mxu0 0.0
        %354 = vmatpush2.msra.mxu0 0.0
        %355 = vmatprep.subr.mxu0 0.0
        %356 = vmatpush2.msra.mxu0 0.0
        %357 = vmatprep.subr.mxu0 0.0
        %358 = vmatpush2.msra.mxu0 0.0
        %359 = vmatprep.subr.mxu0 0.0
        %360 = vmatpush2.msra.mxu0 0.0
        %361 = vmatprep.subr.mxu0 0.0
        %362 = vmatpush2.msra.mxu0 0.0
        %363 = vmatprep.subr.mxu0 0.0
        %364 = vmatpush2.msra.mxu0 0.0
        %365 = vmatprep.subr.mxu0 0.0
        %366 = vmatpush2.msra.mxu0 0.0
        %367 = vmatprep.subr.mxu0 0.0
        %368 = vmatpush2.msra.mxu0 0.0
        %369 = vmatprep.subr.mxu0 0.0
        %370 = vmatpush2.msra.mxu0 0.0
        %371 = vmatprep.subr.mxu0 0.0
        %372 = vmatpush2.msra.mxu0 0.0
        %373 = vmatprep.mubr.f32.mxu0 0.0
        %374 = vmatmul.mubr.f32.gmra.mxu0 %v286
        %v375 = vpop.f32.mrf.mxu0
        %v376 = vadd.f32 0.0, %v375
        %v377 = vpop.f32.mrf.mxu0
        %378 = vmatprep.mubr.f32.mxu0 0.0
        %379 = vmatmul.mubr.f32.gmra.mxu0 %v289
        %v380 = vpop.f32.mrf.mxu0
        %v381 = vadd.f32 0.0, %v380
        %v382 = vpop.f32.mrf.mxu0
        %383 = vmatprep.mubr.f32.mxu0 0.0
        %384 = vmatmul.mubr.f32.gmra.mxu0 %v292
        %v385 = vpop.f32.mrf.mxu0
        %v386 = vadd.f32 0.0, %v385
        %v387 = vpop.f32.mrf.mxu0
        %388 = vmatprep.mubr.f32.mxu0 0.0
        %389 = vmatmul.mubr.f32.gmra.mxu0 %v295
        %v390 = vpop.f32.mrf.mxu0
        %v391 = vadd.f32 0.0, %v390
        %v392 = vpop.f32.mrf.mxu0
        %393 = vmatprep.mubr.f32.mxu0 0.0
        %394 = vmatmul.mubr.f32.gmra.mxu0 %v298
        %v395 = vpop.f32.mrf.mxu0
        %v396 = vadd.f32 0.0, %v395
        %v397 = vpop.f32.mrf.mxu0
        %398 = vmatprep.mubr.f32.mxu0 0.0
        %399 = vmatmul.mubr.f32.gmra.mxu0 %v301
        %v400 = vpop.f32.mrf.mxu0
        %v401 = vadd.f32 0.0, %v400
        %v402 = vpop.f32.mrf.mxu0
        %403 = vmatprep.mubr.f32.mxu0 0.0
        %404 = vmatmul.mubr.f32.gmra.mxu0 %v304
        %v405 = vpop.f32.mrf.mxu0
        %v406 = vadd.f32 0.0, %v405
        %v407 = vpop.f32.mrf.mxu0
        %408 = vmatprep.mubr.f32.mxu0 0.0
        %409 = vmatmul.mubr.f32.gmra.mxu0 %v307
        %v410 = vpop.f32.mrf.mxu0
        %v411 = vadd.f32 0.0, %v410
        %v412 = vpop.f32.mrf.mxu0
        %413 = vdwg.mxu0
        %414 = vmatprep.subr.mxu0 0.0
        %415 = vmatpush1.msra.mxu0 0.0
        %416 = vmatprep.subr.mxu0 0.0
        %417 = vmatpush1.msra.mxu0 0.0
        %418 = vmatprep.subr.mxu0 0.0
        %419 = vmatpush1.msra.mxu0 0.0
        %420 = vmatprep.subr.mxu0 0.0
        %421 = vmatpush1.msra.mxu0 0.0
        %422 = vmatprep.subr.mxu0 0.0
        %423 = vmatpush1.msra.mxu0 0.0
        %424 = vmatprep.subr.mxu0 0.0
        %425 = vmatpush1.msra.mxu0 0.0
        %426 = vmatprep.subr.mxu0 0.0
        %427 = vmatpush1.msra.mxu0 0.0
        %428 = vmatprep.subr.mxu0 0.0
        %429 = vmatpush1.msra.mxu0 0.0
        %430 = vmatprep.subr.mxu0 0.0
        %431 = vmatpush1.msra.mxu0 0.0
        %432 = vmatprep.subr.mxu0 0.0
        %433 = vmatpush1.msra.mxu0 0.0
        %434 = vmatprep.subr.mxu0 0.0
        %435 = vmatpush1.msra.mxu0 0.0
        %436 = vmatprep.subr.mxu0 0.0
        %437 = vmatpush1.msra.mxu0 0.0
        %438 = vmatprep.subr.mxu0 0.0
        %439 = vmatpush1.msra.mxu0 0.0
        %440 = vmatprep.subr.mxu0 0.0
        %441 = vmatpush1.msra.mxu0 0.0
        %442 = vmatprep.subr.mxu0 0.0
        %443 = vmatpush1.msra.mxu0 %v271
        %444 = vmatprep.subr.mxu0 0.0
        %445 = vmatpush1.msra.mxu0 %v270
        %446 = vmatprep.subr.mxu0 0.0
        %447 = vmatpush2.msra.mxu0 0.0
        %448 = vmatprep.subr.mxu0 0.0
        %449 = vmatpush2.msra.mxu0 0.0
        %450 = vmatprep.subr.mxu0 0.0
        %451 = vmatpush2.msra.mxu0 0.0
        %452 = vmatprep.subr.mxu0 0.0
        %453 = vmatpush2.msra.mxu0 0.0
        %454 = vmatprep.subr.mxu0 0.0
        %455 = vmatpush2.msra.mxu0 0.0
        %456 = vmatprep.subr.mxu0 0.0
        %457 = vmatpush2.msra.mxu0 0.0
        %458 = vmatprep.subr.mxu0 0.0
        %459 = vmatpush2.msra.mxu0 0.0
        %460 = vmatprep.subr.mxu0 0.0
        %461 = vmatpush2.msra.mxu0 0.0
        %462 = vmatprep.subr.mxu0 0.0
        %463 = vmatpush2.msra.mxu0 0.0
        %464 = vmatprep.subr.mxu0 0.0
        %465 = vmatpush2.msra.mxu0 0.0
        %466 = vmatprep.subr.mxu0 0.0
        %467 = vmatpush2.msra.mxu0 0.0
        %468 = vmatprep.subr.mxu0 0.0
        %469 = vmatpush2.msra.mxu0 0.0
        %470 = vmatprep.subr.mxu0 0.0
        %471 = vmatpush2.msra.mxu0 0.0
        %472 = vmatprep.subr.mxu0 0.0
        %473 = vmatpush2.msra.mxu0 0.0
        %474 = vmatprep.subr.mxu0 0.0
        %475 = vmatpush2.msra.mxu0 0.0
        %476 = vmatprep.subr.mxu0 0.0
        %477 = vmatpush2.msra.mxu0 0.0
        %478 = vmatprep.mubr.f32.mxu0 0.0
        %479 = vmatmul.mubr.f32.gmra.mxu0 %v286
        %v480 = vpop.f32.mrf.mxu0
        %v481 = vadd.f32 0.0, %v480
        %v482 = vpop.f32.mrf.mxu0
        %483 = vmatprep.mubr.f32.mxu0 0.0
        %484 = vmatmul.mubr.f32.gmra.mxu0 %v289
        %v485 = vpop.f32.mrf.mxu0
        %v486 = vadd.f32 0.0, %v485
        %v487 = vpop.f32.mrf.mxu0
        %488 = vmatprep.mubr.f32.mxu0 0.0
        %489 = vmatmul.mubr.f32.gmra.mxu0 %v292
        %v490 = vpop.f32.mrf.mxu0
        %v491 = vadd.f32 0.0, %v490
        %v492 = vpop.f32.mrf.mxu0
        %493 = vmatprep.mubr.f32.mxu0 0.0
        %494 = vmatmul.mubr.f32.gmra.mxu0 %v295
        %v495 = vpop.f32.mrf.mxu0
        %v496 = vadd.f32 0.0, %v495
        %v497 = vpop.f32.mrf.mxu0
        %498 = vmatprep.mubr.f32.mxu0 0.0
        %499 = vmatmul.mubr.f32.gmra.mxu0 %v298
        %v500 = vpop.f32.mrf.mxu0
        %v501 = vadd.f32 0.0, %v500
        %v502 = vpop.f32.mrf.mxu0
        %503 = vmatprep.mubr.f32.mxu0 0.0
        %504 = vmatmul.mubr.f32.gmra.mxu0 %v301
        %v505 = vpop.f32.mrf.mxu0
        %v506 = vadd.f32 0.0, %v505
        %v507 = vpop.f32.mrf.mxu0
        %508 = vmatprep.mubr.f32.mxu0 0.0
        %509 = vmatmul.mubr.f32.gmra.mxu0 %v304
        %v510 = vpop.f32.mrf.mxu0
        %v511 = vadd.f32 0.0, %v510
        %v512 = vpop.f32.mrf.mxu0
        %513 = vmatprep.mubr.f32.mxu0 0.0
        %514 = vmatmul.mubr.f32.gmra.mxu0 %v307
        %v515 = vpop.f32.mrf.mxu0
        %v516 = vadd.f32 0.0, %v515
        %v517 = vpop.f32.mrf.mxu0
        %518 = vdwg.mxu0
        %519 = vmatprep.subr.mxu0 0.0
        %520 = vmatpush1.msra.mxu0 0.0
        %521 = vmatprep.subr.mxu0 0.0
        %522 = vmatpush1.msra.mxu0 0.0
        %523 = vmatprep.subr.mxu0 0.0
        %524 = vmatpush1.msra.mxu0 0.0
        %525 = vmatprep.subr.mxu0 0.0
        %526 = vmatpush1.msra.mxu0 0.0
        %527 = vmatprep.subr.mxu0 0.0
        %528 = vmatpush1.msra.mxu0 0.0
        %529 = vmatprep.subr.mxu0 0.0
        %530 = vmatpush1.msra.mxu0 0.0
        %531 = vmatprep.subr.mxu0 0.0
        %532 = vmatpush1.msra.mxu0 0.0
        %533 = vmatprep.subr.mxu0 0.0
        %534 = vmatpush1.msra.mxu0 0.0
        %535 = vmatprep.subr.mxu0 0.0
        %536 = vmatpush1.msra.mxu0 0.0
        %537 = vmatprep.subr.mxu0 0.0
        %538 = vmatpush1.msra.mxu0 0.0
        %539 = vmatprep.subr.mxu0 0.0
        %540 = vmatpush1.msra.mxu0 0.0
        %541 = vmatprep.subr.mxu0 0.0
        %542 = vmatpush1.msra.mxu0 0.0
        %543 = vmatprep.subr.mxu0 0.0
        %544 = vmatpush1.msra.mxu0 0.0
        %545 = vmatprep.subr.mxu0 0.0
        %546 = vmatpush1.msra.mxu0 0.0
        %547 = vmatprep.subr.mxu0 0.0
        %548 = vmatpush1.msra.mxu0 %v273
        %549 = vmatprep.subr.mxu0 0.0
        %550 = vmatpush1.msra.mxu0 %v272
        %551 = vmatprep.subr.mxu0 0.0
        %552 = vmatpush2.msra.mxu0 0.0
        %553 = vmatprep.subr.mxu0 0.0
        %554 = vmatpush2.msra.mxu0 0.0
        %555 = vmatprep.subr.mxu0 0.0
        %556 = vmatpush2.msra.mxu0 0.0
        %557 = vmatprep.subr.mxu0 0.0
        %558 = vmatpush2.msra.mxu0 0.0
        %559 = vmatprep.subr.mxu0 0.0
        %560 = vmatpush2.msra.mxu0 0.0
        %561 = vmatprep.subr.mxu0 0.0
        %562 = vmatpush2.msra.mxu0 0.0
        %563 = vmatprep.subr.mxu0 0.0
        %564 = vmatpush2.msra.mxu0 0.0
        %565 = vmatprep.subr.mxu0 0.0
        %566 = vmatpush2.msra.mxu0 0.0
        %567 = vmatprep.subr.mxu0 0.0
        %568 = vmatpush2.msra.mxu0 0.0
        %569 = vmatprep.subr.mxu0 0.0
        %570 = vmatpush2.msra.mxu0 0.0
        %571 = vmatprep.subr.mxu0 0.0
        %572 = vmatpush2.msra.mxu0 0.0
        %573 = vmatprep.subr.mxu0 0.0
        %574 = vmatpush2.msra.mxu0 0.0
        %575 = vmatprep.subr.mxu0 0.0
        %576 = vmatpush2.msra.mxu0 0.0
        %577 = vmatprep.subr.mxu0 0.0
        %578 = vmatpush2.msra.mxu0 0.0
        %579 = vmatprep.subr.mxu0 0.0
        %580 = vmatpush2.msra.mxu0 0.0
        %581 = vmatprep.subr.mxu0 0.0
        %582 = vmatpush2.msra.mxu0 0.0
        %583 = vmatprep.mubr.f32.mxu0 0.0
        %584 = vmatmul.mubr.f32.gmra.mxu0 %v286
        %v585 = vpop.f32.mrf.mxu0
        %v586 = vadd.f32 0.0, %v585
        %v587 = vpop.f32.mrf.mxu0
        %588 = vmatprep.mubr.f32.mxu0 0.0
        %589 = vmatmul.mubr.f32.gmra.mxu0 %v289
        %v590 = vpop.f32.mrf.mxu0
        %v591 = vadd.f32 0.0, %v590
        %v592 = vpop.f32.mrf.mxu0
        %593 = vmatprep.mubr.f32.mxu0 0.0
        %594 = vmatmul.mubr.f32.gmra.mxu0 %v292
        %v595 = vpop.f32.mrf.mxu0
        %v596 = vadd.f32 0.0, %v595
        %v597 = vpop.f32.mrf.mxu0
        %598 = vmatprep.mubr.f32.mxu0 0.0
        %599 = vmatmul.mubr.f32.gmra.mxu0 %v295
        %v600 = vpop.f32.mrf.mxu0
        %v601 = vadd.f32 0.0, %v600
        %v602 = vpop.f32.mrf.mxu0
        %603 = vmatprep.mubr.f32.mxu0 0.0
        %604 = vmatmul.mubr.f32.gmra.mxu0 %v298
        %v605 = vpop.f32.mrf.mxu0
        %v606 = vadd.f32 0.0, %v605
        %v607 = vpop.f32.mrf.mxu0
        %608 = vmatprep.mubr.f32.mxu0 0.0
        %609 = vmatmul.mubr.f32.gmra.mxu0 %v301
        %v610 = vpop.f32.mrf.mxu0
        %v611 = vadd.f32 0.0, %v610
        %v612 = vpop.f32.mrf.mxu0
        %613 = vmatprep.mubr.f32.mxu0 0.0
        %614 = vmatmul.mubr.f32.gmra.mxu0 %v304
        %v615 = vpop.f32.mrf.mxu0
        %v616 = vadd.f32 0.0, %v615
        %v617 = vpop.f32.mrf.mxu0
        %618 = vmatprep.mubr.f32.mxu0 0.0
        %619 = vmatmul.mubr.f32.gmra.mxu0 %v307
        %v620 = vpop.f32.mrf.mxu0
        %v621 = vadd.f32 0.0, %v620
        %v622 = vpop.f32.mrf.mxu0
        %623 = vdwg.mxu0
        %624 = vmatprep.subr.mxu0 0.0
        %625 = vmatpush1.msra.mxu0 0.0
        %626 = vmatprep.subr.mxu0 0.0
        %627 = vmatpush1.msra.mxu0 0.0
        %628 = vmatprep.subr.mxu0 0.0
        %629 = vmatpush1.msra.mxu0 0.0
        %630 = vmatprep.subr.mxu0 0.0
        %631 = vmatpush1.msra.mxu0 0.0
        %632 = vmatprep.subr.mxu0 0.0
        %633 = vmatpush1.msra.mxu0 0.0
        %634 = vmatprep.subr.mxu0 0.0
        %635 = vmatpush1.msra.mxu0 0.0
        %636 = vmatprep.subr.mxu0 0.0
        %637 = vmatpush1.msra.mxu0 0.0
        %638 = vmatprep.subr.mxu0 0.0
        %639 = vmatpush1.msra.mxu0 0.0
        %640 = vmatprep.subr.mxu0 0.0
        %641 = vmatpush1.msra.mxu0 0.0
        %642 = vmatprep.subr.mxu0 0.0
        %643 = vmatpush1.msra.mxu0 0.0
        %644 = vmatprep.subr.mxu0 0.0
        %645 = vmatpush1.msra.mxu0 0.0
        %646 = vmatprep.subr.mxu0 0.0
        %647 = vmatpush1.msra.mxu0 0.0
        %648 = vmatprep.subr.mxu0 0.0
        %649 = vmatpush1.msra.mxu0 0.0
        %650 = vmatprep.subr.mxu0 0.0
        %651 = vmatpush1.msra.mxu0 0.0
        %652 = vmatprep.subr.mxu0 0.0
        %653 = vmatpush1.msra.mxu0 %v275
        %654 = vmatprep.subr.mxu0 0.0
        %655 = vmatpush1.msra.mxu0 %v274
        %656 = vmatprep.subr.mxu0 0.0
        %657 = vmatpush2.msra.mxu0 0.0
        %658 = vmatprep.subr.mxu0 0.0
        %659 = vmatpush2.msra.mxu0 0.0
        %660 = vmatprep.subr.mxu0 0.0
        %661 = vmatpush2.msra.mxu0 0.0
        %662 = vmatprep.subr.mxu0 0.0
        %663 = vmatpush2.msra.mxu0 0.0
        %664 = vmatprep.subr.mxu0 0.0
        %665 = vmatpush2.msra.mxu0 0.0
        %666 = vmatprep.subr.mxu0 0.0
        %667 = vmatpush2.msra.mxu0 0.0
        %668 = vmatprep.subr.mxu0 0.0
        %669 = vmatpush2.msra.mxu0 0.0
        %670 = vmatprep.subr.mxu0 0.0
        %671 = vmatpush2.msra.mxu0 0.0
        %672 = vmatprep.subr.mxu0 0.0
        %673 = vmatpush2.msra.mxu0 0.0
        %674 = vmatprep.subr.mxu0 0.0
        %675 = vmatpush2.msra.mxu0 0.0
        %676 = vmatprep.subr.mxu0 0.0
        %677 = vmatpush2.msra.mxu0 0.0
        %678 = vmatprep.subr.mxu0 0.0
        %679 = vmatpush2.msra.mxu0 0.0
        %680 = vmatprep.subr.mxu0 0.0
        %681 = vmatpush2.msra.mxu0 0.0
        %682 = vmatprep.subr.mxu0 0.0
        %683 = vmatpush2.msra.mxu0 0.0
        %684 = vmatprep.subr.mxu0 0.0
        %685 = vmatpush2.msra.mxu0 0.0
        %686 = vmatprep.subr.mxu0 0.0
        %687 = vmatpush2.msra.mxu0 0.0
        %688 = vmatprep.mubr.f32.mxu0 0.0
        %689 = vmatmul.mubr.f32.gmra.mxu0 %v286
        %v690 = vpop.f32.mrf.mxu0
        %v691 = vadd.f32 0.0, %v690
        %v692 = vpop.f32.mrf.mxu0
        %693 = vmatprep.mubr.f32.mxu0 0.0
        %694 = vmatmul.mubr.f32.gmra.mxu0 %v289
        %v695 = vpop.f32.mrf.mxu0
        %v696 = vadd.f32 0.0, %v695
        %v697 = vpop.f32.mrf.mxu0
        %698 = vmatprep.mubr.f32.mxu0 0.0
        %699 = vmatmul.mubr.f32.gmra.mxu0 %v292
        %v700 = vpop.f32.mrf.mxu0
        %v701 = vadd.f32 0.0, %v700
        %v702 = vpop.f32.mrf.mxu0
        %703 = vmatprep.mubr.f32.mxu0 0.0
        %704 = vmatmul.mubr.f32.gmra.mxu0 %v295
        %v705 = vpop.f32.mrf.mxu0
        %v706 = vadd.f32 0.0, %v705
        %v707 = vpop.f32.mrf.mxu0
        %708 = vmatprep.mubr.f32.mxu0 0.0
        %709 = vmatmul.mubr.f32.gmra.mxu0 %v298
        %v710 = vpop.f32.mrf.mxu0
        %v711 = vadd.f32 0.0, %v710
        %v712 = vpop.f32.mrf.mxu0
        %713 = vmatprep.mubr.f32.mxu0 0.0
        %714 = vmatmul.mubr.f32.gmra.mxu0 %v301
        %v715 = vpop.f32.mrf.mxu0
        %v716 = vadd.f32 0.0, %v715
        %v717 = vpop.f32.mrf.mxu0
        %718 = vmatprep.mubr.f32.mxu0 0.0
        %719 = vmatmul.mubr.f32.gmra.mxu0 %v304
        %v720 = vpop.f32.mrf.mxu0
        %v721 = vadd.f32 0.0, %v720
        %v722 = vpop.f32.mrf.mxu0
        %723 = vmatprep.mubr.f32.mxu0 0.0
        %724 = vmatmul.mubr.f32.gmra.mxu0 %v307
        %v725 = vpop.f32.mrf.mxu0
        %v726 = vadd.f32 0.0, %v725
        %v727 = vpop.f32.mrf.mxu0
        %728 = vdwg.mxu0
        %v729 = vld [vmem:[%s257] sm:$0xff]
        %v731 = vsel %vm284, %v376, 0
        %v734 = vsel %vm284, %v729, 0
        %736 = vmatprep.subr.mxu0 0.0
        %737 = vmatpush1.xpose.msra.mxu0 0.0
        %738 = vmatprep.subr.mxu0 0.0
        %739 = vmatpush1.xpose.msra.mxu0 0.0
        %740 = vmatprep.subr.mxu0 0.0
        %741 = vmatpush1.xpose.msra.mxu0 0.0
        %742 = vmatprep.subr.mxu0 0.0
        %743 = vmatpush1.xpose.msra.mxu0 0.0
        %744 = vmatprep.subr.mxu0 0.0
        %745 = vmatpush1.xpose.msra.mxu0 0.0
        %746 = vmatprep.subr.mxu0 0.0
        %747 = vmatpush1.xpose.msra.mxu0 0.0
        %748 = vmatprep.subr.mxu0 0.0
        %749 = vmatpush1.xpose.msra.mxu0 0.0
        %750 = vmatprep.subr.mxu0 0.0
        %751 = vmatpush1.xpose.msra.mxu0 0.0
        %752 = vmatprep.subr.mxu0 0.0
        %753 = vmatpush1.xpose.msra.mxu0 0.0
        %754 = vmatprep.subr.mxu0 0.0
        %755 = vmatpush1.xpose.msra.mxu0 0.0
        %756 = vmatprep.subr.mxu0 0.0
        %757 = vmatpush1.xpose.msra.mxu0 0.0
        %758 = vmatprep.subr.mxu0 0.0
        %759 = vmatpush1.xpose.msra.mxu0 0.0
        %760 = vmatprep.subr.mxu0 0.0
        %761 = vmatpush1.xpose.msra.mxu0 0.0
        %762 = vmatprep.subr.mxu0 0.0
        %763 = vmatpush1.xpose.msra.mxu0 0.0
        %764 = vmatprep.subr.mxu0 0.0
        %765 = vmatpush1.xpose.msra.mxu0 0.0
        %766 = vmatprep.subr.mxu0 0.0
        %767 = vmatpush1.xpose.msra.mxu0 %v734
        %768 = vmatprep.subr.mxu0 0.0
        %769 = vmatpush2.xpose.msra.mxu0 0.0
        %770 = vmatprep.subr.mxu0 0.0
        %771 = vmatpush2.xpose.msra.mxu0 0.0
        %772 = vmatprep.subr.mxu0 0.0
        %773 = vmatpush2.xpose.msra.mxu0 0.0
        %774 = vmatprep.subr.mxu0 0.0
        %775 = vmatpush2.xpose.msra.mxu0 0.0
        %776 = vmatprep.subr.mxu0 0.0
        %777 = vmatpush2.xpose.msra.mxu0 0.0
        %778 = vmatprep.subr.mxu0 0.0
        %779 = vmatpush2.xpose.msra.mxu0 0.0
        %780 = vmatprep.subr.mxu0 0.0
        %781 = vmatpush2.xpose.msra.mxu0 0.0
        %782 = vmatprep.subr.mxu0 0.0
        %783 = vmatpush2.xpose.msra.mxu0 0.0
        %784 = vmatprep.subr.mxu0 0.0
        %785 = vmatpush2.xpose.msra.mxu0 0.0
        %786 = vmatprep.subr.mxu0 0.0
        %787 = vmatpush2.xpose.msra.mxu0 0.0
        %788 = vmatprep.subr.mxu0 0.0
        %789 = vmatpush2.xpose.msra.mxu0 0.0
        %790 = vmatprep.subr.mxu0 0.0
        %791 = vmatpush2.xpose.msra.mxu0 0.0
        %792 = vmatprep.subr.mxu0 0.0
        %793 = vmatpush2.xpose.msra.mxu0 0.0
        %794 = vmatprep.subr.mxu0 0.0
        %795 = vmatpush2.xpose.msra.mxu0 0.0
        %796 = vmatprep.subr.mxu0 0.0
        %797 = vmatpush2.xpose.msra.mxu0 0.0
        %798 = vmatprep.subr.mxu0 0.0
        %799 = vmatpush2.xpose.msra.mxu0 0.0
        %800 = vmatprep.mubr.f32.mxu0 0.0
        %801 = vmatmul.mubr.f32.gmra.mxu0 %v731
        %v802 = vpop.f32.mrf.mxu0
        %v803 = vadd.f32 0.0, %v802
        %v804 = vpop.f32.mrf.mxu0
        %805 = vdwg.mxu0
        %v807 = vsel %vm284, %v481, 0
        %809 = vmatprep.subr.mxu0 0.0
        %810 = vmatpush1.xpose.msra.mxu0 0.0
        %811 = vmatprep.subr.mxu0 0.0
        %812 = vmatpush1.xpose.msra.mxu0 0.0
        %813 = vmatprep.subr.mxu0 0.0
        %814 = vmatpush1.xpose.msra.mxu0 0.0
        %815 = vmatprep.subr.mxu0 0.0
        %816 = vmatpush1.xpose.msra.mxu0 0.0
        %817 = vmatprep.subr.mxu0 0.0
        %818 = vmatpush1.xpose.msra.mxu0 0.0
        %819 = vmatprep.subr.mxu0 0.0
        %820 = vmatpush1.xpose.msra.mxu0 0.0
        %821 = vmatprep.subr.mxu0 0.0
        %822 = vmatpush1.xpose.msra.mxu0 0.0
        %823 = vmatprep.subr.mxu0 0.0
        %824 = vmatpush1.xpose.msra.mxu0 0.0
        %825 = vmatprep.subr.mxu0 0.0
        %826 = vmatpush1.xpose.msra.mxu0 0.0
        %827 = vmatprep.subr.mxu0 0.0
        %828 = vmatpush1.xpose.msra.mxu0 0.0
        %829 = vmatprep.subr.mxu0 0.0
        %830 = vmatpush1.xpose.msra.mxu0 0.0
        %831 = vmatprep.subr.mxu0 0.0
        %832 = vmatpush1.xpose.msra.mxu0 0.0
        %833 = vmatprep.subr.mxu0 0.0
        %834 = vmatpush1.xpose.msra.mxu0 0.0
        %835 = vmatprep.subr.mxu0 0.0
        %836 = vmatpush1.xpose.msra.mxu0 0.0
        %837 = vmatprep.subr.mxu0 0.0
        %838 = vmatpush1.xpose.msra.mxu0 0.0
        %839 = vmatprep.subr.mxu0 0.0
        %840 = vmatpush1.xpose.msra.mxu0 %v734
        %841 = vmatprep.subr.mxu0 0.0
        %842 = vmatpush2.xpose.msra.mxu0 0.0
        %843 = vmatprep.subr.mxu0 0.0
        %844 = vmatpush2.xpose.msra.mxu0 0.0
        %845 = vmatprep.subr.mxu0 0.0
        %846 = vmatpush2.xpose.msra.mxu0 0.0
        %847 = vmatprep.subr.mxu0 0.0
        %848 = vmatpush2.xpose.msra.mxu0 0.0
        %849 = vmatprep.subr.mxu0 0.0
        %850 = vmatpush2.xpose.msra.mxu0 0.0
        %851 = vmatprep.subr.mxu0 0.0
        %852 = vmatpush2.xpose.msra.mxu0 0.0
        %853 = vmatprep.subr.mxu0 0.0
        %854 = vmatpush2.xpose.msra.mxu0 0.0
        %855 = vmatprep.subr.mxu0 0.0
        %856 = vmatpush2.xpose.msra.mxu0 0.0
        %857 = vmatprep.subr.mxu0 0.0
        %858 = vmatpush2.xpose.msra.mxu0 0.0
        %859 = vmatprep.subr.mxu0 0.0
        %860 = vmatpush2.xpose.msra.mxu0 0.0
        %861 = vmatprep.subr.mxu0 0.0
        %862 = vmatpush2.xpose.msra.mxu0 0.0
        %863 = vmatprep.subr.mxu0 0.0
        %864 = vmatpush2.xpose.msra.mxu0 0.0
        %865 = vmatprep.subr.mxu0 0.0
        %866 = vmatpush2.xpose.msra.mxu0 0.0
        %867 = vmatprep.subr.mxu0 0.0
        %868 = vmatpush2.xpose.msra.mxu0 0.0
        %869 = vmatprep.subr.mxu0 0.0
        %870 = vmatpush2.xpose.msra.mxu0 0.0
        %871 = vmatprep.subr.mxu0 0.0
        %872 = vmatpush2.xpose.msra.mxu0 0.0
        %873 = vmatprep.mubr.f32.mxu0 0.0
        %874 = vmatmul.mubr.f32.gmra.mxu0 %v807
        %v875 = vpop.f32.mrf.mxu0
        %v876 = vadd.f32 0.0, %v875
        %v877 = vpop.f32.mrf.mxu0
        %878 = vdwg.mxu0
        %v880 = vsel %vm284, %v586, 0
        %882 = vmatprep.subr.mxu0 0.0
        %883 = vmatpush1.xpose.msra.mxu0 0.0
        %884 = vmatprep.subr.mxu0 0.0
        %885 = vmatpush1.xpose.msra.mxu0 0.0
        %886 = vmatprep.subr.mxu0 0.0
        %887 = vmatpush1.xpose.msra.mxu0 0.0
        %888 = vmatprep.subr.mxu0 0.0
        %889 = vmatpush1.xpose.msra.mxu0 0.0
        %890 = vmatprep.subr.mxu0 0.0
        %891 = vmatpush1.xpose.msra.mxu0 0.0
        %892 = vmatprep.subr.mxu0 0.0
        %893 = vmatpush1.xpose.msra.mxu0 0.0
        %894 = vmatprep.subr.mxu0 0.0
        %895 = vmatpush1.xpose.msra.mxu0 0.0
        %896 = vmatprep.subr.mxu0 0.0
        %897 = vmatpush1.xpose.msra.mxu0 0.0
        %898 = vmatprep.subr.mxu0 0.0
        %899 = vmatpush1.xpose.msra.mxu0 0.0
        %900 = vmatprep.subr.mxu0 0.0
        %901 = vmatpush1.xpose.msra.mxu0 0.0
        %902 = vmatprep.subr.mxu0 0.0
        %903 = vmatpush1.xpose.msra.mxu0 0.0
        %904 = vmatprep.subr.mxu0 0.0
        %905 = vmatpush1.xpose.msra.mxu0 0.0
        %906 = vmatprep.subr.mxu0 0.0
        %907 = vmatpush1.xpose.msra.mxu0 0.0
        %908 = vmatprep.subr.mxu0 0.0
        %909 = vmatpush1.xpose.msra.mxu0 0.0
        %910 = vmatprep.subr.mxu0 0.0
        %911 = vmatpush1.xpose.msra.mxu0 0.0
        %912 = vmatprep.subr.mxu0 0.0
        %913 = vmatpush1.xpose.msra.mxu0 %v734
        %914 = vmatprep.subr.mxu0 0.0
        %915 = vmatpush2.xpose.msra.mxu0 0.0
        %916 = vmatprep.subr.mxu0 0.0
        %917 = vmatpush2.xpose.msra.mxu0 0.0
        %918 = vmatprep.subr.mxu0 0.0
        %919 = vmatpush2.xpose.msra.mxu0 0.0
        %920 = vmatprep.subr.mxu0 0.0
        %921 = vmatpush2.xpose.msra.mxu0 0.0
        %922 = vmatprep.subr.mxu0 0.0
        %923 = vmatpush2.xpose.msra.mxu0 0.0
        %924 = vmatprep.subr.mxu0 0.0
        %925 = vmatpush2.xpose.msra.mxu0 0.0
        %926 = vmatprep.subr.mxu0 0.0
        %927 = vmatpush2.xpose.msra.mxu0 0.0
        %928 = vmatprep.subr.mxu0 0.0
        %929 = vmatpush2.xpose.msra.mxu0 0.0
        %930 = vmatprep.subr.mxu0 0.0
        %931 = vmatpush2.xpose.msra.mxu0 0.0
        %932 = vmatprep.subr.mxu0 0.0
        %933 = vmatpush2.xpose.msra.mxu0 0.0
        %934 = vmatprep.subr.mxu0 0.0
        %935 = vmatpush2.xpose.msra.mxu0 0.0
        %936 = vmatprep.subr.mxu0 0.0
        %937 = vmatpush2.xpose.msra.mxu0 0.0
        %938 = vmatprep.subr.mxu0 0.0
        %939 = vmatpush2.xpose.msra.mxu0 0.0
        %940 = vmatprep.subr.mxu0 0.0
        %941 = vmatpush2.xpose.msra.mxu0 0.0
        %942 = vmatprep.subr.mxu0 0.0
        %943 = vmatpush2.xpose.msra.mxu0 0.0
        %944 = vmatprep.subr.mxu0 0.0
        %945 = vmatpush2.xpose.msra.mxu0 0.0
        %946 = vmatprep.mubr.f32.mxu0 0.0
        %947 = vmatmul.mubr.f32.gmra.mxu0 %v880
        %v948 = vpop.f32.mrf.mxu0
        %v949 = vadd.f32 0.0, %v948
        %v950 = vpop.f32.mrf.mxu0
        %951 = vdwg.mxu0
        %v953 = vsel %vm284, %v691, 0
        %955 = vmatprep.subr.mxu0 0.0
        %956 = vmatpush1.xpose.msra.mxu0 0.0
        %957 = vmatprep.subr.mxu0 0.0
        %958 = vmatpush1.xpose.msra.mxu0 0.0
        %959 = vmatprep.subr.mxu0 0.0
        %960 = vmatpush1.xpose.msra.mxu0 0.0
        %961 = vmatprep.subr.mxu0 0.0
        %962 = vmatpush1.xpose.msra.mxu0 0.0
        %963 = vmatprep.subr.mxu0 0.0
        %964 = vmatpush1.xpose.msra.mxu0 0.0
        %965 = vmatprep.subr.mxu0 0.0
        %966 = vmatpush1.xpose.msra.mxu0 0.0
        %967 = vmatprep.subr.mxu0 0.0
        %968 = vmatpush1.xpose.msra.mxu0 0.0
        %969 = vmatprep.subr.mxu0 0.0
        %970 = vmatpush1.xpose.msra.mxu0 0.0
        %971 = vmatprep.subr.mxu0 0.0
        %972 = vmatpush1.xpose.msra.mxu0 0.0
        %973 = vmatprep.subr.mxu0 0.0
        %974 = vmatpush1.xpose.msra.mxu0 0.0
        %975 = vmatprep.subr.mxu0 0.0
        %976 = vmatpush1.xpose.msra.mxu0 0.0
        %977 = vmatprep.subr.mxu0 0.0
        %978 = vmatpush1.xpose.msra.mxu0 0.0
        %979 = vmatprep.subr.mxu0 0.0
        %980 = vmatpush1.xpose.msra.mxu0 0.0
        %981 = vmatprep.subr.mxu0 0.0
        %982 = vmatpush1.xpose.msra.mxu0 0.0
        %983 = vmatprep.subr.mxu0 0.0
        %984 = vmatpush1.xpose.msra.mxu0 0.0
        %985 = vmatprep.subr.mxu0 0.0
        %986 = vmatpush1.xpose.msra.mxu0 %v734
        %987 = vmatprep.subr.mxu0 0.0
        %988 = vmatpush2.xpose.msra.mxu0 0.0
        %989 = vmatprep.subr.mxu0 0.0
        %990 = vmatpush2.xpose.msra.mxu0 0.0
        %991 = vmatprep.subr.mxu0 0.0
        %992 = vmatpush2.xpose.msra.mxu0 0.0
        %993 = vmatprep.subr.mxu0 0.0
        %994 = vmatpush2.xpose.msra.mxu0 0.0
        %995 = vmatprep.subr.mxu0 0.0
        %996 = vmatpush2.xpose.msra.mxu0 0.0
        %997 = vmatprep.subr.mxu0 0.0
        %998 = vmatpush2.xpose.msra.mxu0 0.0
        %999 = vmatprep.subr.mxu0 0.0
        %1000 = vmatpush2.xpose.msra.mxu0 0.0
        %1001 = vmatprep.subr.mxu0 0.0
        %1002 = vmatpush2.xpose.msra.mxu0 0.0
        %1003 = vmatprep.subr.mxu0 0.0
        %1004 = vmatpush2.xpose.msra.mxu0 0.0
        %1005 = vmatprep.subr.mxu0 0.0
        %1006 = vmatpush2.xpose.msra.mxu0 0.0
        %1007 = vmatprep.subr.mxu0 0.0
        %1008 = vmatpush2.xpose.msra.mxu0 0.0
        %1009 = vmatprep.subr.mxu0 0.0
        %1010 = vmatpush2.xpose.msra.mxu0 0.0
        %1011 = vmatprep.subr.mxu0 0.0
        %1012 = vmatpush2.xpose.msra.mxu0 0.0
        %1013 = vmatprep.subr.mxu0 0.0
        %1014 = vmatpush2.xpose.msra.mxu0 0.0
        %1015 = vmatprep.subr.mxu0 0.0
        %1016 = vmatpush2.xpose.msra.mxu0 0.0
        %1017 = vmatprep.subr.mxu0 0.0
        %1018 = vmatpush2.xpose.msra.mxu0 0.0
        %1019 = vmatprep.mubr.f32.mxu0 0.0
        %1020 = vmatmul.mubr.f32.gmra.mxu0 %v953
        %v1021 = vpop.f32.mrf.mxu0
        %v1022 = vadd.f32 0.0, %v1021
        %v1023 = vpop.f32.mrf.mxu0
        %1024 = vdwg.mxu0
        %vm1025 = vcmask 64512
        %1026 = vst.msk [vmem:[%s267] sm:$0xff] %vm1025, %v803
        %1027 = vst.msk [vmem:[%s267 + $0x8] sm:$0xff] %vm1025, %v876
        %1028 = vst.msk [vmem:[%s267 + $0x10] sm:$0xff] %vm1025, %v949
        %1029 = vst.msk [vmem:[%s267 + $0x18] sm:$0xff] %vm1025, %v1022
        %s1030 = scalar_lea.vmem %s257, 8
        %v1031 = vld [vmem:[%s1030] sm:$0xff]
        %v1033 = vsel %vm284, %v381, 0
        %v1036 = vsel %vm284, %v1031, 0
        %1038 = vmatprep.subr.mxu0 0.0
        %1039 = vmatpush1.xpose.msra.mxu0 0.0
        %1040 = vmatprep.subr.mxu0 0.0
        %1041 = vmatpush1.xpose.msra.mxu0 0.0
        %1042 = vmatprep.subr.mxu0 0.0
        %1043 = vmatpush1.xpose.msra.mxu0 0.0
        %1044 = vmatprep.subr.mxu0 0.0
        %1045 = vmatpush1.xpose.msra.mxu0 0.0
        %1046 = vmatprep.subr.mxu0 0.0
        %1047 = vmatpush1.xpose.msra.mxu0 0.0
        %1048 = vmatprep.subr.mxu0 0.0
        %1049 = vmatpush1.xpose.msra.mxu0 0.0
        %1050 = vmatprep.subr.mxu0 0.0
        %1051 = vmatpush1.xpose.msra.mxu0 0.0
        %1052 = vmatprep.subr.mxu0 0.0
        %1053 = vmatpush1.xpose.msra.mxu0 0.0
        %1054 = vmatprep.subr.mxu0 0.0
        %1055 = vmatpush1.xpose.msra.mxu0 0.0
        %1056 = vmatprep.subr.mxu0 0.0
        %1057 = vmatpush1.xpose.msra.mxu0 0.0
        %1058 = vmatprep.subr.mxu0 0.0
        %1059 = vmatpush1.xpose.msra.mxu0 0.0
        %1060 = vmatprep.subr.mxu0 0.0
        %1061 = vmatpush1.xpose.msra.mxu0 0.0
        %1062 = vmatprep.subr.mxu0 0.0
        %1063 = vmatpush1.xpose.msra.mxu0 0.0
        %1064 = vmatprep.subr.mxu0 0.0
        %1065 = vmatpush1.xpose.msra.mxu0 0.0
        %1066 = vmatprep.subr.mxu0 0.0
        %1067 = vmatpush1.xpose.msra.mxu0 0.0
        %1068 = vmatprep.subr.mxu0 0.0
        %1069 = vmatpush1.xpose.msra.mxu0 %v1036
        %1070 = vmatprep.subr.mxu0 0.0
        %1071 = vmatpush2.xpose.msra.mxu0 0.0
        %1072 = vmatprep.subr.mxu0 0.0
        %1073 = vmatpush2.xpose.msra.mxu0 0.0
        %1074 = vmatprep.subr.mxu0 0.0
        %1075 = vmatpush2.xpose.msra.mxu0 0.0
        %1076 = vmatprep.subr.mxu0 0.0
        %1077 = vmatpush2.xpose.msra.mxu0 0.0
        %1078 = vmatprep.subr.mxu0 0.0
        %1079 = vmatpush2.xpose.msra.mxu0 0.0
        %1080 = vmatprep.subr.mxu0 0.0
        %1081 = vmatpush2.xpose.msra.mxu0 0.0
        %1082 = vmatprep.subr.mxu0 0.0
        %1083 = vmatpush2.xpose.msra.mxu0 0.0
        %1084 = vmatprep.subr.mxu0 0.0
        %1085 = vmatpush2.xpose.msra.mxu0 0.0
        %1086 = vmatprep.subr.mxu0 0.0
        %1087 = vmatpush2.xpose.msra.mxu0 0.0
        %1088 = vmatprep.subr.mxu0 0.0
        %1089 = vmatpush2.xpose.msra.mxu0 0.0
        %1090 = vmatprep.subr.mxu0 0.0
        %1091 = vmatpush2.xpose.msra.mxu0 0.0
        %1092 = vmatprep.subr.mxu0 0.0
        %1093 = vmatpush2.xpose.msra.mxu0 0.0
        %1094 = vmatprep.subr.mxu0 0.0
        %1095 = vmatpush2.xpose.msra.mxu0 0.0
        %1096 = vmatprep.subr.mxu0 0.0
        %1097 = vmatpush2.xpose.msra.mxu0 0.0
        %1098 = vmatprep.subr.mxu0 0.0
        %1099 = vmatpush2.xpose.msra.mxu0 0.0
        %1100 = vmatprep.subr.mxu0 0.0
        %1101 = vmatpush2.xpose.msra.mxu0 0.0
        %1102 = vmatprep.mubr.f32.mxu0 0.0
        %1103 = vmatmul.mubr.f32.gmra.mxu0 %v1033
        %v1104 = vpop.f32.mrf.mxu0
        %v1105 = vadd.f32 0.0, %v1104
        %v1106 = vpop.f32.mrf.mxu0
        %1107 = vdwg.mxu0
        %v1109 = vsel %vm284, %v486, 0
        %1111 = vmatprep.subr.mxu0 0.0
        %1112 = vmatpush1.xpose.msra.mxu0 0.0
        %1113 = vmatprep.subr.mxu0 0.0
        %1114 = vmatpush1.xpose.msra.mxu0 0.0
        %1115 = vmatprep.subr.mxu0 0.0
        %1116 = vmatpush1.xpose.msra.mxu0 0.0
        %1117 = vmatprep.subr.mxu0 0.0
        %1118 = vmatpush1.xpose.msra.mxu0 0.0
        %1119 = vmatprep.subr.mxu0 0.0
        %1120 = vmatpush1.xpose.msra.mxu0 0.0
        %1121 = vmatprep.subr.mxu0 0.0
        %1122 = vmatpush1.xpose.msra.mxu0 0.0
        %1123 = vmatprep.subr.mxu0 0.0
        %1124 = vmatpush1.xpose.msra.mxu0 0.0
        %1125 = vmatprep.subr.mxu0 0.0
        %1126 = vmatpush1.xpose.msra.mxu0 0.0
        %1127 = vmatprep.subr.mxu0 0.0
        %1128 = vmatpush1.xpose.msra.mxu0 0.0
        %1129 = vmatprep.subr.mxu0 0.0
        %1130 = vmatpush1.xpose.msra.mxu0 0.0
        %1131 = vmatprep.subr.mxu0 0.0
        %1132 = vmatpush1.xpose.msra.mxu0 0.0
        %1133 = vmatprep.subr.mxu0 0.0
        %1134 = vmatpush1.xpose.msra.mxu0 0.0
        %1135 = vmatprep.subr.mxu0 0.0
        %1136 = vmatpush1.xpose.msra.mxu0 0.0
        %1137 = vmatprep.subr.mxu0 0.0
        %1138 = vmatpush1.xpose.msra.mxu0 0.0
        %1139 = vmatprep.subr.mxu0 0.0
        %1140 = vmatpush1.xpose.msra.mxu0 0.0
        %1141 = vmatprep.subr.mxu0 0.0
        %1142 = vmatpush1.xpose.msra.mxu0 %v1036
        %1143 = vmatprep.subr.mxu0 0.0
        %1144 = vmatpush2.xpose.msra.mxu0 0.0
        %1145 = vmatprep.subr.mxu0 0.0
        %1146 = vmatpush2.xpose.msra.mxu0 0.0
        %1147 = vmatprep.subr.mxu0 0.0
        %1148 = vmatpush2.xpose.msra.mxu0 0.0
        %1149 = vmatprep.subr.mxu0 0.0
        %1150 = vmatpush2.xpose.msra.mxu0 0.0
        %1151 = vmatprep.subr.mxu0 0.0
        %1152 = vmatpush2.xpose.msra.mxu0 0.0
        %1153 = vmatprep.subr.mxu0 0.0
        %1154 = vmatpush2.xpose.msra.mxu0 0.0
        %1155 = vmatprep.subr.mxu0 0.0
        %1156 = vmatpush2.xpose.msra.mxu0 0.0
        %1157 = vmatprep.subr.mxu0 0.0
        %1158 = vmatpush2.xpose.msra.mxu0 0.0
        %1159 = vmatprep.subr.mxu0 0.0
        %1160 = vmatpush2.xpose.msra.mxu0 0.0
        %1161 = vmatprep.subr.mxu0 0.0
        %1162 = vmatpush2.xpose.msra.mxu0 0.0
        %1163 = vmatprep.subr.mxu0 0.0
        %1164 = vmatpush2.xpose.msra.mxu0 0.0
        %1165 = vmatprep.subr.mxu0 0.0
        %1166 = vmatpush2.xpose.msra.mxu0 0.0
        %1167 = vmatprep.subr.mxu0 0.0
        %1168 = vmatpush2.xpose.msra.mxu0 0.0
        %1169 = vmatprep.subr.mxu0 0.0
        %1170 = vmatpush2.xpose.msra.mxu0 0.0
        %1171 = vmatprep.subr.mxu0 0.0
        %1172 = vmatpush2.xpose.msra.mxu0 0.0
        %1173 = vmatprep.subr.mxu0 0.0
        %1174 = vmatpush2.xpose.msra.mxu0 0.0
        %1175 = vmatprep.mubr.f32.mxu0 0.0
        %1176 = vmatmul.mubr.f32.gmra.mxu0 %v1109
        %v1177 = vpop.f32.mrf.mxu0
        %v1178 = vadd.f32 0.0, %v1177
        %v1179 = vpop.f32.mrf.mxu0
        %1180 = vdwg.mxu0
        %v1182 = vsel %vm284, %v591, 0
        %1184 = vmatprep.subr.mxu0 0.0
        %1185 = vmatpush1.xpose.msra.mxu0 0.0
        %1186 = vmatprep.subr.mxu0 0.0
        %1187 = vmatpush1.xpose.msra.mxu0 0.0
        %1188 = vmatprep.subr.mxu0 0.0
        %1189 = vmatpush1.xpose.msra.mxu0 0.0
        %1190 = vmatprep.subr.mxu0 0.0
        %1191 = vmatpush1.xpose.msra.mxu0 0.0
        %1192 = vmatprep.subr.mxu0 0.0
        %1193 = vmatpush1.xpose.msra.mxu0 0.0
        %1194 = vmatprep.subr.mxu0 0.0
        %1195 = vmatpush1.xpose.msra.mxu0 0.0
        %1196 = vmatprep.subr.mxu0 0.0
        %1197 = vmatpush1.xpose.msra.mxu0 0.0
        %1198 = vmatprep.subr.mxu0 0.0
        %1199 = vmatpush1.xpose.msra.mxu0 0.0
        %1200 = vmatprep.subr.mxu0 0.0
        %1201 = vmatpush1.xpose.msra.mxu0 0.0
        %1202 = vmatprep.subr.mxu0 0.0
        %1203 = vmatpush1.xpose.msra.mxu0 0.0
        %1204 = vmatprep.subr.mxu0 0.0
        %1205 = vmatpush1.xpose.msra.mxu0 0.0
        %1206 = vmatprep.subr.mxu0 0.0
        %1207 = vmatpush1.xpose.msra.mxu0 0.0
        %1208 = vmatprep.subr.mxu0 0.0
        %1209 = vmatpush1.xpose.msra.mxu0 0.0
        %1210 = vmatprep.subr.mxu0 0.0
        %1211 = vmatpush1.xpose.msra.mxu0 0.0
        %1212 = vmatprep.subr.mxu0 0.0
        %1213 = vmatpush1.xpose.msra.mxu0 0.0
        %1214 = vmatprep.subr.mxu0 0.0
        %1215 = vmatpush1.xpose.msra.mxu0 %v1036
        %1216 = vmatprep.subr.mxu0 0.0
        %1217 = vmatpush2.xpose.msra.mxu0 0.0
        %1218 = vmatprep.subr.mxu0 0.0
        %1219 = vmatpush2.xpose.msra.mxu0 0.0
        %1220 = vmatprep.subr.mxu0 0.0
        %1221 = vmatpush2.xpose.msra.mxu0 0.0
        %1222 = vmatprep.subr.mxu0 0.0
        %1223 = vmatpush2.xpose.msra.mxu0 0.0
        %1224 = vmatprep.subr.mxu0 0.0
        %1225 = vmatpush2.xpose.msra.mxu0 0.0
        %1226 = vmatprep.subr.mxu0 0.0
        %1227 = vmatpush2.xpose.msra.mxu0 0.0
        %1228 = vmatprep.subr.mxu0 0.0
        %1229 = vmatpush2.xpose.msra.mxu0 0.0
        %1230 = vmatprep.subr.mxu0 0.0
        %1231 = vmatpush2.xpose.msra.mxu0 0.0
        %1232 = vmatprep.subr.mxu0 0.0
        %1233 = vmatpush2.xpose.msra.mxu0 0.0
        %1234 = vmatprep.subr.mxu0 0.0
        %1235 = vmatpush2.xpose.msra.mxu0 0.0
        %1236 = vmatprep.subr.mxu0 0.0
        %1237 = vmatpush2.xpose.msra.mxu0 0.0
        %1238 = vmatprep.subr.mxu0 0.0
        %1239 = vmatpush2.xpose.msra.mxu0 0.0
        %1240 = vmatprep.subr.mxu0 0.0
        %1241 = vmatpush2.xpose.msra.mxu0 0.0
        %1242 = vmatprep.subr.mxu0 0.0
        %1243 = vmatpush2.xpose.msra.mxu0 0.0
        %1244 = vmatprep.subr.mxu0 0.0
        %1245 = vmatpush2.xpose.msra.mxu0 0.0
        %1246 = vmatprep.subr.mxu0 0.0
        %1247 = vmatpush2.xpose.msra.mxu0 0.0
        %1248 = vmatprep.mubr.f32.mxu0 0.0
        %1249 = vmatmul.mubr.f32.gmra.mxu0 %v1182
        %v1250 = vpop.f32.mrf.mxu0
        %v1251 = vadd.f32 0.0, %v1250
        %v1252 = vpop.f32.mrf.mxu0
        %1253 = vdwg.mxu0
        %v1255 = vsel %vm284, %v696, 0
        %1257 = vmatprep.subr.mxu0 0.0
        %1258 = vmatpush1.xpose.msra.mxu0 0.0
        %1259 = vmatprep.subr.mxu0 0.0
        %1260 = vmatpush1.xpose.msra.mxu0 0.0
        %1261 = vmatprep.subr.mxu0 0.0
        %1262 = vmatpush1.xpose.msra.mxu0 0.0
        %1263 = vmatprep.subr.mxu0 0.0
        %1264 = vmatpush1.xpose.msra.mxu0 0.0
        %1265 = vmatprep.subr.mxu0 0.0
        %1266 = vmatpush1.xpose.msra.mxu0 0.0
        %1267 = vmatprep.subr.mxu0 0.0
        %1268 = vmatpush1.xpose.msra.mxu0 0.0
        %1269 = vmatprep.subr.mxu0 0.0
        %1270 = vmatpush1.xpose.msra.mxu0 0.0
        %1271 = vmatprep.subr.mxu0 0.0
        %1272 = vmatpush1.xpose.msra.mxu0 0.0
        %1273 = vmatprep.subr.mxu0 0.0
        %1274 = vmatpush1.xpose.msra.mxu0 0.0
        %1275 = vmatprep.subr.mxu0 0.0
        %1276 = vmatpush1.xpose.msra.mxu0 0.0
        %1277 = vmatprep.subr.mxu0 0.0
        %1278 = vmatpush1.xpose.msra.mxu0 0.0
        %1279 = vmatprep.subr.mxu0 0.0
        %1280 = vmatpush1.xpose.msra.mxu0 0.0
        %1281 = vmatprep.subr.mxu0 0.0
        %1282 = vmatpush1.xpose.msra.mxu0 0.0
        %1283 = vmatprep.subr.mxu0 0.0
        %1284 = vmatpush1.xpose.msra.mxu0 0.0
        %1285 = vmatprep.subr.mxu0 0.0
        %1286 = vmatpush1.xpose.msra.mxu0 0.0
        %1287 = vmatprep.subr.mxu0 0.0
        %1288 = vmatpush1.xpose.msra.mxu0 %v1036
        %1289 = vmatprep.subr.mxu0 0.0
        %1290 = vmatpush2.xpose.msra.mxu0 0.0
        %1291 = vmatprep.subr.mxu0 0.0
        %1292 = vmatpush2.xpose.msra.mxu0 0.0
        %1293 = vmatprep.subr.mxu0 0.0
        %1294 = vmatpush2.xpose.msra.mxu0 0.0
        %1295 = vmatprep.subr.mxu0 0.0
        %1296 = vmatpush2.xpose.msra.mxu0 0.0
        %1297 = vmatprep.subr.mxu0 0.0
        %1298 = vmatpush2.xpose.msra.mxu0 0.0
        %1299 = vmatprep.subr.mxu0 0.0
        %1300 = vmatpush2.xpose.msra.mxu0 0.0
        %1301 = vmatprep.subr.mxu0 0.0
        %1302 = vmatpush2.xpose.msra.mxu0 0.0
        %1303 = vmatprep.subr.mxu0 0.0
        %1304 = vmatpush2.xpose.msra.mxu0 0.0
        %1305 = vmatprep.subr.mxu0 0.0
        %1306 = vmatpush2.xpose.msra.mxu0 0.0
        %1307 = vmatprep.subr.mxu0 0.0
        %1308 = vmatpush2.xpose.msra.mxu0 0.0
        %1309 = vmatprep.subr.mxu0 0.0
        %1310 = vmatpush2.xpose.msra.mxu0 0.0
        %1311 = vmatprep.subr.mxu0 0.0
        %1312 = vmatpush2.xpose.msra.mxu0 0.0
        %1313 = vmatprep.subr.mxu0 0.0
        %1314 = vmatpush2.xpose.msra.mxu0 0.0
        %1315 = vmatprep.subr.mxu0 0.0
        %1316 = vmatpush2.xpose.msra.mxu0 0.0
        %1317 = vmatprep.subr.mxu0 0.0
        %1318 = vmatpush2.xpose.msra.mxu0 0.0
        %1319 = vmatprep.subr.mxu0 0.0
        %1320 = vmatpush2.xpose.msra.mxu0 0.0
        %1321 = vmatprep.mubr.f32.mxu0 0.0
        %1322 = vmatmul.mubr.f32.gmra.mxu0 %v1255
        %v1323 = vpop.f32.mrf.mxu0
        %v1324 = vadd.f32 0.0, %v1323
        %v1325 = vpop.f32.mrf.mxu0
        %1326 = vdwg.mxu0
        %s1327 = scalar_lea.vmem %s267, 32
        %1328 = vst.msk [vmem:[%s1327] sm:$0xff] %vm1025, %v1105
        %1329 = vst.msk [vmem:[%s1327 + $0x8] sm:$0xff] %vm1025, %v1178
        %1330 = vst.msk [vmem:[%s1327 + $0x10] sm:$0xff] %vm1025, %v1251
        %1331 = vst.msk [vmem:[%s1327 + $0x18] sm:$0xff] %vm1025, %v1324
        %s1332 = scalar_lea.vmem %s257, 16
        %v1333 = vld [vmem:[%s1332] sm:$0xff]
        %v1335 = vsel %vm284, %v386, 0
        %v1338 = vsel %vm284, %v1333, 0
        %1340 = vmatprep.subr.mxu0 0.0
        %1341 = vmatpush1.xpose.msra.mxu0 0.0
        %1342 = vmatprep.subr.mxu0 0.0
        %1343 = vmatpush1.xpose.msra.mxu0 0.0
        %1344 = vmatprep.subr.mxu0 0.0
        %1345 = vmatpush1.xpose.msra.mxu0 0.0
        %1346 = vmatprep.subr.mxu0 0.0
        %1347 = vmatpush1.xpose.msra.mxu0 0.0
        %1348 = vmatprep.subr.mxu0 0.0
        %1349 = vmatpush1.xpose.msra.mxu0 0.0
        %1350 = vmatprep.subr.mxu0 0.0
        %1351 = vmatpush1.xpose.msra.mxu0 0.0
        %1352 = vmatprep.subr.mxu0 0.0
        %1353 = vmatpush1.xpose.msra.mxu0 0.0
        %1354 = vmatprep.subr.mxu0 0.0
        %1355 = vmatpush1.xpose.msra.mxu0 0.0
        %1356 = vmatprep.subr.mxu0 0.0
        %1357 = vmatpush1.xpose.msra.mxu0 0.0
        %1358 = vmatprep.subr.mxu0 0.0
        %1359 = vmatpush1.xpose.msra.mxu0 0.0
        %1360 = vmatprep.subr.mxu0 0.0
        %1361 = vmatpush1.xpose.msra.mxu0 0.0
        %1362 = vmatprep.subr.mxu0 0.0
        %1363 = vmatpush1.xpose.msra.mxu0 0.0
        %1364 = vmatprep.subr.mxu0 0.0
        %1365 = vmatpush1.xpose.msra.mxu0 0.0
        %1366 = vmatprep.subr.mxu0 0.0
        %1367 = vmatpush1.xpose.msra.mxu0 0.0
        %1368 = vmatprep.subr.mxu0 0.0
        %1369 = vmatpush1.xpose.msra.mxu0 0.0
        %1370 = vmatprep.subr.mxu0 0.0
        %1371 = vmatpush1.xpose.msra.mxu0 %v1338
        %1372 = vmatprep.subr.mxu0 0.0
        %1373 = vmatpush2.xpose.msra.mxu0 0.0
        %1374 = vmatprep.subr.mxu0 0.0
        %1375 = vmatpush2.xpose.msra.mxu0 0.0
        %1376 = vmatprep.subr.mxu0 0.0
        %1377 = vmatpush2.xpose.msra.mxu0 0.0
        %1378 = vmatprep.subr.mxu0 0.0
        %1379 = vmatpush2.xpose.msra.mxu0 0.0
        %1380 = vmatprep.subr.mxu0 0.0
        %1381 = vmatpush2.xpose.msra.mxu0 0.0
        %1382 = vmatprep.subr.mxu0 0.0
        %1383 = vmatpush2.xpose.msra.mxu0 0.0
        %1384 = vmatprep.subr.mxu0 0.0
        %1385 = vmatpush2.xpose.msra.mxu0 0.0
        %1386 = vmatprep.subr.mxu0 0.0
        %1387 = vmatpush2.xpose.msra.mxu0 0.0
        %1388 = vmatprep.subr.mxu0 0.0
        %1389 = vmatpush2.xpose.msra.mxu0 0.0
        %1390 = vmatprep.subr.mxu0 0.0
        %1391 = vmatpush2.xpose.msra.mxu0 0.0
        %1392 = vmatprep.subr.mxu0 0.0
        %1393 = vmatpush2.xpose.msra.mxu0 0.0
        %1394 = vmatprep.subr.mxu0 0.0
        %1395 = vmatpush2.xpose.msra.mxu0 0.0
        %1396 = vmatprep.subr.mxu0 0.0
        %1397 = vmatpush2.xpose.msra.mxu0 0.0
        %1398 = vmatprep.subr.mxu0 0.0
        %1399 = vmatpush2.xpose.msra.mxu0 0.0
        %1400 = vmatprep.subr.mxu0 0.0
        %1401 = vmatpush2.xpose.msra.mxu0 0.0
        %1402 = vmatprep.subr.mxu0 0.0
        %1403 = vmatpush2.xpose.msra.mxu0 0.0
        %1404 = vmatprep.mubr.f32.mxu0 0.0
        %1405 = vmatmul.mubr.f32.gmra.mxu0 %v1335
        %v1406 = vpop.f32.mrf.mxu0
        %v1407 = vadd.f32 0.0, %v1406
        %v1408 = vpop.f32.mrf.mxu0
        %1409 = vdwg.mxu0
        %v1411 = vsel %vm284, %v491, 0
        %1413 = vmatprep.subr.mxu0 0.0
        %1414 = vmatpush1.xpose.msra.mxu0 0.0
        %1415 = vmatprep.subr.mxu0 0.0
        %1416 = vmatpush1.xpose.msra.mxu0 0.0
        %1417 = vmatprep.subr.mxu0 0.0
        %1418 = vmatpush1.xpose.msra.mxu0 0.0
        %1419 = vmatprep.subr.mxu0 0.0
        %1420 = vmatpush1.xpose.msra.mxu0 0.0
        %1421 = vmatprep.subr.mxu0 0.0
        %1422 = vmatpush1.xpose.msra.mxu0 0.0
        %1423 = vmatprep.subr.mxu0 0.0
        %1424 = vmatpush1.xpose.msra.mxu0 0.0
        %1425 = vmatprep.subr.mxu0 0.0
        %1426 = vmatpush1.xpose.msra.mxu0 0.0
        %1427 = vmatprep.subr.mxu0 0.0
        %1428 = vmatpush1.xpose.msra.mxu0 0.0
        %1429 = vmatprep.subr.mxu0 0.0
        %1430 = vmatpush1.xpose.msra.mxu0 0.0
        %1431 = vmatprep.subr.mxu0 0.0
        %1432 = vmatpush1.xpose.msra.mxu0 0.0
        %1433 = vmatprep.subr.mxu0 0.0
        %1434 = vmatpush1.xpose.msra.mxu0 0.0
        %1435 = vmatprep.subr.mxu0 0.0
        %1436 = vmatpush1.xpose.msra.mxu0 0.0
        %1437 = vmatprep.subr.mxu0 0.0
        %1438 = vmatpush1.xpose.msra.mxu0 0.0
        %1439 = vmatprep.subr.mxu0 0.0
        %1440 = vmatpush1.xpose.msra.mxu0 0.0
        %1441 = vmatprep.subr.mxu0 0.0
        %1442 = vmatpush1.xpose.msra.mxu0 0.0
        %1443 = vmatprep.subr.mxu0 0.0
        %1444 = vmatpush1.xpose.msra.mxu0 %v1338
        %1445 = vmatprep.subr.mxu0 0.0
        %1446 = vmatpush2.xpose.msra.mxu0 0.0
        %1447 = vmatprep.subr.mxu0 0.0
        %1448 = vmatpush2.xpose.msra.mxu0 0.0
        %1449 = vmatprep.subr.mxu0 0.0
        %1450 = vmatpush2.xpose.msra.mxu0 0.0
        %1451 = vmatprep.subr.mxu0 0.0
        %1452 = vmatpush2.xpose.msra.mxu0 0.0
        %1453 = vmatprep.subr.mxu0 0.0
        %1454 = vmatpush2.xpose.msra.mxu0 0.0
        %1455 = vmatprep.subr.mxu0 0.0
        %1456 = vmatpush2.xpose.msra.mxu0 0.0
        %1457 = vmatprep.subr.mxu0 0.0
        %1458 = vmatpush2.xpose.msra.mxu0 0.0
        %1459 = vmatprep.subr.mxu0 0.0
        %1460 = vmatpush2.xpose.msra.mxu0 0.0
        %1461 = vmatprep.subr.mxu0 0.0
        %1462 = vmatpush2.xpose.msra.mxu0 0.0
        %1463 = vmatprep.subr.mxu0 0.0
        %1464 = vmatpush2.xpose.msra.mxu0 0.0
        %1465 = vmatprep.subr.mxu0 0.0
        %1466 = vmatpush2.xpose.msra.mxu0 0.0
        %1467 = vmatprep.subr.mxu0 0.0
        %1468 = vmatpush2.xpose.msra.mxu0 0.0
        %1469 = vmatprep.subr.mxu0 0.0
        %1470 = vmatpush2.xpose.msra.mxu0 0.0
        %1471 = vmatprep.subr.mxu0 0.0
        %1472 = vmatpush2.xpose.msra.mxu0 0.0
        %1473 = vmatprep.subr.mxu0 0.0
        %1474 = vmatpush2.xpose.msra.mxu0 0.0
        %1475 = vmatprep.subr.mxu0 0.0
        %1476 = vmatpush2.xpose.msra.mxu0 0.0
        %1477 = vmatprep.mubr.f32.mxu0 0.0
        %1478 = vmatmul.mubr.f32.gmra.mxu0 %v1411
        %v1479 = vpop.f32.mrf.mxu0
        %v1480 = vadd.f32 0.0, %v1479
        %v1481 = vpop.f32.mrf.mxu0
        %1482 = vdwg.mxu0
        %v1484 = vsel %vm284, %v596, 0
        %1486 = vmatprep.subr.mxu0 0.0
        %1487 = vmatpush1.xpose.msra.mxu0 0.0
        %1488 = vmatprep.subr.mxu0 0.0
        %1489 = vmatpush1.xpose.msra.mxu0 0.0
        %1490 = vmatprep.subr.mxu0 0.0
        %1491 = vmatpush1.xpose.msra.mxu0 0.0
        %1492 = vmatprep.subr.mxu0 0.0
        %1493 = vmatpush1.xpose.msra.mxu0 0.0
        %1494 = vmatprep.subr.mxu0 0.0
        %1495 = vmatpush1.xpose.msra.mxu0 0.0
        %1496 = vmatprep.subr.mxu0 0.0
        %1497 = vmatpush1.xpose.msra.mxu0 0.0
        %1498 = vmatprep.subr.mxu0 0.0
        %1499 = vmatpush1.xpose.msra.mxu0 0.0
        %1500 = vmatprep.subr.mxu0 0.0
        %1501 = vmatpush1.xpose.msra.mxu0 0.0
        %1502 = vmatprep.subr.mxu0 0.0
        %1503 = vmatpush1.xpose.msra.mxu0 0.0
        %1504 = vmatprep.subr.mxu0 0.0
        %1505 = vmatpush1.xpose.msra.mxu0 0.0
        %1506 = vmatprep.subr.mxu0 0.0
        %1507 = vmatpush1.xpose.msra.mxu0 0.0
        %1508 = vmatprep.subr.mxu0 0.0
        %1509 = vmatpush1.xpose.msra.mxu0 0.0
        %1510 = vmatprep.subr.mxu0 0.0
        %1511 = vmatpush1.xpose.msra.mxu0 0.0
        %1512 = vmatprep.subr.mxu0 0.0
        %1513 = vmatpush1.xpose.msra.mxu0 0.0
        %1514 = vmatprep.subr.mxu0 0.0
        %1515 = vmatpush1.xpose.msra.mxu0 0.0
        %1516 = vmatprep.subr.mxu0 0.0
        %1517 = vmatpush1.xpose.msra.mxu0 %v1338
        %1518 = vmatprep.subr.mxu0 0.0
        %1519 = vmatpush2.xpose.msra.mxu0 0.0
        %1520 = vmatprep.subr.mxu0 0.0
        %1521 = vmatpush2.xpose.msra.mxu0 0.0
        %1522 = vmatprep.subr.mxu0 0.0
        %1523 = vmatpush2.xpose.msra.mxu0 0.0
        %1524 = vmatprep.subr.mxu0 0.0
        %1525 = vmatpush2.xpose.msra.mxu0 0.0
        %1526 = vmatprep.subr.mxu0 0.0
        %1527 = vmatpush2.xpose.msra.mxu0 0.0
        %1528 = vmatprep.subr.mxu0 0.0
        %1529 = vmatpush2.xpose.msra.mxu0 0.0
        %1530 = vmatprep.subr.mxu0 0.0
        %1531 = vmatpush2.xpose.msra.mxu0 0.0
        %1532 = vmatprep.subr.mxu0 0.0
        %1533 = vmatpush2.xpose.msra.mxu0 0.0
        %1534 = vmatprep.subr.mxu0 0.0
        %1535 = vmatpush2.xpose.msra.mxu0 0.0
        %1536 = vmatprep.subr.mxu0 0.0
        %1537 = vmatpush2.xpose.msra.mxu0 0.0
        %1538 = vmatprep.subr.mxu0 0.0
        %1539 = vmatpush2.xpose.msra.mxu0 0.0
        %1540 = vmatprep.subr.mxu0 0.0
        %1541 = vmatpush2.xpose.msra.mxu0 0.0
        %1542 = vmatprep.subr.mxu0 0.0
        %1543 = vmatpush2.xpose.msra.mxu0 0.0
        %1544 = vmatprep.subr.mxu0 0.0
        %1545 = vmatpush2.xpose.msra.mxu0 0.0
        %1546 = vmatprep.subr.mxu0 0.0
        %1547 = vmatpush2.xpose.msra.mxu0 0.0
        %1548 = vmatprep.subr.mxu0 0.0
        %1549 = vmatpush2.xpose.msra.mxu0 0.0
        %1550 = vmatprep.mubr.f32.mxu0 0.0
        %1551 = vmatmul.mubr.f32.gmra.mxu0 %v1484
        %v1552 = vpop.f32.mrf.mxu0
        %v1553 = vadd.f32 0.0, %v1552
        %v1554 = vpop.f32.mrf.mxu0
        %1555 = vdwg.mxu0
        %v1557 = vsel %vm284, %v701, 0
        %1559 = vmatprep.subr.mxu0 0.0
        %1560 = vmatpush1.xpose.msra.mxu0 0.0
        %1561 = vmatprep.subr.mxu0 0.0
        %1562 = vmatpush1.xpose.msra.mxu0 0.0
        %1563 = vmatprep.subr.mxu0 0.0
        %1564 = vmatpush1.xpose.msra.mxu0 0.0
        %1565 = vmatprep.subr.mxu0 0.0
        %1566 = vmatpush1.xpose.msra.mxu0 0.0
        %1567 = vmatprep.subr.mxu0 0.0
        %1568 = vmatpush1.xpose.msra.mxu0 0.0
        %1569 = vmatprep.subr.mxu0 0.0
        %1570 = vmatpush1.xpose.msra.mxu0 0.0
        %1571 = vmatprep.subr.mxu0 0.0
        %1572 = vmatpush1.xpose.msra.mxu0 0.0
        %1573 = vmatprep.subr.mxu0 0.0
        %1574 = vmatpush1.xpose.msra.mxu0 0.0
        %1575 = vmatprep.subr.mxu0 0.0
        %1576 = vmatpush1.xpose.msra.mxu0 0.0
        %1577 = vmatprep.subr.mxu0 0.0
        %1578 = vmatpush1.xpose.msra.mxu0 0.0
        %1579 = vmatprep.subr.mxu0 0.0
        %1580 = vmatpush1.xpose.msra.mxu0 0.0
        %1581 = vmatprep.subr.mxu0 0.0
        %1582 = vmatpush1.xpose.msra.mxu0 0.0
        %1583 = vmatprep.subr.mxu0 0.0
        %1584 = vmatpush1.xpose.msra.mxu0 0.0
        %1585 = vmatprep.subr.mxu0 0.0
        %1586 = vmatpush1.xpose.msra.mxu0 0.0
        %1587 = vmatprep.subr.mxu0 0.0
        %1588 = vmatpush1.xpose.msra.mxu0 0.0
        %1589 = vmatprep.subr.mxu0 0.0
        %1590 = vmatpush1.xpose.msra.mxu0 %v1338
        %1591 = vmatprep.subr.mxu0 0.0
        %1592 = vmatpush2.xpose.msra.mxu0 0.0
        %1593 = vmatprep.subr.mxu0 0.0
        %1594 = vmatpush2.xpose.msra.mxu0 0.0
        %1595 = vmatprep.subr.mxu0 0.0
        %1596 = vmatpush2.xpose.msra.mxu0 0.0
        %1597 = vmatprep.subr.mxu0 0.0
        %1598 = vmatpush2.xpose.msra.mxu0 0.0
        %1599 = vmatprep.subr.mxu0 0.0
        %1600 = vmatpush2.xpose.msra.mxu0 0.0
        %1601 = vmatprep.subr.mxu0 0.0
        %1602 = vmatpush2.xpose.msra.mxu0 0.0
        %1603 = vmatprep.subr.mxu0 0.0
        %1604 = vmatpush2.xpose.msra.mxu0 0.0
        %1605 = vmatprep.subr.mxu0 0.0
        %1606 = vmatpush2.xpose.msra.mxu0 0.0
        %1607 = vmatprep.subr.mxu0 0.0
        %1608 = vmatpush2.xpose.msra.mxu0 0.0
        %1609 = vmatprep.subr.mxu0 0.0
        %1610 = vmatpush2.xpose.msra.mxu0 0.0
        %1611 = vmatprep.subr.mxu0 0.0
        %1612 = vmatpush2.xpose.msra.mxu0 0.0
        %1613 = vmatprep.subr.mxu0 0.0
        %1614 = vmatpush2.xpose.msra.mxu0 0.0
        %1615 = vmatprep.subr.mxu0 0.0
        %1616 = vmatpush2.xpose.msra.mxu0 0.0
        %1617 = vmatprep.subr.mxu0 0.0
        %1618 = vmatpush2.xpose.msra.mxu0 0.0
        %1619 = vmatprep.subr.mxu0 0.0
        %1620 = vmatpush2.xpose.msra.mxu0 0.0
        %1621 = vmatprep.subr.mxu0 0.0
        %1622 = vmatpush2.xpose.msra.mxu0 0.0
        %1623 = vmatprep.mubr.f32.mxu0 0.0
        %1624 = vmatmul.mubr.f32.gmra.mxu0 %v1557
        %v1625 = vpop.f32.mrf.mxu0
        %v1626 = vadd.f32 0.0, %v1625
        %v1627 = vpop.f32.mrf.mxu0
        %1628 = vdwg.mxu0
        %s1629 = scalar_lea.vmem %s267, 64
        %1630 = vst.msk [vmem:[%s1629] sm:$0xff] %vm1025, %v1407
        %1631 = vst.msk [vmem:[%s1629 + $0x8] sm:$0xff] %vm1025, %v1480
        %1632 = vst.msk [vmem:[%s1629 + $0x10] sm:$0xff] %vm1025, %v1553
        %1633 = vst.msk [vmem:[%s1629 + $0x18] sm:$0xff] %vm1025, %v1626
        %s1634 = scalar_lea.vmem %s257, 24
        %v1635 = vld [vmem:[%s1634] sm:$0xff]
        %v1637 = vsel %vm284, %v391, 0
        %v1640 = vsel %vm284, %v1635, 0
        %1642 = vmatprep.subr.mxu0 0.0
        %1643 = vmatpush1.xpose.msra.mxu0 0.0
        %1644 = vmatprep.subr.mxu0 0.0
        %1645 = vmatpush1.xpose.msra.mxu0 0.0
        %1646 = vmatprep.subr.mxu0 0.0
        %1647 = vmatpush1.xpose.msra.mxu0 0.0
        %1648 = vmatprep.subr.mxu0 0.0
        %1649 = vmatpush1.xpose.msra.mxu0 0.0
        %1650 = vmatprep.subr.mxu0 0.0
        %1651 = vmatpush1.xpose.msra.mxu0 0.0
        %1652 = vmatprep.subr.mxu0 0.0
        %1653 = vmatpush1.xpose.msra.mxu0 0.0
        %1654 = vmatprep.subr.mxu0 0.0
        %1655 = vmatpush1.xpose.msra.mxu0 0.0
        %1656 = vmatprep.subr.mxu0 0.0
        %1657 = vmatpush1.xpose.msra.mxu0 0.0
        %1658 = vmatprep.subr.mxu0 0.0
        %1659 = vmatpush1.xpose.msra.mxu0 0.0
        %1660 = vmatprep.subr.mxu0 0.0
        %1661 = vmatpush1.xpose.msra.mxu0 0.0
        %1662 = vmatprep.subr.mxu0 0.0
        %1663 = vmatpush1.xpose.msra.mxu0 0.0
        %1664 = vmatprep.subr.mxu0 0.0
        %1665 = vmatpush1.xpose.msra.mxu0 0.0
        %1666 = vmatprep.subr.mxu0 0.0
        %1667 = vmatpush1.xpose.msra.mxu0 0.0
        %1668 = vmatprep.subr.mxu0 0.0
        %1669 = vmatpush1.xpose.msra.mxu0 0.0
        %1670 = vmatprep.subr.mxu0 0.0
        %1671 = vmatpush1.xpose.msra.mxu0 0.0
        %1672 = vmatprep.subr.mxu0 0.0
        %1673 = vmatpush1.xpose.msra.mxu0 %v1640
        %1674 = vmatprep.subr.mxu0 0.0
        %1675 = vmatpush2.xpose.msra.mxu0 0.0
        %1676 = vmatprep.subr.mxu0 0.0
        %1677 = vmatpush2.xpose.msra.mxu0 0.0
        %1678 = vmatprep.subr.mxu0 0.0
        %1679 = vmatpush2.xpose.msra.mxu0 0.0
        %1680 = vmatprep.subr.mxu0 0.0
        %1681 = vmatpush2.xpose.msra.mxu0 0.0
        %1682 = vmatprep.subr.mxu0 0.0
        %1683 = vmatpush2.xpose.msra.mxu0 0.0
        %1684 = vmatprep.subr.mxu0 0.0
        %1685 = vmatpush2.xpose.msra.mxu0 0.0
        %1686 = vmatprep.subr.mxu0 0.0
        %1687 = vmatpush2.xpose.msra.mxu0 0.0
        %1688 = vmatprep.subr.mxu0 0.0
        %1689 = vmatpush2.xpose.msra.mxu0 0.0
        %1690 = vmatprep.subr.mxu0 0.0
        %1691 = vmatpush2.xpose.msra.mxu0 0.0
        %1692 = vmatprep.subr.mxu0 0.0
        %1693 = vmatpush2.xpose.msra.mxu0 0.0
        %1694 = vmatprep.subr.mxu0 0.0
        %1695 = vmatpush2.xpose.msra.mxu0 0.0
        %1696 = vmatprep.subr.mxu0 0.0
        %1697 = vmatpush2.xpose.msra.mxu0 0.0
        %1698 = vmatprep.subr.mxu0 0.0
        %1699 = vmatpush2.xpose.msra.mxu0 0.0
        %1700 = vmatprep.subr.mxu0 0.0
        %1701 = vmatpush2.xpose.msra.mxu0 0.0
        %1702 = vmatprep.subr.mxu0 0.0
        %1703 = vmatpush2.xpose.msra.mxu0 0.0
        %1704 = vmatprep.subr.mxu0 0.0
        %1705 = vmatpush2.xpose.msra.mxu0 0.0
        %1706 = vmatprep.mubr.f32.mxu0 0.0
        %1707 = vmatmul.mubr.f32.gmra.mxu0 %v1637
        %v1708 = vpop.f32.mrf.mxu0
        %v1709 = vadd.f32 0.0, %v1708
        %v1710 = vpop.f32.mrf.mxu0
        %1711 = vdwg.mxu0
        %v1713 = vsel %vm284, %v496, 0
        %1715 = vmatprep.subr.mxu0 0.0
        %1716 = vmatpush1.xpose.msra.mxu0 0.0
        %1717 = vmatprep.subr.mxu0 0.0
        %1718 = vmatpush1.xpose.msra.mxu0 0.0
        %1719 = vmatprep.subr.mxu0 0.0
        %1720 = vmatpush1.xpose.msra.mxu0 0.0
        %1721 = vmatprep.subr.mxu0 0.0
        %1722 = vmatpush1.xpose.msra.mxu0 0.0
        %1723 = vmatprep.subr.mxu0 0.0
        %1724 = vmatpush1.xpose.msra.mxu0 0.0
        %1725 = vmatprep.subr.mxu0 0.0
        %1726 = vmatpush1.xpose.msra.mxu0 0.0
        %1727 = vmatprep.subr.mxu0 0.0
        %1728 = vmatpush1.xpose.msra.mxu0 0.0
        %1729 = vmatprep.subr.mxu0 0.0
        %1730 = vmatpush1.xpose.msra.mxu0 0.0
        %1731 = vmatprep.subr.mxu0 0.0
        %1732 = vmatpush1.xpose.msra.mxu0 0.0
        %1733 = vmatprep.subr.mxu0 0.0
        %1734 = vmatpush1.xpose.msra.mxu0 0.0
        %1735 = vmatprep.subr.mxu0 0.0
        %1736 = vmatpush1.xpose.msra.mxu0 0.0
        %1737 = vmatprep.subr.mxu0 0.0
        %1738 = vmatpush1.xpose.msra.mxu0 0.0
        %1739 = vmatprep.subr.mxu0 0.0
        %1740 = vmatpush1.xpose.msra.mxu0 0.0
        %1741 = vmatprep.subr.mxu0 0.0
        %1742 = vmatpush1.xpose.msra.mxu0 0.0
        %1743 = vmatprep.subr.mxu0 0.0
        %1744 = vmatpush1.xpose.msra.mxu0 0.0
        %1745 = vmatprep.subr.mxu0 0.0
        %1746 = vmatpush1.xpose.msra.mxu0 %v1640
        %1747 = vmatprep.subr.mxu0 0.0
        %1748 = vmatpush2.xpose.msra.mxu0 0.0
        %1749 = vmatprep.subr.mxu0 0.0
        %1750 = vmatpush2.xpose.msra.mxu0 0.0
        %1751 = vmatprep.subr.mxu0 0.0
        %1752 = vmatpush2.xpose.msra.mxu0 0.0
        %1753 = vmatprep.subr.mxu0 0.0
        %1754 = vmatpush2.xpose.msra.mxu0 0.0
        %1755 = vmatprep.subr.mxu0 0.0
        %1756 = vmatpush2.xpose.msra.mxu0 0.0
        %1757 = vmatprep.subr.mxu0 0.0
        %1758 = vmatpush2.xpose.msra.mxu0 0.0
        %1759 = vmatprep.subr.mxu0 0.0
        %1760 = vmatpush2.xpose.msra.mxu0 0.0
        %1761 = vmatprep.subr.mxu0 0.0
        %1762 = vmatpush2.xpose.msra.mxu0 0.0
        %1763 = vmatprep.subr.mxu0 0.0
        %1764 = vmatpush2.xpose.msra.mxu0 0.0
        %1765 = vmatprep.subr.mxu0 0.0
        %1766 = vmatpush2.xpose.msra.mxu0 0.0
        %1767 = vmatprep.subr.mxu0 0.0
        %1768 = vmatpush2.xpose.msra.mxu0 0.0
        %1769 = vmatprep.subr.mxu0 0.0
        %1770 = vmatpush2.xpose.msra.mxu0 0.0
        %1771 = vmatprep.subr.mxu0 0.0
        %1772 = vmatpush2.xpose.msra.mxu0 0.0
        %1773 = vmatprep.subr.mxu0 0.0
        %1774 = vmatpush2.xpose.msra.mxu0 0.0
        %1775 = vmatprep.subr.mxu0 0.0
        %1776 = vmatpush2.xpose.msra.mxu0 0.0
        %1777 = vmatprep.subr.mxu0 0.0
        %1778 = vmatpush2.xpose.msra.mxu0 0.0
        %1779 = vmatprep.mubr.f32.mxu0 0.0
        %1780 = vmatmul.mubr.f32.gmra.mxu0 %v1713
        %v1781 = vpop.f32.mrf.mxu0
        %v1782 = vadd.f32 0.0, %v1781
        %v1783 = vpop.f32.mrf.mxu0
        %1784 = vdwg.mxu0
        %v1786 = vsel %vm284, %v601, 0
        %1788 = vmatprep.subr.mxu0 0.0
        %1789 = vmatpush1.xpose.msra.mxu0 0.0
        %1790 = vmatprep.subr.mxu0 0.0
        %1791 = vmatpush1.xpose.msra.mxu0 0.0
        %1792 = vmatprep.subr.mxu0 0.0
        %1793 = vmatpush1.xpose.msra.mxu0 0.0
        %1794 = vmatprep.subr.mxu0 0.0
        %1795 = vmatpush1.xpose.msra.mxu0 0.0
        %1796 = vmatprep.subr.mxu0 0.0
        %1797 = vmatpush1.xpose.msra.mxu0 0.0
        %1798 = vmatprep.subr.mxu0 0.0
        %1799 = vmatpush1.xpose.msra.mxu0 0.0
        %1800 = vmatprep.subr.mxu0 0.0
        %1801 = vmatpush1.xpose.msra.mxu0 0.0
        %1802 = vmatprep.subr.mxu0 0.0
        %1803 = vmatpush1.xpose.msra.mxu0 0.0
        %1804 = vmatprep.subr.mxu0 0.0
        %1805 = vmatpush1.xpose.msra.mxu0 0.0
        %1806 = vmatprep.subr.mxu0 0.0
        %1807 = vmatpush1.xpose.msra.mxu0 0.0
        %1808 = vmatprep.subr.mxu0 0.0
        %1809 = vmatpush1.xpose.msra.mxu0 0.0
        %1810 = vmatprep.subr.mxu0 0.0
        %1811 = vmatpush1.xpose.msra.mxu0 0.0
        %1812 = vmatprep.subr.mxu0 0.0
        %1813 = vmatpush1.xpose.msra.mxu0 0.0
        %1814 = vmatprep.subr.mxu0 0.0
        %1815 = vmatpush1.xpose.msra.mxu0 0.0
        %1816 = vmatprep.subr.mxu0 0.0
        %1817 = vmatpush1.xpose.msra.mxu0 0.0
        %1818 = vmatprep.subr.mxu0 0.0
        %1819 = vmatpush1.xpose.msra.mxu0 %v1640
        %1820 = vmatprep.subr.mxu0 0.0
        %1821 = vmatpush2.xpose.msra.mxu0 0.0
        %1822 = vmatprep.subr.mxu0 0.0
        %1823 = vmatpush2.xpose.msra.mxu0 0.0
        %1824 = vmatprep.subr.mxu0 0.0
        %1825 = vmatpush2.xpose.msra.mxu0 0.0
        %1826 = vmatprep.subr.mxu0 0.0
        %1827 = vmatpush2.xpose.msra.mxu0 0.0
        %1828 = vmatprep.subr.mxu0 0.0
        %1829 = vmatpush2.xpose.msra.mxu0 0.0
        %1830 = vmatprep.subr.mxu0 0.0
        %1831 = vmatpush2.xpose.msra.mxu0 0.0
        %1832 = vmatprep.subr.mxu0 0.0
        %1833 = vmatpush2.xpose.msra.mxu0 0.0
        %1834 = vmatprep.subr.mxu0 0.0
        %1835 = vmatpush2.xpose.msra.mxu0 0.0
        %1836 = vmatprep.subr.mxu0 0.0
        %1837 = vmatpush2.xpose.msra.mxu0 0.0
        %1838 = vmatprep.subr.mxu0 0.0
        %1839 = vmatpush2.xpose.msra.mxu0 0.0
        %1840 = vmatprep.subr.mxu0 0.0
        %1841 = vmatpush2.xpose.msra.mxu0 0.0
        %1842 = vmatprep.subr.mxu0 0.0
        %1843 = vmatpush2.xpose.msra.mxu0 0.0
        %1844 = vmatprep.subr.mxu0 0.0
        %1845 = vmatpush2.xpose.msra.mxu0 0.0
        %1846 = vmatprep.subr.mxu0 0.0
        %1847 = vmatpush2.xpose.msra.mxu0 0.0
        %1848 = vmatprep.subr.mxu0 0.0
        %1849 = vmatpush2.xpose.msra.mxu0 0.0
        %1850 = vmatprep.subr.mxu0 0.0
        %1851 = vmatpush2.xpose.msra.mxu0 0.0
        %1852 = vmatprep.mubr.f32.mxu0 0.0
        %1853 = vmatmul.mubr.f32.gmra.mxu0 %v1786
        %v1854 = vpop.f32.mrf.mxu0
        %v1855 = vadd.f32 0.0, %v1854
        %v1856 = vpop.f32.mrf.mxu0
        %1857 = vdwg.mxu0
        %v1859 = vsel %vm284, %v706, 0
        %1861 = vmatprep.subr.mxu0 0.0
        %1862 = vmatpush1.xpose.msra.mxu0 0.0
        %1863 = vmatprep.subr.mxu0 0.0
        %1864 = vmatpush1.xpose.msra.mxu0 0.0
        %1865 = vmatprep.subr.mxu0 0.0
        %1866 = vmatpush1.xpose.msra.mxu0 0.0
        %1867 = vmatprep.subr.mxu0 0.0
        %1868 = vmatpush1.xpose.msra.mxu0 0.0
        %1869 = vmatprep.subr.mxu0 0.0
        %1870 = vmatpush1.xpose.msra.mxu0 0.0
        %1871 = vmatprep.subr.mxu0 0.0
        %1872 = vmatpush1.xpose.msra.mxu0 0.0
        %1873 = vmatprep.subr.mxu0 0.0
        %1874 = vmatpush1.xpose.msra.mxu0 0.0
        %1875 = vmatprep.subr.mxu0 0.0
        %1876 = vmatpush1.xpose.msra.mxu0 0.0
        %1877 = vmatprep.subr.mxu0 0.0
        %1878 = vmatpush1.xpose.msra.mxu0 0.0
        %1879 = vmatprep.subr.mxu0 0.0
        %1880 = vmatpush1.xpose.msra.mxu0 0.0
        %1881 = vmatprep.subr.mxu0 0.0
        %1882 = vmatpush1.xpose.msra.mxu0 0.0
        %1883 = vmatprep.subr.mxu0 0.0
        %1884 = vmatpush1.xpose.msra.mxu0 0.0
        %1885 = vmatprep.subr.mxu0 0.0
        %1886 = vmatpush1.xpose.msra.mxu0 0.0
        %1887 = vmatprep.subr.mxu0 0.0
        %1888 = vmatpush1.xpose.msra.mxu0 0.0
        %1889 = vmatprep.subr.mxu0 0.0
        %1890 = vmatpush1.xpose.msra.mxu0 0.0
        %1891 = vmatprep.subr.mxu0 0.0
        %1892 = vmatpush1.xpose.msra.mxu0 %v1640
        %1893 = vmatprep.subr.mxu0 0.0
        %1894 = vmatpush2.xpose.msra.mxu0 0.0
        %1895 = vmatprep.subr.mxu0 0.0
        %1896 = vmatpush2.xpose.msra.mxu0 0.0
        %1897 = vmatprep.subr.mxu0 0.0
        %1898 = vmatpush2.xpose.msra.mxu0 0.0
        %1899 = vmatprep.subr.mxu0 0.0
        %1900 = vmatpush2.xpose.msra.mxu0 0.0
        %1901 = vmatprep.subr.mxu0 0.0
        %1902 = vmatpush2.xpose.msra.mxu0 0.0
        %1903 = vmatprep.subr.mxu0 0.0
        %1904 = vmatpush2.xpose.msra.mxu0 0.0
        %1905 = vmatprep.subr.mxu0 0.0
        %1906 = vmatpush2.xpose.msra.mxu0 0.0
        %1907 = vmatprep.subr.mxu0 0.0
        %1908 = vmatpush2.xpose.msra.mxu0 0.0
        %1909 = vmatprep.subr.mxu0 0.0
        %1910 = vmatpush2.xpose.msra.mxu0 0.0
        %1911 = vmatprep.subr.mxu0 0.0
        %1912 = vmatpush2.xpose.msra.mxu0 0.0
        %1913 = vmatprep.subr.mxu0 0.0
        %1914 = vmatpush2.xpose.msra.mxu0 0.0
        %1915 = vmatprep.subr.mxu0 0.0
        %1916 = vmatpush2.xpose.msra.mxu0 0.0
        %1917 = vmatprep.subr.mxu0 0.0
        %1918 = vmatpush2.xpose.msra.mxu0 0.0
        %1919 = vmatprep.subr.mxu0 0.0
        %1920 = vmatpush2.xpose.msra.mxu0 0.0
        %1921 = vmatprep.subr.mxu0 0.0
        %1922 = vmatpush2.xpose.msra.mxu0 0.0
        %1923 = vmatprep.subr.mxu0 0.0
        %1924 = vmatpush2.xpose.msra.mxu0 0.0
        %1925 = vmatprep.mubr.f32.mxu0 0.0
        %1926 = vmatmul.mubr.f32.gmra.mxu0 %v1859
        %v1927 = vpop.f32.mrf.mxu0
        %v1928 = vadd.f32 0.0, %v1927
        %v1929 = vpop.f32.mrf.mxu0
        %1930 = vdwg.mxu0
        %s1931 = scalar_lea.vmem %s267, 96
        %1932 = vst.msk [vmem:[%s1931] sm:$0xff] %vm1025, %v1709
        %1933 = vst.msk [vmem:[%s1931 + $0x8] sm:$0xff] %vm1025, %v1782
        %1934 = vst.msk [vmem:[%s1931 + $0x10] sm:$0xff] %vm1025, %v1855
        %1935 = vst.msk [vmem:[%s1931 + $0x18] sm:$0xff] %vm1025, %v1928
        %s1936 = scalar_lea.vmem %s257, 32
        %v1937 = vld [vmem:[%s1936] sm:$0xff]
        %v1939 = vsel %vm284, %v396, 0
        %v1942 = vsel %vm284, %v1937, 0
        %1944 = vmatprep.subr.mxu0 0.0
        %1945 = vmatpush1.xpose.msra.mxu0 0.0
        %1946 = vmatprep.subr.mxu0 0.0
        %1947 = vmatpush1.xpose.msra.mxu0 0.0
        %1948 = vmatprep.subr.mxu0 0.0
        %1949 = vmatpush1.xpose.msra.mxu0 0.0
        %1950 = vmatprep.subr.mxu0 0.0
        %1951 = vmatpush1.xpose.msra.mxu0 0.0
        %1952 = vmatprep.subr.mxu0 0.0
        %1953 = vmatpush1.xpose.msra.mxu0 0.0
        %1954 = vmatprep.subr.mxu0 0.0
        %1955 = vmatpush1.xpose.msra.mxu0 0.0
        %1956 = vmatprep.subr.mxu0 0.0
        %1957 = vmatpush1.xpose.msra.mxu0 0.0
        %1958 = vmatprep.subr.mxu0 0.0
        %1959 = vmatpush1.xpose.msra.mxu0 0.0
        %1960 = vmatprep.subr.mxu0 0.0
        %1961 = vmatpush1.xpose.msra.mxu0 0.0
        %1962 = vmatprep.subr.mxu0 0.0
        %1963 = vmatpush1.xpose.msra.mxu0 0.0
        %1964 = vmatprep.subr.mxu0 0.0
        %1965 = vmatpush1.xpose.msra.mxu0 0.0
        %1966 = vmatprep.subr.mxu0 0.0
        %1967 = vmatpush1.xpose.msra.mxu0 0.0
        %1968 = vmatprep.subr.mxu0 0.0
        %1969 = vmatpush1.xpose.msra.mxu0 0.0
        %1970 = vmatprep.subr.mxu0 0.0
        %1971 = vmatpush1.xpose.msra.mxu0 0.0
        %1972 = vmatprep.subr.mxu0 0.0
        %1973 = vmatpush1.xpose.msra.mxu0 0.0
        %1974 = vmatprep.subr.mxu0 0.0
        %1975 = vmatpush1.xpose.msra.mxu0 %v1942
        %1976 = vmatprep.subr.mxu0 0.0
        %1977 = vmatpush2.xpose.msra.mxu0 0.0
        %1978 = vmatprep.subr.mxu0 0.0
        %1979 = vmatpush2.xpose.msra.mxu0 0.0
        %1980 = vmatprep.subr.mxu0 0.0
        %1981 = vmatpush2.xpose.msra.mxu0 0.0
        %1982 = vmatprep.subr.mxu0 0.0
        %1983 = vmatpush2.xpose.msra.mxu0 0.0
        %1984 = vmatprep.subr.mxu0 0.0
        %1985 = vmatpush2.xpose.msra.mxu0 0.0
        %1986 = vmatprep.subr.mxu0 0.0
        %1987 = vmatpush2.xpose.msra.mxu0 0.0
        %1988 = vmatprep.subr.mxu0 0.0
        %1989 = vmatpush2.xpose.msra.mxu0 0.0
        %1990 = vmatprep.subr.mxu0 0.0
        %1991 = vmatpush2.xpose.msra.mxu0 0.0
        %1992 = vmatprep.subr.mxu0 0.0
        %1993 = vmatpush2.xpose.msra.mxu0 0.0
        %1994 = vmatprep.subr.mxu0 0.0
        %1995 = vmatpush2.xpose.msra.mxu0 0.0
        %1996 = vmatprep.subr.mxu0 0.0
        %1997 = vmatpush2.xpose.msra.mxu0 0.0
        %1998 = vmatprep.subr.mxu0 0.0
        %1999 = vmatpush2.xpose.msra.mxu0 0.0
        %2000 = vmatprep.subr.mxu0 0.0
        %2001 = vmatpush2.xpose.msra.mxu0 0.0
        %2002 = vmatprep.subr.mxu0 0.0
        %2003 = vmatpush2.xpose.msra.mxu0 0.0
        %2004 = vmatprep.subr.mxu0 0.0
        %2005 = vmatpush2.xpose.msra.mxu0 0.0
        %2006 = vmatprep.subr.mxu0 0.0
        %2007 = vmatpush2.xpose.msra.mxu0 0.0
        %2008 = vmatprep.mubr.f32.mxu0 0.0
        %2009 = vmatmul.mubr.f32.gmra.mxu0 %v1939
        %v2010 = vpop.f32.mrf.mxu0
        %v2011 = vadd.f32 0.0, %v2010
        %v2012 = vpop.f32.mrf.mxu0
        %2013 = vdwg.mxu0
        %v2015 = vsel %vm284, %v501, 0
        %2017 = vmatprep.subr.mxu0 0.0
        %2018 = vmatpush1.xpose.msra.mxu0 0.0
        %2019 = vmatprep.subr.mxu0 0.0
        %2020 = vmatpush1.xpose.msra.mxu0 0.0
        %2021 = vmatprep.subr.mxu0 0.0
        %2022 = vmatpush1.xpose.msra.mxu0 0.0
        %2023 = vmatprep.subr.mxu0 0.0
        %2024 = vmatpush1.xpose.msra.mxu0 0.0
        %2025 = vmatprep.subr.mxu0 0.0
        %2026 = vmatpush1.xpose.msra.mxu0 0.0
        %2027 = vmatprep.subr.mxu0 0.0
        %2028 = vmatpush1.xpose.msra.mxu0 0.0
        %2029 = vmatprep.subr.mxu0 0.0
        %2030 = vmatpush1.xpose.msra.mxu0 0.0
        %2031 = vmatprep.subr.mxu0 0.0
        %2032 = vmatpush1.xpose.msra.mxu0 0.0
        %2033 = vmatprep.subr.mxu0 0.0
        %2034 = vmatpush1.xpose.msra.mxu0 0.0
        %2035 = vmatprep.subr.mxu0 0.0
        %2036 = vmatpush1.xpose.msra.mxu0 0.0
        %2037 = vmatprep.subr.mxu0 0.0
        %2038 = vmatpush1.xpose.msra.mxu0 0.0
        %2039 = vmatprep.subr.mxu0 0.0
        %2040 = vmatpush1.xpose.msra.mxu0 0.0
        %2041 = vmatprep.subr.mxu0 0.0
        %2042 = vmatpush1.xpose.msra.mxu0 0.0
        %2043 = vmatprep.subr.mxu0 0.0
        %2044 = vmatpush1.xpose.msra.mxu0 0.0
        %2045 = vmatprep.subr.mxu0 0.0
        %2046 = vmatpush1.xpose.msra.mxu0 0.0
        %2047 = vmatprep.subr.mxu0 0.0
        %2048 = vmatpush1.xpose.msra.mxu0 %v1942
        %2049 = vmatprep.subr.mxu0 0.0
        %2050 = vmatpush2.xpose.msra.mxu0 0.0
        %2051 = vmatprep.subr.mxu0 0.0
        %2052 = vmatpush2.xpose.msra.mxu0 0.0
        %2053 = vmatprep.subr.mxu0 0.0
        %2054 = vmatpush2.xpose.msra.mxu0 0.0
        %2055 = vmatprep.subr.mxu0 0.0
        %2056 = vmatpush2.xpose.msra.mxu0 0.0
        %2057 = vmatprep.subr.mxu0 0.0
        %2058 = vmatpush2.xpose.msra.mxu0 0.0
        %2059 = vmatprep.subr.mxu0 0.0
        %2060 = vmatpush2.xpose.msra.mxu0 0.0
        %2061 = vmatprep.subr.mxu0 0.0
        %2062 = vmatpush2.xpose.msra.mxu0 0.0
        %2063 = vmatprep.subr.mxu0 0.0
        %2064 = vmatpush2.xpose.msra.mxu0 0.0
        %2065 = vmatprep.subr.mxu0 0.0
        %2066 = vmatpush2.xpose.msra.mxu0 0.0
        %2067 = vmatprep.subr.mxu0 0.0
        %2068 = vmatpush2.xpose.msra.mxu0 0.0
        %2069 = vmatprep.subr.mxu0 0.0
        %2070 = vmatpush2.xpose.msra.mxu0 0.0
        %2071 = vmatprep.subr.mxu0 0.0
        %2072 = vmatpush2.xpose.msra.mxu0 0.0
        %2073 = vmatprep.subr.mxu0 0.0
        %2074 = vmatpush2.xpose.msra.mxu0 0.0
        %2075 = vmatprep.subr.mxu0 0.0
        %2076 = vmatpush2.xpose.msra.mxu0 0.0
        %2077 = vmatprep.subr.mxu0 0.0
        %2078 = vmatpush2.xpose.msra.mxu0 0.0
        %2079 = vmatprep.subr.mxu0 0.0
        %2080 = vmatpush2.xpose.msra.mxu0 0.0
        %2081 = vmatprep.mubr.f32.mxu0 0.0
        %2082 = vmatmul.mubr.f32.gmra.mxu0 %v2015
        %v2083 = vpop.f32.mrf.mxu0
        %v2084 = vadd.f32 0.0, %v2083
        %v2085 = vpop.f32.mrf.mxu0
        %2086 = vdwg.mxu0
        %v2088 = vsel %vm284, %v606, 0
        %2090 = vmatprep.subr.mxu0 0.0
        %2091 = vmatpush1.xpose.msra.mxu0 0.0
        %2092 = vmatprep.subr.mxu0 0.0
        %2093 = vmatpush1.xpose.msra.mxu0 0.0
        %2094 = vmatprep.subr.mxu0 0.0
        %2095 = vmatpush1.xpose.msra.mxu0 0.0
        %2096 = vmatprep.subr.mxu0 0.0
        %2097 = vmatpush1.xpose.msra.mxu0 0.0
        %2098 = vmatprep.subr.mxu0 0.0
        %2099 = vmatpush1.xpose.msra.mxu0 0.0
        %2100 = vmatprep.subr.mxu0 0.0
        %2101 = vmatpush1.xpose.msra.mxu0 0.0
        %2102 = vmatprep.subr.mxu0 0.0
        %2103 = vmatpush1.xpose.msra.mxu0 0.0
        %2104 = vmatprep.subr.mxu0 0.0
        %2105 = vmatpush1.xpose.msra.mxu0 0.0
        %2106 = vmatprep.subr.mxu0 0.0
        %2107 = vmatpush1.xpose.msra.mxu0 0.0
        %2108 = vmatprep.subr.mxu0 0.0
        %2109 = vmatpush1.xpose.msra.mxu0 0.0
        %2110 = vmatprep.subr.mxu0 0.0
        %2111 = vmatpush1.xpose.msra.mxu0 0.0
        %2112 = vmatprep.subr.mxu0 0.0
        %2113 = vmatpush1.xpose.msra.mxu0 0.0
        %2114 = vmatprep.subr.mxu0 0.0
        %2115 = vmatpush1.xpose.msra.mxu0 0.0
        %2116 = vmatprep.subr.mxu0 0.0
        %2117 = vmatpush1.xpose.msra.mxu0 0.0
        %2118 = vmatprep.subr.mxu0 0.0
        %2119 = vmatpush1.xpose.msra.mxu0 0.0
        %2120 = vmatprep.subr.mxu0 0.0
        %2121 = vmatpush1.xpose.msra.mxu0 %v1942
        %2122 = vmatprep.subr.mxu0 0.0
        %2123 = vmatpush2.xpose.msra.mxu0 0.0
        %2124 = vmatprep.subr.mxu0 0.0
        %2125 = vmatpush2.xpose.msra.mxu0 0.0
        %2126 = vmatprep.subr.mxu0 0.0
        %2127 = vmatpush2.xpose.msra.mxu0 0.0
        %2128 = vmatprep.subr.mxu0 0.0
        %2129 = vmatpush2.xpose.msra.mxu0 0.0
        %2130 = vmatprep.subr.mxu0 0.0
        %2131 = vmatpush2.xpose.msra.mxu0 0.0
        %2132 = vmatprep.subr.mxu0 0.0
        %2133 = vmatpush2.xpose.msra.mxu0 0.0
        %2134 = vmatprep.subr.mxu0 0.0
        %2135 = vmatpush2.xpose.msra.mxu0 0.0
        %2136 = vmatprep.subr.mxu0 0.0
        %2137 = vmatpush2.xpose.msra.mxu0 0.0
        %2138 = vmatprep.subr.mxu0 0.0
        %2139 = vmatpush2.xpose.msra.mxu0 0.0
        %2140 = vmatprep.subr.mxu0 0.0
        %2141 = vmatpush2.xpose.msra.mxu0 0.0
        %2142 = vmatprep.subr.mxu0 0.0
        %2143 = vmatpush2.xpose.msra.mxu0 0.0
        %2144 = vmatprep.subr.mxu0 0.0
        %2145 = vmatpush2.xpose.msra.mxu0 0.0
        %2146 = vmatprep.subr.mxu0 0.0
        %2147 = vmatpush2.xpose.msra.mxu0 0.0
        %2148 = vmatprep.subr.mxu0 0.0
        %2149 = vmatpush2.xpose.msra.mxu0 0.0
        %2150 = vmatprep.subr.mxu0 0.0
        %2151 = vmatpush2.xpose.msra.mxu0 0.0
        %2152 = vmatprep.subr.mxu0 0.0
        %2153 = vmatpush2.xpose.msra.mxu0 0.0
        %2154 = vmatprep.mubr.f32.mxu0 0.0
        %2155 = vmatmul.mubr.f32.gmra.mxu0 %v2088
        %v2156 = vpop.f32.mrf.mxu0
        %v2157 = vadd.f32 0.0, %v2156
        %v2158 = vpop.f32.mrf.mxu0
        %2159 = vdwg.mxu0
        %v2161 = vsel %vm284, %v711, 0
        %2163 = vmatprep.subr.mxu0 0.0
        %2164 = vmatpush1.xpose.msra.mxu0 0.0
        %2165 = vmatprep.subr.mxu0 0.0
        %2166 = vmatpush1.xpose.msra.mxu0 0.0
        %2167 = vmatprep.subr.mxu0 0.0
        %2168 = vmatpush1.xpose.msra.mxu0 0.0
        %2169 = vmatprep.subr.mxu0 0.0
        %2170 = vmatpush1.xpose.msra.mxu0 0.0
        %2171 = vmatprep.subr.mxu0 0.0
        %2172 = vmatpush1.xpose.msra.mxu0 0.0
        %2173 = vmatprep.subr.mxu0 0.0
        %2174 = vmatpush1.xpose.msra.mxu0 0.0
        %2175 = vmatprep.subr.mxu0 0.0
        %2176 = vmatpush1.xpose.msra.mxu0 0.0
        %2177 = vmatprep.subr.mxu0 0.0
        %2178 = vmatpush1.xpose.msra.mxu0 0.0
        %2179 = vmatprep.subr.mxu0 0.0
        %2180 = vmatpush1.xpose.msra.mxu0 0.0
        %2181 = vmatprep.subr.mxu0 0.0
        %2182 = vmatpush1.xpose.msra.mxu0 0.0
        %2183 = vmatprep.subr.mxu0 0.0
        %2184 = vmatpush1.xpose.msra.mxu0 0.0
        %2185 = vmatprep.subr.mxu0 0.0
        %2186 = vmatpush1.xpose.msra.mxu0 0.0
        %2187 = vmatprep.subr.mxu0 0.0
        %2188 = vmatpush1.xpose.msra.mxu0 0.0
        %2189 = vmatprep.subr.mxu0 0.0
        %2190 = vmatpush1.xpose.msra.mxu0 0.0
        %2191 = vmatprep.subr.mxu0 0.0
        %2192 = vmatpush1.xpose.msra.mxu0 0.0
        %2193 = vmatprep.subr.mxu0 0.0
        %2194 = vmatpush1.xpose.msra.mxu0 %v1942
        %2195 = vmatprep.subr.mxu0 0.0
        %2196 = vmatpush2.xpose.msra.mxu0 0.0
        %2197 = vmatprep.subr.mxu0 0.0
        %2198 = vmatpush2.xpose.msra.mxu0 0.0
        %2199 = vmatprep.subr.mxu0 0.0
        %2200 = vmatpush2.xpose.msra.mxu0 0.0
        %2201 = vmatprep.subr.mxu0 0.0
        %2202 = vmatpush2.xpose.msra.mxu0 0.0
        %2203 = vmatprep.subr.mxu0 0.0
        %2204 = vmatpush2.xpose.msra.mxu0 0.0
        %2205 = vmatprep.subr.mxu0 0.0
        %2206 = vmatpush2.xpose.msra.mxu0 0.0
        %2207 = vmatprep.subr.mxu0 0.0
        %2208 = vmatpush2.xpose.msra.mxu0 0.0
        %2209 = vmatprep.subr.mxu0 0.0
        %2210 = vmatpush2.xpose.msra.mxu0 0.0
        %2211 = vmatprep.subr.mxu0 0.0
        %2212 = vmatpush2.xpose.msra.mxu0 0.0
        %2213 = vmatprep.subr.mxu0 0.0
        %2214 = vmatpush2.xpose.msra.mxu0 0.0
        %2215 = vmatprep.subr.mxu0 0.0
        %2216 = vmatpush2.xpose.msra.mxu0 0.0
        %2217 = vmatprep.subr.mxu0 0.0
        %2218 = vmatpush2.xpose.msra.mxu0 0.0
        %2219 = vmatprep.subr.mxu0 0.0
        %2220 = vmatpush2.xpose.msra.mxu0 0.0
        %2221 = vmatprep.subr.mxu0 0.0
        %2222 = vmatpush2.xpose.msra.mxu0 0.0
        %2223 = vmatprep.subr.mxu0 0.0
        %2224 = vmatpush2.xpose.msra.mxu0 0.0
        %2225 = vmatprep.subr.mxu0 0.0
        %2226 = vmatpush2.xpose.msra.mxu0 0.0
        %2227 = vmatprep.mubr.f32.mxu0 0.0
        %2228 = vmatmul.mubr.f32.gmra.mxu0 %v2161
        %v2229 = vpop.f32.mrf.mxu0
        %v2230 = vadd.f32 0.0, %v2229
        %v2231 = vpop.f32.mrf.mxu0
        %2232 = vdwg.mxu0
        %s2233 = scalar_lea.vmem %s267, 128
        %2234 = vst.msk [vmem:[%s2233] sm:$0xff] %vm1025, %v2011
        %2235 = vst.msk [vmem:[%s2233 + $0x8] sm:$0xff] %vm1025, %v2084
        %2236 = vst.msk [vmem:[%s2233 + $0x10] sm:$0xff] %vm1025, %v2157
        %2237 = vst.msk [vmem:[%s2233 + $0x18] sm:$0xff] %vm1025, %v2230
        %s2238 = scalar_lea.vmem %s257, 40
        %v2239 = vld [vmem:[%s2238] sm:$0xff]
        %v2241 = vsel %vm284, %v401, 0
        %v2244 = vsel %vm284, %v2239, 0
        %2246 = vmatprep.subr.mxu0 0.0
        %2247 = vmatpush1.xpose.msra.mxu0 0.0
        %2248 = vmatprep.subr.mxu0 0.0
        %2249 = vmatpush1.xpose.msra.mxu0 0.0
        %2250 = vmatprep.subr.mxu0 0.0
        %2251 = vmatpush1.xpose.msra.mxu0 0.0
        %2252 = vmatprep.subr.mxu0 0.0
        %2253 = vmatpush1.xpose.msra.mxu0 0.0
        %2254 = vmatprep.subr.mxu0 0.0
        %2255 = vmatpush1.xpose.msra.mxu0 0.0
        %2256 = vmatprep.subr.mxu0 0.0
        %2257 = vmatpush1.xpose.msra.mxu0 0.0
        %2258 = vmatprep.subr.mxu0 0.0
        %2259 = vmatpush1.xpose.msra.mxu0 0.0
        %2260 = vmatprep.subr.mxu0 0.0
        %2261 = vmatpush1.xpose.msra.mxu0 0.0
        %2262 = vmatprep.subr.mxu0 0.0
        %2263 = vmatpush1.xpose.msra.mxu0 0.0
        %2264 = vmatprep.subr.mxu0 0.0
        %2265 = vmatpush1.xpose.msra.mxu0 0.0
        %2266 = vmatprep.subr.mxu0 0.0
        %2267 = vmatpush1.xpose.msra.mxu0 0.0
        %2268 = vmatprep.subr.mxu0 0.0
        %2269 = vmatpush1.xpose.msra.mxu0 0.0
        %2270 = vmatprep.subr.mxu0 0.0
        %2271 = vmatpush1.xpose.msra.mxu0 0.0
        %2272 = vmatprep.subr.mxu0 0.0
        %2273 = vmatpush1.xpose.msra.mxu0 0.0
        %2274 = vmatprep.subr.mxu0 0.0
        %2275 = vmatpush1.xpose.msra.mxu0 0.0
        %2276 = vmatprep.subr.mxu0 0.0
        %2277 = vmatpush1.xpose.msra.mxu0 %v2244
        %2278 = vmatprep.subr.mxu0 0.0
        %2279 = vmatpush2.xpose.msra.mxu0 0.0
        %2280 = vmatprep.subr.mxu0 0.0
        %2281 = vmatpush2.xpose.msra.mxu0 0.0
        %2282 = vmatprep.subr.mxu0 0.0
        %2283 = vmatpush2.xpose.msra.mxu0 0.0
        %2284 = vmatprep.subr.mxu0 0.0
        %2285 = vmatpush2.xpose.msra.mxu0 0.0
        %2286 = vmatprep.subr.mxu0 0.0
        %2287 = vmatpush2.xpose.msra.mxu0 0.0
        %2288 = vmatprep.subr.mxu0 0.0
        %2289 = vmatpush2.xpose.msra.mxu0 0.0
        %2290 = vmatprep.subr.mxu0 0.0
        %2291 = vmatpush2.xpose.msra.mxu0 0.0
        %2292 = vmatprep.subr.mxu0 0.0
        %2293 = vmatpush2.xpose.msra.mxu0 0.0
        %2294 = vmatprep.subr.mxu0 0.0
        %2295 = vmatpush2.xpose.msra.mxu0 0.0
        %2296 = vmatprep.subr.mxu0 0.0
        %2297 = vmatpush2.xpose.msra.mxu0 0.0
        %2298 = vmatprep.subr.mxu0 0.0
        %2299 = vmatpush2.xpose.msra.mxu0 0.0
        %2300 = vmatprep.subr.mxu0 0.0
        %2301 = vmatpush2.xpose.msra.mxu0 0.0
        %2302 = vmatprep.subr.mxu0 0.0
        %2303 = vmatpush2.xpose.msra.mxu0 0.0
        %2304 = vmatprep.subr.mxu0 0.0
        %2305 = vmatpush2.xpose.msra.mxu0 0.0
        %2306 = vmatprep.subr.mxu0 0.0
        %2307 = vmatpush2.xpose.msra.mxu0 0.0
        %2308 = vmatprep.subr.mxu0 0.0
        %2309 = vmatpush2.xpose.msra.mxu0 0.0
        %2310 = vmatprep.mubr.f32.mxu0 0.0
        %2311 = vmatmul.mubr.f32.gmra.mxu0 %v2241
        %v2312 = vpop.f32.mrf.mxu0
        %v2313 = vadd.f32 0.0, %v2312
        %v2314 = vpop.f32.mrf.mxu0
        %2315 = vdwg.mxu0
        %v2317 = vsel %vm284, %v506, 0
        %2319 = vmatprep.subr.mxu0 0.0
        %2320 = vmatpush1.xpose.msra.mxu0 0.0
        %2321 = vmatprep.subr.mxu0 0.0
        %2322 = vmatpush1.xpose.msra.mxu0 0.0
        %2323 = vmatprep.subr.mxu0 0.0
        %2324 = vmatpush1.xpose.msra.mxu0 0.0
        %2325 = vmatprep.subr.mxu0 0.0
        %2326 = vmatpush1.xpose.msra.mxu0 0.0
        %2327 = vmatprep.subr.mxu0 0.0
        %2328 = vmatpush1.xpose.msra.mxu0 0.0
        %2329 = vmatprep.subr.mxu0 0.0
        %2330 = vmatpush1.xpose.msra.mxu0 0.0
        %2331 = vmatprep.subr.mxu0 0.0
        %2332 = vmatpush1.xpose.msra.mxu0 0.0
        %2333 = vmatprep.subr.mxu0 0.0
        %2334 = vmatpush1.xpose.msra.mxu0 0.0
        %2335 = vmatprep.subr.mxu0 0.0
        %2336 = vmatpush1.xpose.msra.mxu0 0.0
        %2337 = vmatprep.subr.mxu0 0.0
        %2338 = vmatpush1.xpose.msra.mxu0 0.0
        %2339 = vmatprep.subr.mxu0 0.0
        %2340 = vmatpush1.xpose.msra.mxu0 0.0
        %2341 = vmatprep.subr.mxu0 0.0
        %2342 = vmatpush1.xpose.msra.mxu0 0.0
        %2343 = vmatprep.subr.mxu0 0.0
        %2344 = vmatpush1.xpose.msra.mxu0 0.0
        %2345 = vmatprep.subr.mxu0 0.0
        %2346 = vmatpush1.xpose.msra.mxu0 0.0
        %2347 = vmatprep.subr.mxu0 0.0
        %2348 = vmatpush1.xpose.msra.mxu0 0.0
        %2349 = vmatprep.subr.mxu0 0.0
        %2350 = vmatpush1.xpose.msra.mxu0 %v2244
        %2351 = vmatprep.subr.mxu0 0.0
        %2352 = vmatpush2.xpose.msra.mxu0 0.0
        %2353 = vmatprep.subr.mxu0 0.0
        %2354 = vmatpush2.xpose.msra.mxu0 0.0
        %2355 = vmatprep.subr.mxu0 0.0
        %2356 = vmatpush2.xpose.msra.mxu0 0.0
        %2357 = vmatprep.subr.mxu0 0.0
        %2358 = vmatpush2.xpose.msra.mxu0 0.0
        %2359 = vmatprep.subr.mxu0 0.0
        %2360 = vmatpush2.xpose.msra.mxu0 0.0
        %2361 = vmatprep.subr.mxu0 0.0
        %2362 = vmatpush2.xpose.msra.mxu0 0.0
        %2363 = vmatprep.subr.mxu0 0.0
        %2364 = vmatpush2.xpose.msra.mxu0 0.0
        %2365 = vmatprep.subr.mxu0 0.0
        %2366 = vmatpush2.xpose.msra.mxu0 0.0
        %2367 = vmatprep.subr.mxu0 0.0
        %2368 = vmatpush2.xpose.msra.mxu0 0.0
        %2369 = vmatprep.subr.mxu0 0.0
        %2370 = vmatpush2.xpose.msra.mxu0 0.0
        %2371 = vmatprep.subr.mxu0 0.0
        %2372 = vmatpush2.xpose.msra.mxu0 0.0
        %2373 = vmatprep.subr.mxu0 0.0
        %2374 = vmatpush2.xpose.msra.mxu0 0.0
        %2375 = vmatprep.subr.mxu0 0.0
        %2376 = vmatpush2.xpose.msra.mxu0 0.0
        %2377 = vmatprep.subr.mxu0 0.0
        %2378 = vmatpush2.xpose.msra.mxu0 0.0
        %2379 = vmatprep.subr.mxu0 0.0
        %2380 = vmatpush2.xpose.msra.mxu0 0.0
        %2381 = vmatprep.subr.mxu0 0.0
        %2382 = vmatpush2.xpose.msra.mxu0 0.0
        %2383 = vmatprep.mubr.f32.mxu0 0.0
        %2384 = vmatmul.mubr.f32.gmra.mxu0 %v2317
        %v2385 = vpop.f32.mrf.mxu0
        %v2386 = vadd.f32 0.0, %v2385
        %v2387 = vpop.f32.mrf.mxu0
        %2388 = vdwg.mxu0
        %v2390 = vsel %vm284, %v611, 0
        %2392 = vmatprep.subr.mxu0 0.0
        %2393 = vmatpush1.xpose.msra.mxu0 0.0
        %2394 = vmatprep.subr.mxu0 0.0
        %2395 = vmatpush1.xpose.msra.mxu0 0.0
        %2396 = vmatprep.subr.mxu0 0.0
        %2397 = vmatpush1.xpose.msra.mxu0 0.0
        %2398 = vmatprep.subr.mxu0 0.0
        %2399 = vmatpush1.xpose.msra.mxu0 0.0
        %2400 = vmatprep.subr.mxu0 0.0
        %2401 = vmatpush1.xpose.msra.mxu0 0.0
        %2402 = vmatprep.subr.mxu0 0.0
        %2403 = vmatpush1.xpose.msra.mxu0 0.0
        %2404 = vmatprep.subr.mxu0 0.0
        %2405 = vmatpush1.xpose.msra.mxu0 0.0
        %2406 = vmatprep.subr.mxu0 0.0
        %2407 = vmatpush1.xpose.msra.mxu0 0.0
        %2408 = vmatprep.subr.mxu0 0.0
        %2409 = vmatpush1.xpose.msra.mxu0 0.0
        %2410 = vmatprep.subr.mxu0 0.0
        %2411 = vmatpush1.xpose.msra.mxu0 0.0
        %2412 = vmatprep.subr.mxu0 0.0
        %2413 = vmatpush1.xpose.msra.mxu0 0.0
        %2414 = vmatprep.subr.mxu0 0.0
        %2415 = vmatpush1.xpose.msra.mxu0 0.0
        %2416 = vmatprep.subr.mxu0 0.0
        %2417 = vmatpush1.xpose.msra.mxu0 0.0
        %2418 = vmatprep.subr.mxu0 0.0
        %2419 = vmatpush1.xpose.msra.mxu0 0.0
        %2420 = vmatprep.subr.mxu0 0.0
        %2421 = vmatpush1.xpose.msra.mxu0 0.0
        %2422 = vmatprep.subr.mxu0 0.0
        %2423 = vmatpush1.xpose.msra.mxu0 %v2244
        %2424 = vmatprep.subr.mxu0 0.0
        %2425 = vmatpush2.xpose.msra.mxu0 0.0
        %2426 = vmatprep.subr.mxu0 0.0
        %2427 = vmatpush2.xpose.msra.mxu0 0.0
        %2428 = vmatprep.subr.mxu0 0.0
        %2429 = vmatpush2.xpose.msra.mxu0 0.0
        %2430 = vmatprep.subr.mxu0 0.0
        %2431 = vmatpush2.xpose.msra.mxu0 0.0
        %2432 = vmatprep.subr.mxu0 0.0
        %2433 = vmatpush2.xpose.msra.mxu0 0.0
        %2434 = vmatprep.subr.mxu0 0.0
        %2435 = vmatpush2.xpose.msra.mxu0 0.0
        %2436 = vmatprep.subr.mxu0 0.0
        %2437 = vmatpush2.xpose.msra.mxu0 0.0
        %2438 = vmatprep.subr.mxu0 0.0
        %2439 = vmatpush2.xpose.msra.mxu0 0.0
        %2440 = vmatprep.subr.mxu0 0.0
        %2441 = vmatpush2.xpose.msra.mxu0 0.0
        %2442 = vmatprep.subr.mxu0 0.0
        %2443 = vmatpush2.xpose.msra.mxu0 0.0
        %2444 = vmatprep.subr.mxu0 0.0
        %2445 = vmatpush2.xpose.msra.mxu0 0.0
        %2446 = vmatprep.subr.mxu0 0.0
        %2447 = vmatpush2.xpose.msra.mxu0 0.0
        %2448 = vmatprep.subr.mxu0 0.0
        %2449 = vmatpush2.xpose.msra.mxu0 0.0
        %2450 = vmatprep.subr.mxu0 0.0
        %2451 = vmatpush2.xpose.msra.mxu0 0.0
        %2452 = vmatprep.subr.mxu0 0.0
        %2453 = vmatpush2.xpose.msra.mxu0 0.0
        %2454 = vmatprep.subr.mxu0 0.0
        %2455 = vmatpush2.xpose.msra.mxu0 0.0
        %2456 = vmatprep.mubr.f32.mxu0 0.0
        %2457 = vmatmul.mubr.f32.gmra.mxu0 %v2390
        %v2458 = vpop.f32.mrf.mxu0
        %v2459 = vadd.f32 0.0, %v2458
        %v2460 = vpop.f32.mrf.mxu0
        %2461 = vdwg.mxu0
        %v2463 = vsel %vm284, %v716, 0
        %2465 = vmatprep.subr.mxu0 0.0
        %2466 = vmatpush1.xpose.msra.mxu0 0.0
        %2467 = vmatprep.subr.mxu0 0.0
        %2468 = vmatpush1.xpose.msra.mxu0 0.0
        %2469 = vmatprep.subr.mxu0 0.0
        %2470 = vmatpush1.xpose.msra.mxu0 0.0
        %2471 = vmatprep.subr.mxu0 0.0
        %2472 = vmatpush1.xpose.msra.mxu0 0.0
        %2473 = vmatprep.subr.mxu0 0.0
        %2474 = vmatpush1.xpose.msra.mxu0 0.0
        %2475 = vmatprep.subr.mxu0 0.0
        %2476 = vmatpush1.xpose.msra.mxu0 0.0
        %2477 = vmatprep.subr.mxu0 0.0
        %2478 = vmatpush1.xpose.msra.mxu0 0.0
        %2479 = vmatprep.subr.mxu0 0.0
        %2480 = vmatpush1.xpose.msra.mxu0 0.0
        %2481 = vmatprep.subr.mxu0 0.0
        %2482 = vmatpush1.xpose.msra.mxu0 0.0
        %2483 = vmatprep.subr.mxu0 0.0
        %2484 = vmatpush1.xpose.msra.mxu0 0.0
        %2485 = vmatprep.subr.mxu0 0.0
        %2486 = vmatpush1.xpose.msra.mxu0 0.0
        %2487 = vmatprep.subr.mxu0 0.0
        %2488 = vmatpush1.xpose.msra.mxu0 0.0
        %2489 = vmatprep.subr.mxu0 0.0
        %2490 = vmatpush1.xpose.msra.mxu0 0.0
        %2491 = vmatprep.subr.mxu0 0.0
        %2492 = vmatpush1.xpose.msra.mxu0 0.0
        %2493 = vmatprep.subr.mxu0 0.0
        %2494 = vmatpush1.xpose.msra.mxu0 0.0
        %2495 = vmatprep.subr.mxu0 0.0
        %2496 = vmatpush1.xpose.msra.mxu0 %v2244
        %2497 = vmatprep.subr.mxu0 0.0
        %2498 = vmatpush2.xpose.msra.mxu0 0.0
        %2499 = vmatprep.subr.mxu0 0.0
        %2500 = vmatpush2.xpose.msra.mxu0 0.0
        %2501 = vmatprep.subr.mxu0 0.0
        %2502 = vmatpush2.xpose.msra.mxu0 0.0
        %2503 = vmatprep.subr.mxu0 0.0
        %2504 = vmatpush2.xpose.msra.mxu0 0.0
        %2505 = vmatprep.subr.mxu0 0.0
        %2506 = vmatpush2.xpose.msra.mxu0 0.0
        %2507 = vmatprep.subr.mxu0 0.0
        %2508 = vmatpush2.xpose.msra.mxu0 0.0
        %2509 = vmatprep.subr.mxu0 0.0
        %2510 = vmatpush2.xpose.msra.mxu0 0.0
        %2511 = vmatprep.subr.mxu0 0.0
        %2512 = vmatpush2.xpose.msra.mxu0 0.0
        %2513 = vmatprep.subr.mxu0 0.0
        %2514 = vmatpush2.xpose.msra.mxu0 0.0
        %2515 = vmatprep.subr.mxu0 0.0
        %2516 = vmatpush2.xpose.msra.mxu0 0.0
        %2517 = vmatprep.subr.mxu0 0.0
        %2518 = vmatpush2.xpose.msra.mxu0 0.0
        %2519 = vmatprep.subr.mxu0 0.0
        %2520 = vmatpush2.xpose.msra.mxu0 0.0
        %2521 = vmatprep.subr.mxu0 0.0
        %2522 = vmatpush2.xpose.msra.mxu0 0.0
        %2523 = vmatprep.subr.mxu0 0.0
        %2524 = vmatpush2.xpose.msra.mxu0 0.0
        %2525 = vmatprep.subr.mxu0 0.0
        %2526 = vmatpush2.xpose.msra.mxu0 0.0
        %2527 = vmatprep.subr.mxu0 0.0
        %2528 = vmatpush2.xpose.msra.mxu0 0.0
        %2529 = vmatprep.mubr.f32.mxu0 0.0
        %2530 = vmatmul.mubr.f32.gmra.mxu0 %v2463
        %v2531 = vpop.f32.mrf.mxu0
        %v2532 = vadd.f32 0.0, %v2531
        %v2533 = vpop.f32.mrf.mxu0
        %2534 = vdwg.mxu0
        %s2535 = scalar_lea.vmem %s267, 160
        %2536 = vst.msk [vmem:[%s2535] sm:$0xff] %vm1025, %v2313
        %2537 = vst.msk [vmem:[%s2535 + $0x8] sm:$0xff] %vm1025, %v2386
        %2538 = vst.msk [vmem:[%s2535 + $0x10] sm:$0xff] %vm1025, %v2459
        %2539 = vst.msk [vmem:[%s2535 + $0x18] sm:$0xff] %vm1025, %v2532
        %s2540 = scalar_lea.vmem %s257, 48
        %v2541 = vld [vmem:[%s2540] sm:$0xff]
        %v2543 = vsel %vm284, %v406, 0
        %v2546 = vsel %vm284, %v2541, 0
        %2548 = vmatprep.subr.mxu0 0.0
        %2549 = vmatpush1.xpose.msra.mxu0 0.0
        %2550 = vmatprep.subr.mxu0 0.0
        %2551 = vmatpush1.xpose.msra.mxu0 0.0
        %2552 = vmatprep.subr.mxu0 0.0
        %2553 = vmatpush1.xpose.msra.mxu0 0.0
        %2554 = vmatprep.subr.mxu0 0.0
        %2555 = vmatpush1.xpose.msra.mxu0 0.0
        %2556 = vmatprep.subr.mxu0 0.0
        %2557 = vmatpush1.xpose.msra.mxu0 0.0
        %2558 = vmatprep.subr.mxu0 0.0
        %2559 = vmatpush1.xpose.msra.mxu0 0.0
        %2560 = vmatprep.subr.mxu0 0.0
        %2561 = vmatpush1.xpose.msra.mxu0 0.0
        %2562 = vmatprep.subr.mxu0 0.0
        %2563 = vmatpush1.xpose.msra.mxu0 0.0
        %2564 = vmatprep.subr.mxu0 0.0
        %2565 = vmatpush1.xpose.msra.mxu0 0.0
        %2566 = vmatprep.subr.mxu0 0.0
        %2567 = vmatpush1.xpose.msra.mxu0 0.0
        %2568 = vmatprep.subr.mxu0 0.0
        %2569 = vmatpush1.xpose.msra.mxu0 0.0
        %2570 = vmatprep.subr.mxu0 0.0
        %2571 = vmatpush1.xpose.msra.mxu0 0.0
        %2572 = vmatprep.subr.mxu0 0.0
        %2573 = vmatpush1.xpose.msra.mxu0 0.0
        %2574 = vmatprep.subr.mxu0 0.0
        %2575 = vmatpush1.xpose.msra.mxu0 0.0
        %2576 = vmatprep.subr.mxu0 0.0
        %2577 = vmatpush1.xpose.msra.mxu0 0.0
        %2578 = vmatprep.subr.mxu0 0.0
        %2579 = vmatpush1.xpose.msra.mxu0 %v2546
        %2580 = vmatprep.subr.mxu0 0.0
        %2581 = vmatpush2.xpose.msra.mxu0 0.0
        %2582 = vmatprep.subr.mxu0 0.0
        %2583 = vmatpush2.xpose.msra.mxu0 0.0
        %2584 = vmatprep.subr.mxu0 0.0
        %2585 = vmatpush2.xpose.msra.mxu0 0.0
        %2586 = vmatprep.subr.mxu0 0.0
        %2587 = vmatpush2.xpose.msra.mxu0 0.0
        %2588 = vmatprep.subr.mxu0 0.0
        %2589 = vmatpush2.xpose.msra.mxu0 0.0
        %2590 = vmatprep.subr.mxu0 0.0
        %2591 = vmatpush2.xpose.msra.mxu0 0.0
        %2592 = vmatprep.subr.mxu0 0.0
        %2593 = vmatpush2.xpose.msra.mxu0 0.0
        %2594 = vmatprep.subr.mxu0 0.0
        %2595 = vmatpush2.xpose.msra.mxu0 0.0
        %2596 = vmatprep.subr.mxu0 0.0
        %2597 = vmatpush2.xpose.msra.mxu0 0.0
        %2598 = vmatprep.subr.mxu0 0.0
        %2599 = vmatpush2.xpose.msra.mxu0 0.0
        %2600 = vmatprep.subr.mxu0 0.0
        %2601 = vmatpush2.xpose.msra.mxu0 0.0
        %2602 = vmatprep.subr.mxu0 0.0
        %2603 = vmatpush2.xpose.msra.mxu0 0.0
        %2604 = vmatprep.subr.mxu0 0.0
        %2605 = vmatpush2.xpose.msra.mxu0 0.0
        %2606 = vmatprep.subr.mxu0 0.0
        %2607 = vmatpush2.xpose.msra.mxu0 0.0
        %2608 = vmatprep.subr.mxu0 0.0
        %2609 = vmatpush2.xpose.msra.mxu0 0.0
        %2610 = vmatprep.subr.mxu0 0.0
        %2611 = vmatpush2.xpose.msra.mxu0 0.0
        %2612 = vmatprep.mubr.f32.mxu0 0.0
        %2613 = vmatmul.mubr.f32.gmra.mxu0 %v2543
        %v2614 = vpop.f32.mrf.mxu0
        %v2615 = vadd.f32 0.0, %v2614
        %v2616 = vpop.f32.mrf.mxu0
        %2617 = vdwg.mxu0
        %v2619 = vsel %vm284, %v511, 0
        %2621 = vmatprep.subr.mxu0 0.0
        %2622 = vmatpush1.xpose.msra.mxu0 0.0
        %2623 = vmatprep.subr.mxu0 0.0
        %2624 = vmatpush1.xpose.msra.mxu0 0.0
        %2625 = vmatprep.subr.mxu0 0.0
        %2626 = vmatpush1.xpose.msra.mxu0 0.0
        %2627 = vmatprep.subr.mxu0 0.0
        %2628 = vmatpush1.xpose.msra.mxu0 0.0
        %2629 = vmatprep.subr.mxu0 0.0
        %2630 = vmatpush1.xpose.msra.mxu0 0.0
        %2631 = vmatprep.subr.mxu0 0.0
        %2632 = vmatpush1.xpose.msra.mxu0 0.0
        %2633 = vmatprep.subr.mxu0 0.0
        %2634 = vmatpush1.xpose.msra.mxu0 0.0
        %2635 = vmatprep.subr.mxu0 0.0
        %2636 = vmatpush1.xpose.msra.mxu0 0.0
        %2637 = vmatprep.subr.mxu0 0.0
        %2638 = vmatpush1.xpose.msra.mxu0 0.0
        %2639 = vmatprep.subr.mxu0 0.0
        %2640 = vmatpush1.xpose.msra.mxu0 0.0
        %2641 = vmatprep.subr.mxu0 0.0
        %2642 = vmatpush1.xpose.msra.mxu0 0.0
        %2643 = vmatprep.subr.mxu0 0.0
        %2644 = vmatpush1.xpose.msra.mxu0 0.0
        %2645 = vmatprep.subr.mxu0 0.0
        %2646 = vmatpush1.xpose.msra.mxu0 0.0
        %2647 = vmatprep.subr.mxu0 0.0
        %2648 = vmatpush1.xpose.msra.mxu0 0.0
        %2649 = vmatprep.subr.mxu0 0.0
        %2650 = vmatpush1.xpose.msra.mxu0 0.0
        %2651 = vmatprep.subr.mxu0 0.0
        %2652 = vmatpush1.xpose.msra.mxu0 %v2546
        %2653 = vmatprep.subr.mxu0 0.0
        %2654 = vmatpush2.xpose.msra.mxu0 0.0
        %2655 = vmatprep.subr.mxu0 0.0
        %2656 = vmatpush2.xpose.msra.mxu0 0.0
        %2657 = vmatprep.subr.mxu0 0.0
        %2658 = vmatpush2.xpose.msra.mxu0 0.0
        %2659 = vmatprep.subr.mxu0 0.0
        %2660 = vmatpush2.xpose.msra.mxu0 0.0
        %2661 = vmatprep.subr.mxu0 0.0
        %2662 = vmatpush2.xpose.msra.mxu0 0.0
        %2663 = vmatprep.subr.mxu0 0.0
        %2664 = vmatpush2.xpose.msra.mxu0 0.0
        %2665 = vmatprep.subr.mxu0 0.0
        %2666 = vmatpush2.xpose.msra.mxu0 0.0
        %2667 = vmatprep.subr.mxu0 0.0
        %2668 = vmatpush2.xpose.msra.mxu0 0.0
        %2669 = vmatprep.subr.mxu0 0.0
        %2670 = vmatpush2.xpose.msra.mxu0 0.0
        %2671 = vmatprep.subr.mxu0 0.0
        %2672 = vmatpush2.xpose.msra.mxu0 0.0
        %2673 = vmatprep.subr.mxu0 0.0
        %2674 = vmatpush2.xpose.msra.mxu0 0.0
        %2675 = vmatprep.subr.mxu0 0.0
        %2676 = vmatpush2.xpose.msra.mxu0 0.0
        %2677 = vmatprep.subr.mxu0 0.0
        %2678 = vmatpush2.xpose.msra.mxu0 0.0
        %2679 = vmatprep.subr.mxu0 0.0
        %2680 = vmatpush2.xpose.msra.mxu0 0.0
        %2681 = vmatprep.subr.mxu0 0.0
        %2682 = vmatpush2.xpose.msra.mxu0 0.0
        %2683 = vmatprep.subr.mxu0 0.0
        %2684 = vmatpush2.xpose.msra.mxu0 0.0
        %2685 = vmatprep.mubr.f32.mxu0 0.0
        %2686 = vmatmul.mubr.f32.gmra.mxu0 %v2619
        %v2687 = vpop.f32.mrf.mxu0
        %v2688 = vadd.f32 0.0, %v2687
        %v2689 = vpop.f32.mrf.mxu0
        %2690 = vdwg.mxu0
        %v2692 = vsel %vm284, %v616, 0
        %2694 = vmatprep.subr.mxu0 0.0
        %2695 = vmatpush1.xpose.msra.mxu0 0.0
        %2696 = vmatprep.subr.mxu0 0.0
        %2697 = vmatpush1.xpose.msra.mxu0 0.0
        %2698 = vmatprep.subr.mxu0 0.0
        %2699 = vmatpush1.xpose.msra.mxu0 0.0
        %2700 = vmatprep.subr.mxu0 0.0
        %2701 = vmatpush1.xpose.msra.mxu0 0.0
        %2702 = vmatprep.subr.mxu0 0.0
        %2703 = vmatpush1.xpose.msra.mxu0 0.0
        %2704 = vmatprep.subr.mxu0 0.0
        %2705 = vmatpush1.xpose.msra.mxu0 0.0
        %2706 = vmatprep.subr.mxu0 0.0
        %2707 = vmatpush1.xpose.msra.mxu0 0.0
        %2708 = vmatprep.subr.mxu0 0.0
        %2709 = vmatpush1.xpose.msra.mxu0 0.0
        %2710 = vmatprep.subr.mxu0 0.0
        %2711 = vmatpush1.xpose.msra.mxu0 0.0
        %2712 = vmatprep.subr.mxu0 0.0
        %2713 = vmatpush1.xpose.msra.mxu0 0.0
        %2714 = vmatprep.subr.mxu0 0.0
        %2715 = vmatpush1.xpose.msra.mxu0 0.0
        %2716 = vmatprep.subr.mxu0 0.0
        %2717 = vmatpush1.xpose.msra.mxu0 0.0
        %2718 = vmatprep.subr.mxu0 0.0
        %2719 = vmatpush1.xpose.msra.mxu0 0.0
        %2720 = vmatprep.subr.mxu0 0.0
        %2721 = vmatpush1.xpose.msra.mxu0 0.0
        %2722 = vmatprep.subr.mxu0 0.0
        %2723 = vmatpush1.xpose.msra.mxu0 0.0
        %2724 = vmatprep.subr.mxu0 0.0
        %2725 = vmatpush1.xpose.msra.mxu0 %v2546
        %2726 = vmatprep.subr.mxu0 0.0
        %2727 = vmatpush2.xpose.msra.mxu0 0.0
        %2728 = vmatprep.subr.mxu0 0.0
        %2729 = vmatpush2.xpose.msra.mxu0 0.0
        %2730 = vmatprep.subr.mxu0 0.0
        %2731 = vmatpush2.xpose.msra.mxu0 0.0
        %2732 = vmatprep.subr.mxu0 0.0
        %2733 = vmatpush2.xpose.msra.mxu0 0.0
        %2734 = vmatprep.subr.mxu0 0.0
        %2735 = vmatpush2.xpose.msra.mxu0 0.0
        %2736 = vmatprep.subr.mxu0 0.0
        %2737 = vmatpush2.xpose.msra.mxu0 0.0
        %2738 = vmatprep.subr.mxu0 0.0
        %2739 = vmatpush2.xpose.msra.mxu0 0.0
        %2740 = vmatprep.subr.mxu0 0.0
        %2741 = vmatpush2.xpose.msra.mxu0 0.0
        %2742 = vmatprep.subr.mxu0 0.0
        %2743 = vmatpush2.xpose.msra.mxu0 0.0
        %2744 = vmatprep.subr.mxu0 0.0
        %2745 = vmatpush2.xpose.msra.mxu0 0.0
        %2746 = vmatprep.subr.mxu0 0.0
        %2747 = vmatpush2.xpose.msra.mxu0 0.0
        %2748 = vmatprep.subr.mxu0 0.0
        %2749 = vmatpush2.xpose.msra.mxu0 0.0
        %2750 = vmatprep.subr.mxu0 0.0
        %2751 = vmatpush2.xpose.msra.mxu0 0.0
        %2752 = vmatprep.subr.mxu0 0.0
        %2753 = vmatpush2.xpose.msra.mxu0 0.0
        %2754 = vmatprep.subr.mxu0 0.0
        %2755 = vmatpush2.xpose.msra.mxu0 0.0
        %2756 = vmatprep.subr.mxu0 0.0
        %2757 = vmatpush2.xpose.msra.mxu0 0.0
        %2758 = vmatprep.mubr.f32.mxu0 0.0
        %2759 = vmatmul.mubr.f32.gmra.mxu0 %v2692
        %v2760 = vpop.f32.mrf.mxu0
        %v2761 = vadd.f32 0.0, %v2760
        %v2762 = vpop.f32.mrf.mxu0
        %2763 = vdwg.mxu0
        %v2765 = vsel %vm284, %v721, 0
        %2767 = vmatprep.subr.mxu0 0.0
        %2768 = vmatpush1.xpose.msra.mxu0 0.0
        %2769 = vmatprep.subr.mxu0 0.0
        %2770 = vmatpush1.xpose.msra.mxu0 0.0
        %2771 = vmatprep.subr.mxu0 0.0
        %2772 = vmatpush1.xpose.msra.mxu0 0.0
        %2773 = vmatprep.subr.mxu0 0.0
        %2774 = vmatpush1.xpose.msra.mxu0 0.0
        %2775 = vmatprep.subr.mxu0 0.0
        %2776 = vmatpush1.xpose.msra.mxu0 0.0
        %2777 = vmatprep.subr.mxu0 0.0
        %2778 = vmatpush1.xpose.msra.mxu0 0.0
        %2779 = vmatprep.subr.mxu0 0.0
        %2780 = vmatpush1.xpose.msra.mxu0 0.0
        %2781 = vmatprep.subr.mxu0 0.0
        %2782 = vmatpush1.xpose.msra.mxu0 0.0
        %2783 = vmatprep.subr.mxu0 0.0
        %2784 = vmatpush1.xpose.msra.mxu0 0.0
        %2785 = vmatprep.subr.mxu0 0.0
        %2786 = vmatpush1.xpose.msra.mxu0 0.0
        %2787 = vmatprep.subr.mxu0 0.0
        %2788 = vmatpush1.xpose.msra.mxu0 0.0
        %2789 = vmatprep.subr.mxu0 0.0
        %2790 = vmatpush1.xpose.msra.mxu0 0.0
        %2791 = vmatprep.subr.mxu0 0.0
        %2792 = vmatpush1.xpose.msra.mxu0 0.0
        %2793 = vmatprep.subr.mxu0 0.0
        %2794 = vmatpush1.xpose.msra.mxu0 0.0
        %2795 = vmatprep.subr.mxu0 0.0
        %2796 = vmatpush1.xpose.msra.mxu0 0.0
        %2797 = vmatprep.subr.mxu0 0.0
        %2798 = vmatpush1.xpose.msra.mxu0 %v2546
        %2799 = vmatprep.subr.mxu0 0.0
        %2800 = vmatpush2.xpose.msra.mxu0 0.0
        %2801 = vmatprep.subr.mxu0 0.0
        %2802 = vmatpush2.xpose.msra.mxu0 0.0
        %2803 = vmatprep.subr.mxu0 0.0
        %2804 = vmatpush2.xpose.msra.mxu0 0.0
        %2805 = vmatprep.subr.mxu0 0.0
        %2806 = vmatpush2.xpose.msra.mxu0 0.0
        %2807 = vmatprep.subr.mxu0 0.0
        %2808 = vmatpush2.xpose.msra.mxu0 0.0
        %2809 = vmatprep.subr.mxu0 0.0
        %2810 = vmatpush2.xpose.msra.mxu0 0.0
        %2811 = vmatprep.subr.mxu0 0.0
        %2812 = vmatpush2.xpose.msra.mxu0 0.0
        %2813 = vmatprep.subr.mxu0 0.0
        %2814 = vmatpush2.xpose.msra.mxu0 0.0
        %2815 = vmatprep.subr.mxu0 0.0
        %2816 = vmatpush2.xpose.msra.mxu0 0.0
        %2817 = vmatprep.subr.mxu0 0.0
        %2818 = vmatpush2.xpose.msra.mxu0 0.0
        %2819 = vmatprep.subr.mxu0 0.0
        %2820 = vmatpush2.xpose.msra.mxu0 0.0
        %2821 = vmatprep.subr.mxu0 0.0
        %2822 = vmatpush2.xpose.msra.mxu0 0.0
        %2823 = vmatprep.subr.mxu0 0.0
        %2824 = vmatpush2.xpose.msra.mxu0 0.0
        %2825 = vmatprep.subr.mxu0 0.0
        %2826 = vmatpush2.xpose.msra.mxu0 0.0
        %2827 = vmatprep.subr.mxu0 0.0
        %2828 = vmatpush2.xpose.msra.mxu0 0.0
        %2829 = vmatprep.subr.mxu0 0.0
        %2830 = vmatpush2.xpose.msra.mxu0 0.0
        %2831 = vmatprep.mubr.f32.mxu0 0.0
        %2832 = vmatmul.mubr.f32.gmra.mxu0 %v2765
        %v2833 = vpop.f32.mrf.mxu0
        %v2834 = vadd.f32 0.0, %v2833
        %v2835 = vpop.f32.mrf.mxu0
        %2836 = vdwg.mxu0
        %s2837 = scalar_lea.vmem %s267, 192
        %2838 = vst.msk [vmem:[%s2837] sm:$0xff] %vm1025, %v2615
        %2839 = vst.msk [vmem:[%s2837 + $0x8] sm:$0xff] %vm1025, %v2688
        %2840 = vst.msk [vmem:[%s2837 + $0x10] sm:$0xff] %vm1025, %v2761
        %2841 = vst.msk [vmem:[%s2837 + $0x18] sm:$0xff] %vm1025, %v2834
        %s2842 = scalar_lea.vmem %s257, 56
        %v2843 = vld [vmem:[%s2842] sm:$0xff]
        %v2845 = vsel %vm284, %v411, 0
        %v2848 = vsel %vm284, %v2843, 0
        %2850 = vmatprep.subr.mxu0 0.0
        %2851 = vmatpush1.xpose.msra.mxu0 0.0
        %2852 = vmatprep.subr.mxu0 0.0
        %2853 = vmatpush1.xpose.msra.mxu0 0.0
        %2854 = vmatprep.subr.mxu0 0.0
        %2855 = vmatpush1.xpose.msra.mxu0 0.0
        %2856 = vmatprep.subr.mxu0 0.0
        %2857 = vmatpush1.xpose.msra.mxu0 0.0
        %2858 = vmatprep.subr.mxu0 0.0
        %2859 = vmatpush1.xpose.msra.mxu0 0.0
        %2860 = vmatprep.subr.mxu0 0.0
        %2861 = vmatpush1.xpose.msra.mxu0 0.0
        %2862 = vmatprep.subr.mxu0 0.0
        %2863 = vmatpush1.xpose.msra.mxu0 0.0
        %2864 = vmatprep.subr.mxu0 0.0
        %2865 = vmatpush1.xpose.msra.mxu0 0.0
        %2866 = vmatprep.subr.mxu0 0.0
        %2867 = vmatpush1.xpose.msra.mxu0 0.0
        %2868 = vmatprep.subr.mxu0 0.0
        %2869 = vmatpush1.xpose.msra.mxu0 0.0
        %2870 = vmatprep.subr.mxu0 0.0
        %2871 = vmatpush1.xpose.msra.mxu0 0.0
        %2872 = vmatprep.subr.mxu0 0.0
        %2873 = vmatpush1.xpose.msra.mxu0 0.0
        %2874 = vmatprep.subr.mxu0 0.0
        %2875 = vmatpush1.xpose.msra.mxu0 0.0
        %2876 = vmatprep.subr.mxu0 0.0
        %2877 = vmatpush1.xpose.msra.mxu0 0.0
        %2878 = vmatprep.subr.mxu0 0.0
        %2879 = vmatpush1.xpose.msra.mxu0 0.0
        %2880 = vmatprep.subr.mxu0 0.0
        %2881 = vmatpush1.xpose.msra.mxu0 %v2848
        %2882 = vmatprep.subr.mxu0 0.0
        %2883 = vmatpush2.xpose.msra.mxu0 0.0
        %2884 = vmatprep.subr.mxu0 0.0
        %2885 = vmatpush2.xpose.msra.mxu0 0.0
        %2886 = vmatprep.subr.mxu0 0.0
        %2887 = vmatpush2.xpose.msra.mxu0 0.0
        %2888 = vmatprep.subr.mxu0 0.0
        %2889 = vmatpush2.xpose.msra.mxu0 0.0
        %2890 = vmatprep.subr.mxu0 0.0
        %2891 = vmatpush2.xpose.msra.mxu0 0.0
        %2892 = vmatprep.subr.mxu0 0.0
        %2893 = vmatpush2.xpose.msra.mxu0 0.0
        %2894 = vmatprep.subr.mxu0 0.0
        %2895 = vmatpush2.xpose.msra.mxu0 0.0
        %2896 = vmatprep.subr.mxu0 0.0
        %2897 = vmatpush2.xpose.msra.mxu0 0.0
        %2898 = vmatprep.subr.mxu0 0.0
        %2899 = vmatpush2.xpose.msra.mxu0 0.0
        %2900 = vmatprep.subr.mxu0 0.0
        %2901 = vmatpush2.xpose.msra.mxu0 0.0
        %2902 = vmatprep.subr.mxu0 0.0
        %2903 = vmatpush2.xpose.msra.mxu0 0.0
        %2904 = vmatprep.subr.mxu0 0.0
        %2905 = vmatpush2.xpose.msra.mxu0 0.0
        %2906 = vmatprep.subr.mxu0 0.0
        %2907 = vmatpush2.xpose.msra.mxu0 0.0
        %2908 = vmatprep.subr.mxu0 0.0
        %2909 = vmatpush2.xpose.msra.mxu0 0.0
        %2910 = vmatprep.subr.mxu0 0.0
        %2911 = vmatpush2.xpose.msra.mxu0 0.0
        %2912 = vmatprep.subr.mxu0 0.0
        %2913 = vmatpush2.xpose.msra.mxu0 0.0
        %2914 = vmatprep.mubr.f32.mxu0 0.0
        %2915 = vmatmul.mubr.f32.gmra.mxu0 %v2845
        %v2916 = vpop.f32.mrf.mxu0
        %v2917 = vadd.f32 0.0, %v2916
        %v2918 = vpop.f32.mrf.mxu0
        %2919 = vdwg.mxu0
        %v2921 = vsel %vm284, %v516, 0
        %2923 = vmatprep.subr.mxu0 0.0
        %2924 = vmatpush1.xpose.msra.mxu0 0.0
        %2925 = vmatprep.subr.mxu0 0.0
        %2926 = vmatpush1.xpose.msra.mxu0 0.0
        %2927 = vmatprep.subr.mxu0 0.0
        %2928 = vmatpush1.xpose.msra.mxu0 0.0
        %2929 = vmatprep.subr.mxu0 0.0
        %2930 = vmatpush1.xpose.msra.mxu0 0.0
        %2931 = vmatprep.subr.mxu0 0.0
        %2932 = vmatpush1.xpose.msra.mxu0 0.0
        %2933 = vmatprep.subr.mxu0 0.0
        %2934 = vmatpush1.xpose.msra.mxu0 0.0
        %2935 = vmatprep.subr.mxu0 0.0
        %2936 = vmatpush1.xpose.msra.mxu0 0.0
        %2937 = vmatprep.subr.mxu0 0.0
        %2938 = vmatpush1.xpose.msra.mxu0 0.0
        %2939 = vmatprep.subr.mxu0 0.0
        %2940 = vmatpush1.xpose.msra.mxu0 0.0
        %2941 = vmatprep.subr.mxu0 0.0
        %2942 = vmatpush1.xpose.msra.mxu0 0.0
        %2943 = vmatprep.subr.mxu0 0.0
        %2944 = vmatpush1.xpose.msra.mxu0 0.0
        %2945 = vmatprep.subr.mxu0 0.0
        %2946 = vmatpush1.xpose.msra.mxu0 0.0
        %2947 = vmatprep.subr.mxu0 0.0
        %2948 = vmatpush1.xpose.msra.mxu0 0.0
        %2949 = vmatprep.subr.mxu0 0.0
        %2950 = vmatpush1.xpose.msra.mxu0 0.0
        %2951 = vmatprep.subr.mxu0 0.0
        %2952 = vmatpush1.xpose.msra.mxu0 0.0
        %2953 = vmatprep.subr.mxu0 0.0
        %2954 = vmatpush1.xpose.msra.mxu0 %v2848
        %2955 = vmatprep.subr.mxu0 0.0
        %2956 = vmatpush2.xpose.msra.mxu0 0.0
        %2957 = vmatprep.subr.mxu0 0.0
        %2958 = vmatpush2.xpose.msra.mxu0 0.0
        %2959 = vmatprep.subr.mxu0 0.0
        %2960 = vmatpush2.xpose.msra.mxu0 0.0
        %2961 = vmatprep.subr.mxu0 0.0
        %2962 = vmatpush2.xpose.msra.mxu0 0.0
        %2963 = vmatprep.subr.mxu0 0.0
        %2964 = vmatpush2.xpose.msra.mxu0 0.0
        %2965 = vmatprep.subr.mxu0 0.0
        %2966 = vmatpush2.xpose.msra.mxu0 0.0
        %2967 = vmatprep.subr.mxu0 0.0
        %2968 = vmatpush2.xpose.msra.mxu0 0.0
        %2969 = vmatprep.subr.mxu0 0.0
        %2970 = vmatpush2.xpose.msra.mxu0 0.0
        %2971 = vmatprep.subr.mxu0 0.0
        %2972 = vmatpush2.xpose.msra.mxu0 0.0
        %2973 = vmatprep.subr.mxu0 0.0
        %2974 = vmatpush2.xpose.msra.mxu0 0.0
        %2975 = vmatprep.subr.mxu0 0.0
        %2976 = vmatpush2.xpose.msra.mxu0 0.0
        %2977 = vmatprep.subr.mxu0 0.0
        %2978 = vmatpush2.xpose.msra.mxu0 0.0
        %2979 = vmatprep.subr.mxu0 0.0
        %2980 = vmatpush2.xpose.msra.mxu0 0.0
        %2981 = vmatprep.subr.mxu0 0.0
        %2982 = vmatpush2.xpose.msra.mxu0 0.0
        %2983 = vmatprep.subr.mxu0 0.0
        %2984 = vmatpush2.xpose.msra.mxu0 0.0
        %2985 = vmatprep.subr.mxu0 0.0
        %2986 = vmatpush2.xpose.msra.mxu0 0.0
        %2987 = vmatprep.mubr.f32.mxu0 0.0
        %2988 = vmatmul.mubr.f32.gmra.mxu0 %v2921
        %v2989 = vpop.f32.mrf.mxu0
        %v2990 = vadd.f32 0.0, %v2989
        %v2991 = vpop.f32.mrf.mxu0
        %2992 = vdwg.mxu0
        %v2994 = vsel %vm284, %v621, 0
        %2996 = vmatprep.subr.mxu0 0.0
        %2997 = vmatpush1.xpose.msra.mxu0 0.0
        %2998 = vmatprep.subr.mxu0 0.0
        %2999 = vmatpush1.xpose.msra.mxu0 0.0
        %3000 = vmatprep.subr.mxu0 0.0
        %3001 = vmatpush1.xpose.msra.mxu0 0.0
        %3002 = vmatprep.subr.mxu0 0.0
        %3003 = vmatpush1.xpose.msra.mxu0 0.0
        %3004 = vmatprep.subr.mxu0 0.0
        %3005 = vmatpush1.xpose.msra.mxu0 0.0
        %3006 = vmatprep.subr.mxu0 0.0
        %3007 = vmatpush1.xpose.msra.mxu0 0.0
        %3008 = vmatprep.subr.mxu0 0.0
        %3009 = vmatpush1.xpose.msra.mxu0 0.0
        %3010 = vmatprep.subr.mxu0 0.0
        %3011 = vmatpush1.xpose.msra.mxu0 0.0
        %3012 = vmatprep.subr.mxu0 0.0
        %3013 = vmatpush1.xpose.msra.mxu0 0.0
        %3014 = vmatprep.subr.mxu0 0.0
        %3015 = vmatpush1.xpose.msra.mxu0 0.0
        %3016 = vmatprep.subr.mxu0 0.0
        %3017 = vmatpush1.xpose.msra.mxu0 0.0
        %3018 = vmatprep.subr.mxu0 0.0
        %3019 = vmatpush1.xpose.msra.mxu0 0.0
        %3020 = vmatprep.subr.mxu0 0.0
        %3021 = vmatpush1.xpose.msra.mxu0 0.0
        %3022 = vmatprep.subr.mxu0 0.0
        %3023 = vmatpush1.xpose.msra.mxu0 0.0
        %3024 = vmatprep.subr.mxu0 0.0
        %3025 = vmatpush1.xpose.msra.mxu0 0.0
        %3026 = vmatprep.subr.mxu0 0.0
        %3027 = vmatpush1.xpose.msra.mxu0 %v2848
        %3028 = vmatprep.subr.mxu0 0.0
        %3029 = vmatpush2.xpose.msra.mxu0 0.0
        %3030 = vmatprep.subr.mxu0 0.0
        %3031 = vmatpush2.xpose.msra.mxu0 0.0
        %3032 = vmatprep.subr.mxu0 0.0
        %3033 = vmatpush2.xpose.msra.mxu0 0.0
        %3034 = vmatprep.subr.mxu0 0.0
        %3035 = vmatpush2.xpose.msra.mxu0 0.0
        %3036 = vmatprep.subr.mxu0 0.0
        %3037 = vmatpush2.xpose.msra.mxu0 0.0
        %3038 = vmatprep.subr.mxu0 0.0
        %3039 = vmatpush2.xpose.msra.mxu0 0.0
        %3040 = vmatprep.subr.mxu0 0.0
        %3041 = vmatpush2.xpose.msra.mxu0 0.0
        %3042 = vmatprep.subr.mxu0 0.0
        %3043 = vmatpush2.xpose.msra.mxu0 0.0
        %3044 = vmatprep.subr.mxu0 0.0
        %3045 = vmatpush2.xpose.msra.mxu0 0.0
        %3046 = vmatprep.subr.mxu0 0.0
        %3047 = vmatpush2.xpose.msra.mxu0 0.0
        %3048 = vmatprep.subr.mxu0 0.0
        %3049 = vmatpush2.xpose.msra.mxu0 0.0
        %3050 = vmatprep.subr.mxu0 0.0
        %3051 = vmatpush2.xpose.msra.mxu0 0.0
        %3052 = vmatprep.subr.mxu0 0.0
        %3053 = vmatpush2.xpose.msra.mxu0 0.0
        %3054 = vmatprep.subr.mxu0 0.0
        %3055 = vmatpush2.xpose.msra.mxu0 0.0
        %3056 = vmatprep.subr.mxu0 0.0
        %3057 = vmatpush2.xpose.msra.mxu0 0.0
        %3058 = vmatprep.subr.mxu0 0.0
        %3059 = vmatpush2.xpose.msra.mxu0 0.0
        %3060 = vmatprep.mubr.f32.mxu0 0.0
        %3061 = vmatmul.mubr.f32.gmra.mxu0 %v2994
        %v3062 = vpop.f32.mrf.mxu0
        %v3063 = vadd.f32 0.0, %v3062
        %v3064 = vpop.f32.mrf.mxu0
        %3065 = vdwg.mxu0
        %v3067 = vsel %vm284, %v726, 0
        %3069 = vmatprep.subr.mxu0 0.0
        %3070 = vmatpush1.xpose.msra.mxu0 0.0
        %3071 = vmatprep.subr.mxu0 0.0
        %3072 = vmatpush1.xpose.msra.mxu0 0.0
        %3073 = vmatprep.subr.mxu0 0.0
        %3074 = vmatpush1.xpose.msra.mxu0 0.0
        %3075 = vmatprep.subr.mxu0 0.0
        %3076 = vmatpush1.xpose.msra.mxu0 0.0
        %3077 = vmatprep.subr.mxu0 0.0
        %3078 = vmatpush1.xpose.msra.mxu0 0.0
        %3079 = vmatprep.subr.mxu0 0.0
        %3080 = vmatpush1.xpose.msra.mxu0 0.0
        %3081 = vmatprep.subr.mxu0 0.0
        %3082 = vmatpush1.xpose.msra.mxu0 0.0
        %3083 = vmatprep.subr.mxu0 0.0
        %3084 = vmatpush1.xpose.msra.mxu0 0.0
        %3085 = vmatprep.subr.mxu0 0.0
        %3086 = vmatpush1.xpose.msra.mxu0 0.0
        %3087 = vmatprep.subr.mxu0 0.0
        %3088 = vmatpush1.xpose.msra.mxu0 0.0
        %3089 = vmatprep.subr.mxu0 0.0
        %3090 = vmatpush1.xpose.msra.mxu0 0.0
        %3091 = vmatprep.subr.mxu0 0.0
        %3092 = vmatpush1.xpose.msra.mxu0 0.0
        %3093 = vmatprep.subr.mxu0 0.0
        %3094 = vmatpush1.xpose.msra.mxu0 0.0
        %3095 = vmatprep.subr.mxu0 0.0
        %3096 = vmatpush1.xpose.msra.mxu0 0.0
        %3097 = vmatprep.subr.mxu0 0.0
        %3098 = vmatpush1.xpose.msra.mxu0 0.0
        %3099 = vmatprep.subr.mxu0 0.0
        %3100 = vmatpush1.xpose.msra.mxu0 %v2848
        %3101 = vmatprep.subr.mxu0 0.0
        %3102 = vmatpush2.xpose.msra.mxu0 0.0
        %3103 = vmatprep.subr.mxu0 0.0
        %3104 = vmatpush2.xpose.msra.mxu0 0.0
        %3105 = vmatprep.subr.mxu0 0.0
        %3106 = vmatpush2.xpose.msra.mxu0 0.0
        %3107 = vmatprep.subr.mxu0 0.0
        %3108 = vmatpush2.xpose.msra.mxu0 0.0
        %3109 = vmatprep.subr.mxu0 0.0
        %3110 = vmatpush2.xpose.msra.mxu0 0.0
        %3111 = vmatprep.subr.mxu0 0.0
        %3112 = vmatpush2.xpose.msra.mxu0 0.0
        %3113 = vmatprep.subr.mxu0 0.0
        %3114 = vmatpush2.xpose.msra.mxu0 0.0
        %3115 = vmatprep.subr.mxu0 0.0
        %3116 = vmatpush2.xpose.msra.mxu0 0.0
        %3117 = vmatprep.subr.mxu0 0.0
        %3118 = vmatpush2.xpose.msra.mxu0 0.0
        %3119 = vmatprep.subr.mxu0 0.0
        %3120 = vmatpush2.xpose.msra.mxu0 0.0
        %3121 = vmatprep.subr.mxu0 0.0
        %3122 = vmatpush2.xpose.msra.mxu0 0.0
        %3123 = vmatprep.subr.mxu0 0.0
        %3124 = vmatpush2.xpose.msra.mxu0 0.0
        %3125 = vmatprep.subr.mxu0 0.0
        %3126 = vmatpush2.xpose.msra.mxu0 0.0
        %3127 = vmatprep.subr.mxu0 0.0
        %3128 = vmatpush2.xpose.msra.mxu0 0.0
        %3129 = vmatprep.subr.mxu0 0.0
        %3130 = vmatpush2.xpose.msra.mxu0 0.0
        %3131 = vmatprep.subr.mxu0 0.0
        %3132 = vmatpush2.xpose.msra.mxu0 0.0
        %3133 = vmatprep.mubr.f32.mxu0 0.0
        %3134 = vmatmul.mubr.f32.gmra.mxu0 %v3067
        %v3135 = vpop.f32.mrf.mxu0
        %v3136 = vadd.f32 0.0, %v3135
        %v3137 = vpop.f32.mrf.mxu0
        %3138 = vdwg.mxu0
        %s3139 = scalar_lea.vmem %s267, 224
        %3140 = vst.msk [vmem:[%s3139] sm:$0xff] %vm1025, %v2917
        %3141 = vst.msk [vmem:[%s3139 + $0x8] sm:$0xff] %vm1025, %v2990
        %3142 = vst.msk [vmem:[%s3139 + $0x10] sm:$0xff] %vm1025, %v3063
        %3143 = vst.msk [vmem:[%s3139 + $0x18] sm:$0xff] %vm1025, %v3136
        %p3144 = scmp.lt.s32.totalorder %s29, 1
        %s3145 = scalar_select %p3144, %s29, 1
        %p3146 = scmp.lt.s32.totalorder %s28, 0
        %s3147 = scalar_select %p3146, %s28, 0
        %s3148 = smul.addr %s3147, 32
        %s3149 = smul.addr %s3145, 32
        %s3150 = sadd.s32 %s3148, %s3149
        %s3151 = smul.addr %s3150, 8
        %s3152 = scalar_lea.vmem %s4, %s3151
        // Predicated region
        $region37: #{tpu_custom_call.1} parent=31 // pred_check
          %p3153 = pneg %p138
        $region38: #{tpu_custom_call.1} parent=31 // pred_check_branch
          %3155 = sbr.rel (%p3153) target = $region40
        $region39: #{tpu_custom_call.1} parent=31 // pred_region
          _
        $region40: #{tpu_custom_call.1} parent=31 // pred_fallthru
          _
      $region32: #{tpu_custom_call.1} parent=5 // pred_fallthru
        _
      %p3156 = scmp.le.s32.totalorder 2, %s19
      // Predicated region
      $region41: #{tpu_custom_call.1} parent=5 // pred_check
        %p3157 = pneg %p3156
      $region42: #{tpu_custom_call.1} parent=5 // pred_check_branch
        %3159 = sbr.rel (%p3157) target = $region44
      $region43: #{tpu_custom_call.1} parent=5 // pred_region
        %s3160 = ssub.s32 %s19, 2
        // Predicated region
        $region45: #{tpu_custom_call.1} parent=43 // pred_check
          %p3161 = pneg %p144
        $region46: #{tpu_custom_call.1} parent=43 // pred_check_branch
          %3163 = sbr.rel (%p3161) target = $region48
        $region47: #{tpu_custom_call.1} parent=43 // pred_region
          %p3164 = scmp.lt.s32.totalorder %s31, 1
          %s3165 = scalar_select %p3164, %s31, 1
          %p3166 = scmp.lt.s32.totalorder %s30, 0
          %s3167 = scalar_select %p3166, %s30, 0
          %s3168 = smul.addr %s3167, 32
          %s3169 = smul.addr %s3165, 32
          %s3170 = sadd.s32 %s3168, %s3169
          %s3171 = smul.addr %s3170, 8
          %s3172 = scalar_lea.vmem %s4, %s3171
        $region48: #{tpu_custom_call.1} parent=43 // pred_fallthru
          _
      $region44: #{tpu_custom_call.1} parent=5 // pred_fallthru
        _
    $region6: #{tpu_custom_call.1} parent=1 // loop_footer
      %s23 = sadd.s32 1, %s19
    $region7: #{tpu_custom_call.1} parent=1 // loop_footer_branch
      %18 = sbr.rel target = $region3
    $region8: #{tpu_custom_call.1} parent=1 // loop_exit
      _
    %3173 = vsyncpa [#allocation5], 1
    %s3174 = scalar_lea.sflag [#allocation5], 1
    %3175 = vsyncpa %s3174, 1

</llo_original>
